<compile_context>
chip_gen: v6e
topology: v6e:2x2x1
jax: 0.10.0
libtpu: 0.0.40
codegen_flags: <defaults>
</compile_context>

<pallas_src>
import jax
import jax.numpy as jnp
from jax.experimental import pallas as pl
from jax.experimental.pallas import tpu as pltpu

_KSIZE = 3  # all convs in the reference module are 3x3


# ----------------------------------------------------------------------------
# Parameter initialization (PyTorch layouts: conv (Cout,Cin,kh,kw), fc (out,in))
# ----------------------------------------------------------------------------
def init_params(key, action_size, fc1_units=160, fc2_units=64):
    keys = jax.random.split(key, 10)

    def u(k, shape, fan_in):
        bound = 1.0 / jnp.sqrt(jnp.float32(fan_in))
        return jax.random.uniform(k, shape, jnp.float32, -bound, bound)

    return {
        "conv1_w": u(keys[0], (16, 3, 3, 3), 3 * 9),
        "conv1_b": u(keys[1], (16,), 3 * 9),
        "conv2_w": u(keys[2], (16, 16, 3, 3), 16 * 9),
        "conv2_b": u(keys[3], (16,), 16 * 9),
        "conv3_w": u(keys[4], (10, 16, 3, 3), 16 * 9),
        "conv3_b": u(keys[5], (10,), 16 * 9),
        "fc1_w": u(keys[6], (fc2_units, fc1_units), fc1_units),
        "fc1_b": u(keys[7], (fc2_units,), fc1_units),
        "fc2_w": u(keys[8], (action_size, fc2_units), fc2_units),
        "fc2_b": u(keys[9], (action_size,), fc2_units),
    }


# ----------------------------------------------------------------------------
# One-time parameter preparation (off the per-call hot path)
# ----------------------------------------------------------------------------
def _conv_out(n, stride):
    return (n - _KSIZE) // stride + 1


def _row_select(ho, hi, stride):
    """(3, ho, hi) 0/1 matrices: R[kh, o, i] = 1 iff i == stride*o + kh."""
    kh = jnp.arange(_KSIZE)[:, None, None]
    o = jnp.arange(ho)[None, :, None]
    i = jnp.arange(hi)[None, None, :]
    return (i == stride * o + kh).astype(jnp.float32)


def _expand_conv_cols(w_oihw, wo, wi, stride):
    """Expand a PyTorch conv weight (Cout,Cin,3,3) into per-kh matrices C[kh]
    of shape (wi*Cin, wo*Cout) so that the W-axis part of the conv becomes a
    single 2-D matmul on the (H, W*C)-flattened activation."""
    cout, cin, kh_sz, kw_sz = w_oihw.shape
    kw = jnp.arange(kw_sz)[:, None, None]
    i = jnp.arange(wi)[None, :, None]
    o = jnp.arange(wo)[None, None, :]
    sel = (i == stride * o + kw).astype(jnp.float32)          # (kw, wi, wo)
    w_k = jnp.transpose(w_oihw, (2, 3, 1, 0))                 # (kh, kw, cin, cout)
    c = jnp.einsum("kxy,hkio->hxiyo", sel, w_k)               # (kh, wi, cin, wo, cout)
    return c.reshape(kh_sz, wi * cin, wo * cout)


def prepare_params(params, height=24, width=24):
    """Convert PyTorch-layout params into the kernel-ready operand set."""
    c1w, c2w, c3w = params["conv1_w"], params["conv2_w"], params["conv3_w"]
    h1, w1 = height, width
    h2, w2 = _conv_out(h1, 1), _conv_out(w1, 1)   # conv1, stride 1
    h3, w3 = _conv_out(h2, 2), _conv_out(w2, 2)   # conv2, stride 2
    h4, w4 = _conv_out(h3, 2), _conv_out(w3, 2)   # conv3, stride 2

    cout3 = c3w.shape[0]
    fc1_w, fc2_w = params["fc1_w"], params["fc2_w"]
    if fc1_w.shape[1] != cout3 * h4 * w4:
        raise ValueError(
            f"fc1 expects {fc1_w.shape[1]} inputs but a {height}x{width} image "
            f"produces {cout3}*{h4}*{w4}={cout3 * h4 * w4} conv features.")

    # fc1 acts on the NCHW (c,h,w) flatten in PyTorch; re-order its input axis
    # to the kernel's NHWC (h,w,c) order and split into per-output-row blocks.
    f1 = fc1_w.reshape(fc1_w.shape[0], cout3, h4, w4)          # (out, c, h, w)
    f1 = jnp.transpose(f1, (2, 3, 1, 0))                       # (h, w, c, out)
    f1 = f1.reshape(h4, w4 * cout3, fc1_w.shape[0])            # (h, w*c, out)

    def bias_row(b, wo):
        # out[ho, wo*Cout+co] += b[co]  ->  tile the bias Wo times along lanes.
        return jnp.tile(b, (wo,)).reshape(1, wo * b.shape[0])

    return {
        "r1": _row_select(h2, h1, 1),
        "c1": _expand_conv_cols(c1w, w2, w1, 1),
        "b1": bias_row(params["conv1_b"], w2),
        "r2": _row_select(h3, h2, 2),
        "c2": _expand_conv_cols(c2w, w3, w2, 2),
        "b2": bias_row(params["conv2_b"], w3),
        "r3": _row_select(h4, h3, 2),
        "c3": _expand_conv_cols(c3w, w4, w3, 2),
        "b3": bias_row(params["conv3_b"], w4),
        "w_fc1": f1,
        "b_fc1": params["fc1_b"].reshape(1, -1),
        "w_fc2": fc2_w.T,
        "b_fc2": params["fc2_b"].reshape(1, -1),
    }


# ----------------------------------------------------------------------------
# Fused Pallas kernel: whole forward pass for one image, on-chip end to end
# ----------------------------------------------------------------------------
def _net_kernel(x_ref,
                r1_ref, c1_ref, b1_ref,
                r2_ref, c2_ref, b2_ref,
                r3_ref, c3_ref, b3_ref,
                wf1_ref, bf1_ref, wf2_ref, bf2_ref,
                out_ref):
    def conv_relu(x, r_ref, c_ref, b_ref):
        # x: (Hi, Wi*Cin) -> (Ho, Wo*Cout); sum over the 3 kernel-row offsets.
        acc = None
        for kh in range(_KSIZE):
            rows = jnp.dot(r_ref[kh], x, preferred_element_type=jnp.float32)
            part = jnp.dot(rows, c_ref[kh], preferred_element_type=jnp.float32)
            acc = part if acc is None else acc + part
        return jnp.maximum(acc + b_ref[...], 0.0)

    x = x_ref[...]                                  # (24,  72)  (H, W*C) f32
    x = conv_relu(x, r1_ref, c1_ref, b1_ref)        # (22, 352)
    x = conv_relu(x, r2_ref, c2_ref, b2_ref)        # (10, 160)
    x = conv_relu(x, r3_ref, c3_ref, b3_ref)        # ( 4,  40)

    # fc1: consume conv3 output row-by-row (weights pre-permuted to the NHWC
    # flatten order), then ReLU; fc2 produces the Q-values.
    h = bf1_ref[...]                                # (1, 64)
    for p in range(x.shape[0]):
        h = h + jnp.dot(x[p:p + 1, :], wf1_ref[p],
                        preferred_element_type=jnp.float32)
    h = jnp.maximum(h, 0.0)
    out_ref[...] = (jnp.dot(h, wf2_ref[...], preferred_element_type=jnp.float32)
                    + bf2_ref[...])                 # (1, action_size)


# ----------------------------------------------------------------------------
# Forward pass wrapper (mirrors Net.forward)
# ----------------------------------------------------------------------------
def net_forward(prep, state_nchw):
    """state_nchw: (B, 3, H, W) float -> Q-values (B, action_size)."""
    batch, chan, height, width = state_nchw.shape
    if prep["r1"].shape[2] != height or prep["c1"].shape[1] != width * chan:
        raise ValueError(
            "Input does not match the prepared parameters "
            f"(expected H={prep['r1'].shape[2]}, W*C={prep['c1'].shape[1]}; "
            f"got H={height}, W*C={width * chan}).")

    # NCHW -> NHWC -> lane-dense 2-D (H, W*C) layout expected by the kernel.
    x = jnp.transpose(state_nchw.astype(jnp.float32), (0, 2, 3, 1))
    x = x.reshape(batch, height, width * chan)

    operands = (x,
                prep["r1"], prep["c1"], prep["b1"],
                prep["r2"], prep["c2"], prep["b2"],
                prep["r3"], prep["c3"], prep["b3"],
                prep["w_fc1"], prep["b_fc1"], prep["w_fc2"], prep["b_fc2"])
    action = prep["w_fc2"].shape[1]

    def whole_array_spec(arr):
        zeros = (0,) * arr.ndim
        shape = arr.shape
        return pl.BlockSpec(shape, lambda b: zeros)

    in_specs = [pl.BlockSpec((None, height, width * chan), lambda b: (b, 0, 0))]
    in_specs += [whole_array_spec(a) for a in operands[1:]]

    # Advisory cost estimate for XLA's scheduler.
    flops = 0
    for r_key, c_key in (("r1", "c1"), ("r2", "c2"), ("r3", "c3")):
        _, ho, hi = prep[r_key].shape
        _, kdim, ndim = prep[c_key].shape
        flops += 2 * _KSIZE * (ho * hi * kdim + ho * kdim * ndim)
    flops += 2 * (prep["w_fc1"].size + prep["w_fc2"].size)
    flops *= batch
    bytes_accessed = sum(int(a.size) * a.dtype.itemsize for a in operands)
    bytes_accessed += batch * action * 4

    out = pl.pallas_call(
        _net_kernel,
        grid=(batch,),
        in_specs=in_specs,
        out_specs=pl.BlockSpec((None, 1, action), lambda b: (b, 0, 0)),
        out_shape=jax.ShapeDtypeStruct((batch, 1, action), jnp.float32),
        compiler_params=pltpu.CompilerParams(
            dimension_semantics=("parallel",)),  # v7x: 2 TCs split the batch
        cost_estimate=pl.CostEstimate(flops=flops, transcendentals=0,
                                      bytes_accessed=bytes_accessed),
    )(*operands)
    return out.reshape(batch, action)


# ----------------------------------------------------------------------------
# Pure-JAX reference (for a loose numerical self-check)
# ----------------------------------------------------------------------------
def reference_forward(params, state_nchw):
    dn = ("NCHW", "OIHW", "NCHW")

    def conv_relu(x, w, b, stride):
        y = jax.lax.conv_general_dilated(
            x, w, window_strides=(stride, stride), padding="VALID",
            dimension_numbers=dn, precision=jax.lax.Precision.HIGHEST)
        return jax.nn.relu(y + b[None, :, None, None])

    x = state_nchw.astype(jnp.float32)
    x = conv_relu(x, params["conv1_w"], params["conv1_b"], 1)
    x = conv_relu(x, params["conv2_w"], params["conv2_b"], 2)
    x = conv_relu(x, params["conv3_w"], params["conv3_b"], 2)
    x = x.reshape(x.shape[0], -1)                  # nn.Flatten on NCHW
    x = jax.nn.relu(x @ params["fc1_w"].T + params["fc1_b"])
    return x @ params["fc2_w"].T + params["fc2_b"]


if __name__ == "__main__":
    action_size = 4
    # fc1_units=160 implies a 24x24x3 input (10 * 4 * 4 conv features).
    B, C, H, W = 2, 3, 24, 24

    key = jax.random.PRNGKey(0)
    pkey, xkey = jax.random.split(key)
    params = init_params(pkey, action_size)
    x = jax.random.normal(xkey, (B, C, H, W), dtype=jnp.float32)

    prep = prepare_params(params)                  # one-time weight expansion
    fwd = jax.jit(net_forward)
    out = jax.block_until_ready(fwd(prep, x))

    assert out.shape == (B, action_size), out.shape
    assert out.dtype == jnp.float32
    assert bool(jnp.all(jnp.isfinite(out)))

    # Loose check against a plain-XLA reference (allows MXU precision noise).
    ref = reference_forward(params, x)
    err = float(jnp.max(jnp.abs(out - ref)))
    scale = float(jnp.max(jnp.abs(ref)))
    assert err <= 5e-2 * max(1.0, scale), f"mismatch vs reference: {err} (scale {scale})"

    print("KERNEL_OK")
</pallas_src>

<mosaic_0001>
module attributes {stable_mosaic.version = 11 : i64} {
  func.func @_net_kernel(%arg0: i32, %arg1: memref<1x24x72xf32, #tpu.memory_space<vmem>>, %arg2: memref<3x22x24xf32, #tpu.memory_space<vmem>>, %arg3: memref<3x72x352xf32, #tpu.memory_space<vmem>>, %arg4: memref<1x352xf32, #tpu.memory_space<vmem>>, %arg5: memref<3x10x22xf32, #tpu.memory_space<vmem>>, %arg6: memref<3x352x160xf32, #tpu.memory_space<vmem>>, %arg7: memref<1x160xf32, #tpu.memory_space<vmem>>, %arg8: memref<3x4x10xf32, #tpu.memory_space<vmem>>, %arg9: memref<3x160x40xf32, #tpu.memory_space<vmem>>, %arg10: memref<1x40xf32, #tpu.memory_space<vmem>>, %arg11: memref<4x40x64xf32, #tpu.memory_space<vmem>>, %arg12: memref<1x64xf32, #tpu.memory_space<vmem>>, %arg13: memref<64x4xf32, #tpu.memory_space<vmem>>, %arg14: memref<1x4xf32, #tpu.memory_space<vmem>>, %arg15: memref<1x1x4xf32, #tpu.memory_space<vmem>>) attributes {dimension_semantics = [#tpu.dimension_semantics<parallel>], iteration_bounds = array<i64: 2>, scalar_prefetch = 0 : i64, scratch_operands = 0 : i64, tpu.core_type = #tpu.core_type<tc>, window_params = [{transform_indices = @transform_0, window_bounds = array<i64: 1, 24, 72>}, {pipeline_mode = #tpu.pipeline_mode<synchronous>, transform_indices = @transform_1, window_bounds = array<i64: 3, 22, 24>}, {pipeline_mode = #tpu.pipeline_mode<synchronous>, transform_indices = @transform_2, window_bounds = array<i64: 3, 72, 352>}, {pipeline_mode = #tpu.pipeline_mode<synchronous>, transform_indices = @transform_3, window_bounds = array<i64: 1, 352>}, {pipeline_mode = #tpu.pipeline_mode<synchronous>, transform_indices = @transform_4, window_bounds = array<i64: 3, 10, 22>}, {pipeline_mode = #tpu.pipeline_mode<synchronous>, transform_indices = @transform_5, window_bounds = array<i64: 3, 352, 160>}, {pipeline_mode = #tpu.pipeline_mode<synchronous>, transform_indices = @transform_6, window_bounds = array<i64: 1, 160>}, {pipeline_mode = #tpu.pipeline_mode<synchronous>, transform_indices = @transform_7, window_bounds = array<i64: 3, 4, 10>}, {pipeline_mode = #tpu.pipeline_mode<synchronous>, transform_indices = @transform_8, window_bounds = array<i64: 3, 160, 40>}, {pipeline_mode = #tpu.pipeline_mode<synchronous>, transform_indices = @transform_9, window_bounds = array<i64: 1, 40>}, {pipeline_mode = #tpu.pipeline_mode<synchronous>, transform_indices = @transform_10, window_bounds = array<i64: 4, 40, 64>}, {pipeline_mode = #tpu.pipeline_mode<synchronous>, transform_indices = @transform_11, window_bounds = array<i64: 1, 64>}, {pipeline_mode = #tpu.pipeline_mode<synchronous>, transform_indices = @transform_12, window_bounds = array<i64: 64, 4>}, {pipeline_mode = #tpu.pipeline_mode<synchronous>, transform_indices = @transform_13, window_bounds = array<i64: 1, 4>}, {transform_indices = @transform_14, window_bounds = array<i64: 1, 1, 4>}]} {
    %c0 = arith.constant 0 : index
    %c0_0 = arith.constant 0 : index
    %c0_1 = arith.constant 0 : index
    %0 = vector.load %arg1[%c0, %c0_0, %c0_1] : memref<1x24x72xf32, #tpu.memory_space<vmem>>, vector<1x24x72xf32>
    %1 = vector.shape_cast %0 : vector<1x24x72xf32> to vector<24x72xf32>
    %c0_2 = arith.constant 0 : index
    %c0_3 = arith.constant 0 : index
    %c0_4 = arith.constant 0 : index
    %2 = vector.load %arg2[%c0_2, %c0_3, %c0_4] : memref<3x22x24xf32, #tpu.memory_space<vmem>>, vector<1x22x24xf32>
    %3 = vector.shape_cast %2 : vector<1x22x24xf32> to vector<22x24xf32>
    %cst = arith.constant dense<0.000000e+00> : vector<22x72xf32>
    %4 = tpu.matmul %3, %1, %cst {dimension_numbers = #tpu.dot_dimension_numbers<[1], [0], [0], [1], [0, 0, 1, 1], [], []>} : vector<22x24xf32>, vector<24x72xf32>, vector<22x72xf32> -> vector<22x72xf32>
    %c0_5 = arith.constant 0 : index
    %c0_6 = arith.constant 0 : index
    %c0_7 = arith.constant 0 : index
    %5 = vector.load %arg3[%c0_5, %c0_6, %c0_7] : memref<3x72x352xf32, #tpu.memory_space<vmem>>, vector<1x72x352xf32>
    %6 = vector.shape_cast %5 : vector<1x72x352xf32> to vector<72x352xf32>
    %cst_8 = arith.constant dense<0.000000e+00> : vector<22x352xf32>
    %7 = tpu.matmul %4, %6, %cst_8 {dimension_numbers = #tpu.dot_dimension_numbers<[1], [0], [0], [1], [0, 0, 1, 1], [], []>} : vector<22x72xf32>, vector<72x352xf32>, vector<22x352xf32> -> vector<22x352xf32>
    %c1 = arith.constant 1 : index
    %c0_9 = arith.constant 0 : index
    %c0_10 = arith.constant 0 : index
    %8 = vector.load %arg2[%c1, %c0_9, %c0_10] : memref<3x22x24xf32, #tpu.memory_space<vmem>>, vector<1x22x24xf32>
    %9 = vector.shape_cast %8 : vector<1x22x24xf32> to vector<22x24xf32>
    %cst_11 = arith.constant dense<0.000000e+00> : vector<22x72xf32>
    %10 = tpu.matmul %9, %1, %cst_11 {dimension_numbers = #tpu.dot_dimension_numbers<[1], [0], [0], [1], [0, 0, 1, 1], [], []>} : vector<22x24xf32>, vector<24x72xf32>, vector<22x72xf32> -> vector<22x72xf32>
    %c1_12 = arith.constant 1 : index
    %c0_13 = arith.constant 0 : index
    %c0_14 = arith.constant 0 : index
    %11 = vector.load %arg3[%c1_12, %c0_13, %c0_14] : memref<3x72x352xf32, #tpu.memory_space<vmem>>, vector<1x72x352xf32>
    %12 = vector.shape_cast %11 : vector<1x72x352xf32> to vector<72x352xf32>
    %cst_15 = arith.constant dense<0.000000e+00> : vector<22x352xf32>
    %13 = tpu.matmul %10, %12, %cst_15 {dimension_numbers = #tpu.dot_dimension_numbers<[1], [0], [0], [1], [0, 0, 1, 1], [], []>} : vector<22x72xf32>, vector<72x352xf32>, vector<22x352xf32> -> vector<22x352xf32>
    %14 = arith.addf %7, %13 : vector<22x352xf32>
    %c2 = arith.constant 2 : index
    %c0_16 = arith.constant 0 : index
    %c0_17 = arith.constant 0 : index
    %15 = vector.load %arg2[%c2, %c0_16, %c0_17] : memref<3x22x24xf32, #tpu.memory_space<vmem>>, vector<1x22x24xf32>
    %16 = vector.shape_cast %15 : vector<1x22x24xf32> to vector<22x24xf32>
    %cst_18 = arith.constant dense<0.000000e+00> : vector<22x72xf32>
    %17 = tpu.matmul %16, %1, %cst_18 {dimension_numbers = #tpu.dot_dimension_numbers<[1], [0], [0], [1], [0, 0, 1, 1], [], []>} : vector<22x24xf32>, vector<24x72xf32>, vector<22x72xf32> -> vector<22x72xf32>
    %c2_19 = arith.constant 2 : index
    %c0_20 = arith.constant 0 : index
    %c0_21 = arith.constant 0 : index
    %18 = vector.load %arg3[%c2_19, %c0_20, %c0_21] : memref<3x72x352xf32, #tpu.memory_space<vmem>>, vector<1x72x352xf32>
    %19 = vector.shape_cast %18 : vector<1x72x352xf32> to vector<72x352xf32>
    %cst_22 = arith.constant dense<0.000000e+00> : vector<22x352xf32>
    %20 = tpu.matmul %17, %19, %cst_22 {dimension_numbers = #tpu.dot_dimension_numbers<[1], [0], [0], [1], [0, 0, 1, 1], [], []>} : vector<22x72xf32>, vector<72x352xf32>, vector<22x352xf32> -> vector<22x352xf32>
    %21 = arith.addf %14, %20 : vector<22x352xf32>
    %c0_23 = arith.constant 0 : index
    %c0_24 = arith.constant 0 : index
    %22 = vector.load %arg4[%c0_23, %c0_24] : memref<1x352xf32, #tpu.memory_space<vmem>>, vector<1x352xf32>
    %23 = vector.broadcast %22 : vector<1x352xf32> to vector<22x352xf32>
    %24 = arith.addf %21, %23 : vector<22x352xf32>
    %cst_25 = arith.constant 0.000000e+00 : f32
    %25 = vector.broadcast %cst_25 : f32 to vector<22x352xf32>
    %26 = arith.maximumf %24, %25 : vector<22x352xf32>
    %c0_26 = arith.constant 0 : index
    %c0_27 = arith.constant 0 : index
    %c0_28 = arith.constant 0 : index
    %27 = vector.load %arg5[%c0_26, %c0_27, %c0_28] : memref<3x10x22xf32, #tpu.memory_space<vmem>>, vector<1x10x22xf32>
    %28 = vector.shape_cast %27 : vector<1x10x22xf32> to vector<10x22xf32>
    %cst_29 = arith.constant dense<0.000000e+00> : vector<10x352xf32>
    %29 = tpu.matmul %28, %26, %cst_29 {dimension_numbers = #tpu.dot_dimension_numbers<[1], [0], [0], [1], [0, 0, 1, 1], [], []>} : vector<10x22xf32>, vector<22x352xf32>, vector<10x352xf32> -> vector<10x352xf32>
    %c0_30 = arith.constant 0 : index
    %c0_31 = arith.constant 0 : index
    %c0_32 = arith.constant 0 : index
    %30 = vector.load %arg6[%c0_30, %c0_31, %c0_32] : memref<3x352x160xf32, #tpu.memory_space<vmem>>, vector<1x352x160xf32>
    %31 = vector.shape_cast %30 : vector<1x352x160xf32> to vector<352x160xf32>
    %cst_33 = arith.constant dense<0.000000e+00> : vector<10x160xf32>
    %32 = tpu.matmul %29, %31, %cst_33 {dimension_numbers = #tpu.dot_dimension_numbers<[1], [0], [0], [1], [0, 0, 1, 1], [], []>} : vector<10x352xf32>, vector<352x160xf32>, vector<10x160xf32> -> vector<10x160xf32>
    %c1_34 = arith.constant 1 : index
    %c0_35 = arith.constant 0 : index
    %c0_36 = arith.constant 0 : index
    %33 = vector.load %arg5[%c1_34, %c0_35, %c0_36] : memref<3x10x22xf32, #tpu.memory_space<vmem>>, vector<1x10x22xf32>
    %34 = vector.shape_cast %33 : vector<1x10x22xf32> to vector<10x22xf32>
    %cst_37 = arith.constant dense<0.000000e+00> : vector<10x352xf32>
    %35 = tpu.matmul %34, %26, %cst_37 {dimension_numbers = #tpu.dot_dimension_numbers<[1], [0], [0], [1], [0, 0, 1, 1], [], []>} : vector<10x22xf32>, vector<22x352xf32>, vector<10x352xf32> -> vector<10x352xf32>
    %c1_38 = arith.constant 1 : index
    %c0_39 = arith.constant 0 : index
    %c0_40 = arith.constant 0 : index
    %36 = vector.load %arg6[%c1_38, %c0_39, %c0_40] : memref<3x352x160xf32, #tpu.memory_space<vmem>>, vector<1x352x160xf32>
    %37 = vector.shape_cast %36 : vector<1x352x160xf32> to vector<352x160xf32>
    %cst_41 = arith.constant dense<0.000000e+00> : vector<10x160xf32>
    %38 = tpu.matmul %35, %37, %cst_41 {dimension_numbers = #tpu.dot_dimension_numbers<[1], [0], [0], [1], [0, 0, 1, 1], [], []>} : vector<10x352xf32>, vector<352x160xf32>, vector<10x160xf32> -> vector<10x160xf32>
    %39 = arith.addf %32, %38 : vector<10x160xf32>
    %c2_42 = arith.constant 2 : index
    %c0_43 = arith.constant 0 : index
    %c0_44 = arith.constant 0 : index
    %40 = vector.load %arg5[%c2_42, %c0_43, %c0_44] : memref<3x10x22xf32, #tpu.memory_space<vmem>>, vector<1x10x22xf32>
    %41 = vector.shape_cast %40 : vector<1x10x22xf32> to vector<10x22xf32>
    %cst_45 = arith.constant dense<0.000000e+00> : vector<10x352xf32>
    %42 = tpu.matmul %41, %26, %cst_45 {dimension_numbers = #tpu.dot_dimension_numbers<[1], [0], [0], [1], [0, 0, 1, 1], [], []>} : vector<10x22xf32>, vector<22x352xf32>, vector<10x352xf32> -> vector<10x352xf32>
    %c2_46 = arith.constant 2 : index
    %c0_47 = arith.constant 0 : index
    %c0_48 = arith.constant 0 : index
    %43 = vector.load %arg6[%c2_46, %c0_47, %c0_48] : memref<3x352x160xf32, #tpu.memory_space<vmem>>, vector<1x352x160xf32>
    %44 = vector.shape_cast %43 : vector<1x352x160xf32> to vector<352x160xf32>
    %cst_49 = arith.constant dense<0.000000e+00> : vector<10x160xf32>
    %45 = tpu.matmul %42, %44, %cst_49 {dimension_numbers = #tpu.dot_dimension_numbers<[1], [0], [0], [1], [0, 0, 1, 1], [], []>} : vector<10x352xf32>, vector<352x160xf32>, vector<10x160xf32> -> vector<10x160xf32>
    %46 = arith.addf %39, %45 : vector<10x160xf32>
    %c0_50 = arith.constant 0 : index
    %c0_51 = arith.constant 0 : index
    %47 = vector.load %arg7[%c0_50, %c0_51] : memref<1x160xf32, #tpu.memory_space<vmem>>, vector<1x160xf32>
    %48 = vector.broadcast %47 : vector<1x160xf32> to vector<10x160xf32>
    %49 = arith.addf %46, %48 : vector<10x160xf32>
    %cst_52 = arith.constant 0.000000e+00 : f32
    %50 = vector.broadcast %cst_52 : f32 to vector<10x160xf32>
    %51 = arith.maximumf %49, %50 : vector<10x160xf32>
    %c0_53 = arith.constant 0 : index
    %c0_54 = arith.constant 0 : index
    %c0_55 = arith.constant 0 : index
    %52 = vector.load %arg8[%c0_53, %c0_54, %c0_55] : memref<3x4x10xf32, #tpu.memory_space<vmem>>, vector<1x4x10xf32>
    %53 = vector.shape_cast %52 : vector<1x4x10xf32> to vector<4x10xf32>
    %cst_56 = arith.constant dense<0.000000e+00> : vector<4x160xf32>
    %54 = tpu.matmul %53, %51, %cst_56 {dimension_numbers = #tpu.dot_dimension_numbers<[1], [0], [0], [1], [0, 0, 1, 1], [], []>} : vector<4x10xf32>, vector<10x160xf32>, vector<4x160xf32> -> vector<4x160xf32>
    %c0_57 = arith.constant 0 : index
    %c0_58 = arith.constant 0 : index
    %c0_59 = arith.constant 0 : index
    %55 = vector.load %arg9[%c0_57, %c0_58, %c0_59] : memref<3x160x40xf32, #tpu.memory_space<vmem>>, vector<1x160x40xf32>
    %56 = vector.shape_cast %55 : vector<1x160x40xf32> to vector<160x40xf32>
    %cst_60 = arith.constant dense<0.000000e+00> : vector<4x40xf32>
    %57 = tpu.matmul %54, %56, %cst_60 {dimension_numbers = #tpu.dot_dimension_numbers<[1], [0], [0], [1], [0, 0, 1, 1], [], []>} : vector<4x160xf32>, vector<160x40xf32>, vector<4x40xf32> -> vector<4x40xf32>
    %c1_61 = arith.constant 1 : index
    %c0_62 = arith.constant 0 : index
    %c0_63 = arith.constant 0 : index
    %58 = vector.load %arg8[%c1_61, %c0_62, %c0_63] : memref<3x4x10xf32, #tpu.memory_space<vmem>>, vector<1x4x10xf32>
    %59 = vector.shape_cast %58 : vector<1x4x10xf32> to vector<4x10xf32>
    %cst_64 = arith.constant dense<0.000000e+00> : vector<4x160xf32>
    %60 = tpu.matmul %59, %51, %cst_64 {dimension_numbers = #tpu.dot_dimension_numbers<[1], [0], [0], [1], [0, 0, 1, 1], [], []>} : vector<4x10xf32>, vector<10x160xf32>, vector<4x160xf32> -> vector<4x160xf32>
    %c1_65 = arith.constant 1 : index
    %c0_66 = arith.constant 0 : index
    %c0_67 = arith.constant 0 : index
    %61 = vector.load %arg9[%c1_65, %c0_66, %c0_67] : memref<3x160x40xf32, #tpu.memory_space<vmem>>, vector<1x160x40xf32>
    %62 = vector.shape_cast %61 : vector<1x160x40xf32> to vector<160x40xf32>
    %cst_68 = arith.constant dense<0.000000e+00> : vector<4x40xf32>
    %63 = tpu.matmul %60, %62, %cst_68 {dimension_numbers = #tpu.dot_dimension_numbers<[1], [0], [0], [1], [0, 0, 1, 1], [], []>} : vector<4x160xf32>, vector<160x40xf32>, vector<4x40xf32> -> vector<4x40xf32>
    %64 = arith.addf %57, %63 : vector<4x40xf32>
    %c2_69 = arith.constant 2 : index
    %c0_70 = arith.constant 0 : index
    %c0_71 = arith.constant 0 : index
    %65 = vector.load %arg8[%c2_69, %c0_70, %c0_71] : memref<3x4x10xf32, #tpu.memory_space<vmem>>, vector<1x4x10xf32>
    %66 = vector.shape_cast %65 : vector<1x4x10xf32> to vector<4x10xf32>
    %cst_72 = arith.constant dense<0.000000e+00> : vector<4x160xf32>
    %67 = tpu.matmul %66, %51, %cst_72 {dimension_numbers = #tpu.dot_dimension_numbers<[1], [0], [0], [1], [0, 0, 1, 1], [], []>} : vector<4x10xf32>, vector<10x160xf32>, vector<4x160xf32> -> vector<4x160xf32>
    %c2_73 = arith.constant 2 : index
    %c0_74 = arith.constant 0 : index
    %c0_75 = arith.constant 0 : index
    %68 = vector.load %arg9[%c2_73, %c0_74, %c0_75] : memref<3x160x40xf32, #tpu.memory_space<vmem>>, vector<1x160x40xf32>
    %69 = vector.shape_cast %68 : vector<1x160x40xf32> to vector<160x40xf32>
    %cst_76 = arith.constant dense<0.000000e+00> : vector<4x40xf32>
    %70 = tpu.matmul %67, %69, %cst_76 {dimension_numbers = #tpu.dot_dimension_numbers<[1], [0], [0], [1], [0, 0, 1, 1], [], []>} : vector<4x160xf32>, vector<160x40xf32>, vector<4x40xf32> -> vector<4x40xf32>
    %71 = arith.addf %64, %70 : vector<4x40xf32>
    %c0_77 = arith.constant 0 : index
    %c0_78 = arith.constant 0 : index
    %72 = vector.load %arg10[%c0_77, %c0_78] : memref<1x40xf32, #tpu.memory_space<vmem>>, vector<1x40xf32>
    %73 = vector.broadcast %72 : vector<1x40xf32> to vector<4x40xf32>
    %74 = arith.addf %71, %73 : vector<4x40xf32>
    %cst_79 = arith.constant 0.000000e+00 : f32
    %75 = vector.broadcast %cst_79 : f32 to vector<4x40xf32>
    %76 = arith.maximumf %74, %75 : vector<4x40xf32>
    %c0_80 = arith.constant 0 : index
    %c0_81 = arith.constant 0 : index
    %77 = vector.load %arg12[%c0_80, %c0_81] : memref<1x64xf32, #tpu.memory_space<vmem>>, vector<1x64xf32>
    %78 = vector.extract_strided_slice %76 {offsets = [0, 0], sizes = [1, 40], strides = [1, 1]} : vector<4x40xf32> to vector<1x40xf32>
    %c0_82 = arith.constant 0 : index
    %c0_83 = arith.constant 0 : index
    %c0_84 = arith.constant 0 : index
    %79 = vector.load %arg11[%c0_82, %c0_83, %c0_84] : memref<4x40x64xf32, #tpu.memory_space<vmem>>, vector<1x40x64xf32>
    %80 = vector.shape_cast %79 : vector<1x40x64xf32> to vector<40x64xf32>
    %cst_85 = arith.constant dense<0.000000e+00> : vector<1x64xf32>
    %81 = tpu.matmul %78, %80, %cst_85 {dimension_numbers = #tpu.dot_dimension_numbers<[1], [0], [0], [1], [0, 0, 1, 1], [], []>} : vector<1x40xf32>, vector<40x64xf32>, vector<1x64xf32> -> vector<1x64xf32>
    %82 = arith.addf %77, %81 : vector<1x64xf32>
    %83 = vector.extract_strided_slice %76 {offsets = [1, 0], sizes = [1, 40], strides = [1, 1]} : vector<4x40xf32> to vector<1x40xf32>
    %c1_86 = arith.constant 1 : index
    %c0_87 = arith.constant 0 : index
    %c0_88 = arith.constant 0 : index
    %84 = vector.load %arg11[%c1_86, %c0_87, %c0_88] : memref<4x40x64xf32, #tpu.memory_space<vmem>>, vector<1x40x64xf32>
    %85 = vector.shape_cast %84 : vector<1x40x64xf32> to vector<40x64xf32>
    %cst_89 = arith.constant dense<0.000000e+00> : vector<1x64xf32>
    %86 = tpu.matmul %83, %85, %cst_89 {dimension_numbers = #tpu.dot_dimension_numbers<[1], [0], [0], [1], [0, 0, 1, 1], [], []>} : vector<1x40xf32>, vector<40x64xf32>, vector<1x64xf32> -> vector<1x64xf32>
    %87 = arith.addf %82, %86 : vector<1x64xf32>
    %88 = vector.extract_strided_slice %76 {offsets = [2, 0], sizes = [1, 40], strides = [1, 1]} : vector<4x40xf32> to vector<1x40xf32>
    %c2_90 = arith.constant 2 : index
    %c0_91 = arith.constant 0 : index
    %c0_92 = arith.constant 0 : index
    %89 = vector.load %arg11[%c2_90, %c0_91, %c0_92] : memref<4x40x64xf32, #tpu.memory_space<vmem>>, vector<1x40x64xf32>
    %90 = vector.shape_cast %89 : vector<1x40x64xf32> to vector<40x64xf32>
    %cst_93 = arith.constant dense<0.000000e+00> : vector<1x64xf32>
    %91 = tpu.matmul %88, %90, %cst_93 {dimension_numbers = #tpu.dot_dimension_numbers<[1], [0], [0], [1], [0, 0, 1, 1], [], []>} : vector<1x40xf32>, vector<40x64xf32>, vector<1x64xf32> -> vector<1x64xf32>
    %92 = arith.addf %87, %91 : vector<1x64xf32>
    %93 = vector.extract_strided_slice %76 {offsets = [3, 0], sizes = [1, 40], strides = [1, 1]} : vector<4x40xf32> to vector<1x40xf32>
    %c3 = arith.constant 3 : index
    %c0_94 = arith.constant 0 : index
    %c0_95 = arith.constant 0 : index
    %94 = vector.load %arg11[%c3, %c0_94, %c0_95] : memref<4x40x64xf32, #tpu.memory_space<vmem>>, vector<1x40x64xf32>
    %95 = vector.shape_cast %94 : vector<1x40x64xf32> to vector<40x64xf32>
    %cst_96 = arith.constant dense<0.000000e+00> : vector<1x64xf32>
    %96 = tpu.matmul %93, %95, %cst_96 {dimension_numbers = #tpu.dot_dimension_numbers<[1], [0], [0], [1], [0, 0, 1, 1], [], []>} : vector<1x40xf32>, vector<40x64xf32>, vector<1x64xf32> -> vector<1x64xf32>
    %97 = arith.addf %92, %96 : vector<1x64xf32>
    %cst_97 = arith.constant 0.000000e+00 : f32
    %98 = vector.broadcast %cst_97 : f32 to vector<1x64xf32>
    %99 = arith.maximumf %97, %98 : vector<1x64xf32>
    %c0_98 = arith.constant 0 : index
    %c0_99 = arith.constant 0 : index
    %100 = vector.load %arg13[%c0_98, %c0_99] : memref<64x4xf32, #tpu.memory_space<vmem>>, vector<64x4xf32>
    %cst_100 = arith.constant dense<0.000000e+00> : vector<1x4xf32>
    %101 = tpu.matmul %99, %100, %cst_100 {dimension_numbers = #tpu.dot_dimension_numbers<[1], [0], [0], [1], [0, 0, 1, 1], [], []>} : vector<1x64xf32>, vector<64x4xf32>, vector<1x4xf32> -> vector<1x4xf32>
    %c0_101 = arith.constant 0 : index
    %c0_102 = arith.constant 0 : index
    %102 = vector.load %arg14[%c0_101, %c0_102] : memref<1x4xf32, #tpu.memory_space<vmem>>, vector<1x4xf32>
    %103 = arith.addf %101, %102 : vector<1x4xf32>
    %c0_103 = arith.constant 0 : index
    %c0_104 = arith.constant 0 : index
    %c0_105 = arith.constant 0 : index
    %104 = vector.load %arg15[%c0_103, %c0_104, %c0_105] : memref<1x1x4xf32, #tpu.memory_space<vmem>>, vector<1x1x4xf32>
    %105 = vector.shape_cast %104 : vector<1x1x4xf32> to vector<1x4xf32>
    %106 = vector.shape_cast %103 : vector<1x4xf32> to vector<1x1x4xf32>
    tpu.vector_store %arg15[%c0_103, %c0_104, %c0_105], %106 {strides = array<i32>} : memref<1x1x4xf32, #tpu.memory_space<vmem>>, vector<1x1x4xf32>,
    return
  }
  func.func @transform_0(%arg0: i32) -> (i32, i32, i32) {
    %c0_i32 = arith.constant 0 : i32
    %c0_i32_0 = arith.constant 0 : i32
    %c0_i32_1 = arith.constant 0 : i32
    return %arg0, %c0_i32, %c0_i32_0 : i32, i32, i32
  }
  func.func @transform_1(%arg0: i32) -> (i32, i32, i32) {
    %c0_i32 = arith.constant 0 : i32
    %c0_i32_0 = arith.constant 0 : i32
    %c0_i32_1 = arith.constant 0 : i32
    %c0_i32_2 = arith.constant 0 : i32
    return %c0_i32, %c0_i32_0, %c0_i32_1 : i32, i32, i32
  }
  func.func @transform_2(%arg0: i32) -> (i32, i32, i32) {
    %c0_i32 = arith.constant 0 : i32
    %c0_i32_0 = arith.constant 0 : i32
    %c0_i32_1 = arith.constant 0 : i32
    %c0_i32_2 = arith.constant 0 : i32
    return %c0_i32, %c0_i32_0, %c0_i32_1 : i32, i32, i32
  }
  func.func @transform_3(%arg0: i32) -> (i32, i32) {
    %c0_i32 = arith.constant 0 : i32
    %c0_i32_0 = arith.constant 0 : i32
    %c0_i32_1 = arith.constant 0 : i32
    return %c0_i32, %c0_i32_0 : i32, i32
  }
  func.func @transform_4(%arg0: i32) -> (i32, i32, i32) {
    %c0_i32 = arith.constant 0 : i32
    %c0_i32_0 = arith.constant 0 : i32
    %c0_i32_1 = arith.constant 0 : i32
    %c0_i32_2 = arith.constant 0 : i32
    return %c0_i32, %c0_i32_0, %c0_i32_1 : i32, i32, i32
  }
  func.func @transform_5(%arg0: i32) -> (i32, i32, i32) {
    %c0_i32 = arith.constant 0 : i32
    %c0_i32_0 = arith.constant 0 : i32
    %c0_i32_1 = arith.constant 0 : i32
    %c0_i32_2 = arith.constant 0 : i32
    return %c0_i32, %c0_i32_0, %c0_i32_1 : i32, i32, i32
  }
  func.func @transform_6(%arg0: i32) -> (i32, i32) {
    %c0_i32 = arith.constant 0 : i32
    %c0_i32_0 = arith.constant 0 : i32
    %c0_i32_1 = arith.constant 0 : i32
    return %c0_i32, %c0_i32_0 : i32, i32
  }
  func.func @transform_7(%arg0: i32) -> (i32, i32, i32) {
    %c0_i32 = arith.constant 0 : i32
    %c0_i32_0 = arith.constant 0 : i32
    %c0_i32_1 = arith.constant 0 : i32
    %c0_i32_2 = arith.constant 0 : i32
    return %c0_i32, %c0_i32_0, %c0_i32_1 : i32, i32, i32
  }
  func.func @transform_8(%arg0: i32) -> (i32, i32, i32) {
    %c0_i32 = arith.constant 0 : i32
    %c0_i32_0 = arith.constant 0 : i32
    %c0_i32_1 = arith.constant 0 : i32
    %c0_i32_2 = arith.constant 0 : i32
    return %c0_i32, %c0_i32_0, %c0_i32_1 : i32, i32, i32
  }
  func.func @transform_9(%arg0: i32) -> (i32, i32) {
    %c0_i32 = arith.constant 0 : i32
    %c0_i32_0 = arith.constant 0 : i32
    %c0_i32_1 = arith.constant 0 : i32
    return %c0_i32, %c0_i32_0 : i32, i32
  }
  func.func @transform_10(%arg0: i32) -> (i32, i32, i32) {
    %c0_i32 = arith.constant 0 : i32
    %c0_i32_0 = arith.constant 0 : i32
    %c0_i32_1 = arith.constant 0 : i32
    %c0_i32_2 = arith.constant 0 : i32
    return %c0_i32, %c0_i32_0, %c0_i32_1 : i32, i32, i32
  }
  func.func @transform_11(%arg0: i32) -> (i32, i32) {
    %c0_i32 = arith.constant 0 : i32
    %c0_i32_0 = arith.constant 0 : i32
    %c0_i32_1 = arith.constant 0 : i32
    return %c0_i32, %c0_i32_0 : i32, i32
  }
  func.func @transform_12(%arg0: i32) -> (i32, i32) {
    %c0_i32 = arith.constant 0 : i32
    %c0_i32_0 = arith.constant 0 : i32
    %c0_i32_1 = arith.constant 0 : i32
    return %c0_i32, %c0_i32_0 : i32, i32
  }
  func.func @transform_13(%arg0: i32) -> (i32, i32) {
    %c0_i32 = arith.constant 0 : i32
    %c0_i32_0 = arith.constant 0 : i32
    %c0_i32_1 = arith.constant 0 : i32
    return %c0_i32, %c0_i32_0 : i32, i32
  }
  func.func @transform_14(%arg0: i32) -> (i32, i32, i32) {
    %c0_i32 = arith.constant 0 : i32
    %c0_i32_0 = arith.constant 0 : i32
    %c0_i32_1 = arith.constant 0 : i32
    return %arg0, %c0_i32, %c0_i32_0 : i32, i32, i32
  }
}

</mosaic_0001>

<llo_original>
// kernel: net_forward.1
$region0: #{net_forward.1}
  #allocation0 [shape = 'u32[]', space=smem, size = 0x4, offset = 0x4, fixed_abs, tag = 'smem constant byte address 0x4 - core index']
  #allocation1 [shape = 'u32[144,128]{1,0:T(1,128)}', space=vmem, size = 0x12000, scoped, tag = 'internal scratch']
  %s0 = inlined_call_operand.vmem [shape: f32[2,24,72], index: 0, kind: input, shape index: {}]
  %s1 = inlined_call_operand.vmem [shape: f32[3,22,24], index: 1, kind: input, shape index: {}]
  %s2 = inlined_call_operand.vmem [shape: f32[3,72,352], index: 2, kind: input, shape index: {}]
  %s3 = inlined_call_operand.vmem [shape: f32[1,352], index: 3, kind: input, shape index: {}]
  %s4 = inlined_call_operand.vmem [shape: f32[3,10,22], index: 4, kind: input, shape index: {}]
  %s5 = inlined_call_operand.vmem [shape: f32[3,352,160], index: 5, kind: input, shape index: {}]
  %s6 = inlined_call_operand.vmem [shape: f32[1,160], index: 6, kind: input, shape index: {}]
  %s7 = inlined_call_operand.vmem [shape: f32[3,4,10], index: 7, kind: input, shape index: {}]
  %s8 = inlined_call_operand.vmem [shape: f32[3,160,40], index: 8, kind: input, shape index: {}]
  %s9 = inlined_call_operand.vmem [shape: f32[1,40], index: 9, kind: input, shape index: {}]
  %s10 = inlined_call_operand.vmem [shape: f32[4,40,64], index: 10, kind: input, shape index: {}]
  %s11 = inlined_call_operand.vmem [shape: f32[1,64], index: 11, kind: input, shape index: {}]
  %s12 = inlined_call_operand.vmem [shape: f32[64,4], index: 12, kind: input, shape index: {}]
  %s13 = inlined_call_operand.vmem [shape: f32[1,4], index: 13, kind: input, shape index: {}]
  %s14 = inlined_call_operand.hbm [shape: f32[2,1,4], index: 14, kind: output, shape index: {}]
  %s15 = sld [smem:[#allocation0]]
  $region89: #{net_forward.1} parent=0
    _
  %s17 = ssub.s32 1, %s15
  %s18 = scalar_select 0, %s17, %s15
  $region1: #{net_forward.1} parent=0
    #allocation2 [shape = 'u8[1024]{0}', space=vmem, size = 0x400, scoped, tag = 'output window, operand 0']
    #allocation3 [shape = 's32[2]{0}', space=sflag, size = 0x8, scoped, tag = 'scoped memory for net_forward.1']
    %19 = vsyncpa [#allocation3], 0
    %s20 = scalar_lea.sflag [#allocation3], 1
    %21 = vsyncpa %s20, 0
    loop: start=0, step=1, limit=4
    $region2: #{net_forward.1} parent=1 // loop_pre_header
      _
    $region3: #{net_forward.1} parent=1 // loop_header
      %s23 = sphi 0, %s27
      %p24 = scmp.ge.s32.totalorder %s23, 4
      %s33 = sphi 0, %s35
      %s36 = sphi 0, %s33
      %s37 = sphi 0, %s36
      %s53 = sphi 0, %s37
      %s57 = sphi 0, %s57
      %s59 = sphi 0, %s57
      %s60 = sphi 0, %s59
      %s74 = sphi 0, %s60
      %s78 = sphi 0, %s78
      %s80 = sphi 0, %s78
      %s81 = sphi 0, %s80
      %s95 = sphi 0, %s81
      %s99 = sphi 0, %s99
      %s101 = sphi 0, %s99
      %s102 = sphi 0, %s101
      %s116 = sphi 0, %s102
      %s120 = sphi 0, %s120
      %s122 = sphi 0, %s120
      %s123 = sphi 0, %s122
      %s137 = sphi 0, %s123
      %s141 = sphi 0, %s141
      %s143 = sphi 0, %s141
      %s144 = sphi 0, %s143
      %s158 = sphi 0, %s144
      %s162 = sphi 0, %s162
      %s164 = sphi 0, %s162
      %s165 = sphi 0, %s164
      %s179 = sphi 0, %s165
      %s183 = sphi 0, %s183
      %s185 = sphi 0, %s183
      %s186 = sphi 0, %s185
      %s200 = sphi 0, %s186
      %s204 = sphi 0, %s204
      %s206 = sphi 0, %s204
      %s207 = sphi 0, %s206
      %s221 = sphi 0, %s207
      %s225 = sphi 0, %s225
      %s227 = sphi 0, %s225
      %s228 = sphi 0, %s227
      %s242 = sphi 0, %s228
      %s246 = sphi 0, %s246
      %s248 = sphi 0, %s246
      %s249 = sphi 0, %s248
      %s263 = sphi 0, %s249
      %s267 = sphi 0, %s267
      %s269 = sphi 0, %s267
      %s270 = sphi 0, %s269
      %s284 = sphi 0, %s270
      %s288 = sphi 0, %s288
      %s290 = sphi 0, %s288
      %s291 = sphi 0, %s290
      %s305 = sphi 0, %s291
      %s309 = sphi 0, %s309
      %s311 = sphi 0, %s309
      %s312 = sphi 0, %s311
      %s326 = sphi 0, %s312
      %s332 = sphi 0, %s334
      %s335 = sphi 0, %s332
      %s336 = sphi 0, %s335
      %s352 = sphi 0, %s336
    $region4: #{net_forward.1} parent=1 // loop_header_branch
      %26 = sbr.rel (%p24) target = $region8
    $region5: #{net_forward.1} parent=1 // loop_body
      %s28 = ssub.s32 %s23, 1
      %s29 = ssub.s32 %s23, 2
      %s30 = sadd.s32 %s23, 1
      %s31 = ssub.s32 %s23, %s30
      %p32 = scmp.eq.s32.totalorder %s31, 0
      %s34 = sadd.s32 %s33, 1
      %s35 = scalar_select %p32, %s33, %s34
      %p38 = pneg %p32
      %p39 = scmp.eq.s32.totalorder %s23, 1
      %p40 = por %p38, %p39
      %p41 = scmp.ne.s32.totalorder %s33, %s36
      %p42 = scmp.eq.s32.totalorder %s23, 0
      %p43 = por %p41, %p42
      %p44 = scmp.ne.s32.totalorder %s33, %s36
      %p45 = scmp.eq.s32.totalorder %s28, 1
      %p46 = por %p44, %p45
      %p47 = scmp.ne.s32.totalorder %s36, %s37
      %p48 = scmp.eq.s32.totalorder %s28, 0
      %p49 = por %p47, %p48
      %p50 = scmp.ne.s32.totalorder %s36, %s37
      %p51 = scmp.eq.s32.totalorder %s29, 1
      %p52 = por %p50, %p51
      %p54 = scmp.ne.s32.totalorder %s37, %s53
      %p55 = scmp.eq.s32.totalorder %s29, 0
      %p56 = por %p54, %p55
      %s58 = sadd.s32 %s57, 1
      %p61 = scmp.eq.s32.totalorder %s23, 1
      %p62 = scmp.ne.s32.totalorder %s57, %s59
      %p63 = scmp.eq.s32.totalorder %s23, 0
      %p64 = por %p62, %p63
      %p65 = scmp.ne.s32.totalorder %s57, %s59
      %p66 = scmp.eq.s32.totalorder %s28, 1
      %p67 = por %p65, %p66
      %p68 = scmp.ne.s32.totalorder %s59, %s60
      %p69 = scmp.eq.s32.totalorder %s28, 0
      %p70 = por %p68, %p69
      %p71 = scmp.ne.s32.totalorder %s59, %s60
      %p72 = scmp.eq.s32.totalorder %s29, 1
      %p73 = por %p71, %p72
      %p75 = scmp.ne.s32.totalorder %s60, %s74
      %p76 = scmp.eq.s32.totalorder %s29, 0
      %p77 = por %p75, %p76
      %s79 = sadd.s32 %s78, 1
      %p82 = scmp.eq.s32.totalorder %s23, 1
      %p83 = scmp.ne.s32.totalorder %s78, %s80
      %p84 = scmp.eq.s32.totalorder %s23, 0
      %p85 = por %p83, %p84
      %p86 = scmp.ne.s32.totalorder %s78, %s80
      %p87 = scmp.eq.s32.totalorder %s28, 1
      %p88 = por %p86, %p87
      %p89 = scmp.ne.s32.totalorder %s80, %s81
      %p90 = scmp.eq.s32.totalorder %s28, 0
      %p91 = por %p89, %p90
      %p92 = scmp.ne.s32.totalorder %s80, %s81
      %p93 = scmp.eq.s32.totalorder %s29, 1
      %p94 = por %p92, %p93
      %p96 = scmp.ne.s32.totalorder %s81, %s95
      %p97 = scmp.eq.s32.totalorder %s29, 0
      %p98 = por %p96, %p97
      %s100 = sadd.s32 %s99, 1
      %p103 = scmp.eq.s32.totalorder %s23, 1
      %p104 = scmp.ne.s32.totalorder %s99, %s101
      %p105 = scmp.eq.s32.totalorder %s23, 0
      %p106 = por %p104, %p105
      %p107 = scmp.ne.s32.totalorder %s99, %s101
      %p108 = scmp.eq.s32.totalorder %s28, 1
      %p109 = por %p107, %p108
      %p110 = scmp.ne.s32.totalorder %s101, %s102
      %p111 = scmp.eq.s32.totalorder %s28, 0
      %p112 = por %p110, %p111
      %p113 = scmp.ne.s32.totalorder %s101, %s102
      %p114 = scmp.eq.s32.totalorder %s29, 1
      %p115 = por %p113, %p114
      %p117 = scmp.ne.s32.totalorder %s102, %s116
      %p118 = scmp.eq.s32.totalorder %s29, 0
      %p119 = por %p117, %p118
      %s121 = sadd.s32 %s120, 1
      %p124 = scmp.eq.s32.totalorder %s23, 1
      %p125 = scmp.ne.s32.totalorder %s120, %s122
      %p126 = scmp.eq.s32.totalorder %s23, 0
      %p127 = por %p125, %p126
      %p128 = scmp.ne.s32.totalorder %s120, %s122
      %p129 = scmp.eq.s32.totalorder %s28, 1
      %p130 = por %p128, %p129
      %p131 = scmp.ne.s32.totalorder %s122, %s123
      %p132 = scmp.eq.s32.totalorder %s28, 0
      %p133 = por %p131, %p132
      %p134 = scmp.ne.s32.totalorder %s122, %s123
      %p135 = scmp.eq.s32.totalorder %s29, 1
      %p136 = por %p134, %p135
      %p138 = scmp.ne.s32.totalorder %s123, %s137
      %p139 = scmp.eq.s32.totalorder %s29, 0
      %p140 = por %p138, %p139
      %s142 = sadd.s32 %s141, 1
      %p145 = scmp.eq.s32.totalorder %s23, 1
      %p146 = scmp.ne.s32.totalorder %s141, %s143
      %p147 = scmp.eq.s32.totalorder %s23, 0
      %p148 = por %p146, %p147
      %p149 = scmp.ne.s32.totalorder %s141, %s143
      %p150 = scmp.eq.s32.totalorder %s28, 1
      %p151 = por %p149, %p150
      %p152 = scmp.ne.s32.totalorder %s143, %s144
      %p153 = scmp.eq.s32.totalorder %s28, 0
      %p154 = por %p152, %p153
      %p155 = scmp.ne.s32.totalorder %s143, %s144
      %p156 = scmp.eq.s32.totalorder %s29, 1
      %p157 = por %p155, %p156
      %p159 = scmp.ne.s32.totalorder %s144, %s158
      %p160 = scmp.eq.s32.totalorder %s29, 0
      %p161 = por %p159, %p160
      %s163 = sadd.s32 %s162, 1
      %p166 = scmp.eq.s32.totalorder %s23, 1
      %p167 = scmp.ne.s32.totalorder %s162, %s164
      %p168 = scmp.eq.s32.totalorder %s23, 0
      %p169 = por %p167, %p168
      %p170 = scmp.ne.s32.totalorder %s162, %s164
      %p171 = scmp.eq.s32.totalorder %s28, 1
      %p172 = por %p170, %p171
      %p173 = scmp.ne.s32.totalorder %s164, %s165
      %p174 = scmp.eq.s32.totalorder %s28, 0
      %p175 = por %p173, %p174
      %p176 = scmp.ne.s32.totalorder %s164, %s165
      %p177 = scmp.eq.s32.totalorder %s29, 1
      %p178 = por %p176, %p177
      %p180 = scmp.ne.s32.totalorder %s165, %s179
      %p181 = scmp.eq.s32.totalorder %s29, 0
      %p182 = por %p180, %p181
      %s184 = sadd.s32 %s183, 1
      %p187 = scmp.eq.s32.totalorder %s23, 1
      %p188 = scmp.ne.s32.totalorder %s183, %s185
      %p189 = scmp.eq.s32.totalorder %s23, 0
      %p190 = por %p188, %p189
      %p191 = scmp.ne.s32.totalorder %s183, %s185
      %p192 = scmp.eq.s32.totalorder %s28, 1
      %p193 = por %p191, %p192
      %p194 = scmp.ne.s32.totalorder %s185, %s186
      %p195 = scmp.eq.s32.totalorder %s28, 0
      %p196 = por %p194, %p195
      %p197 = scmp.ne.s32.totalorder %s185, %s186
      %p198 = scmp.eq.s32.totalorder %s29, 1
      %p199 = por %p197, %p198
      %p201 = scmp.ne.s32.totalorder %s186, %s200
      %p202 = scmp.eq.s32.totalorder %s29, 0
      %p203 = por %p201, %p202
      %s205 = sadd.s32 %s204, 1
      %p208 = scmp.eq.s32.totalorder %s23, 1
      %p209 = scmp.ne.s32.totalorder %s204, %s206
      %p210 = scmp.eq.s32.totalorder %s23, 0
      %p211 = por %p209, %p210
      %p212 = scmp.ne.s32.totalorder %s204, %s206
      %p213 = scmp.eq.s32.totalorder %s28, 1
      %p214 = por %p212, %p213
      %p215 = scmp.ne.s32.totalorder %s206, %s207
      %p216 = scmp.eq.s32.totalorder %s28, 0
      %p217 = por %p215, %p216
      %p218 = scmp.ne.s32.totalorder %s206, %s207
      %p219 = scmp.eq.s32.totalorder %s29, 1
      %p220 = por %p218, %p219
      %p222 = scmp.ne.s32.totalorder %s207, %s221
      %p223 = scmp.eq.s32.totalorder %s29, 0
      %p224 = por %p222, %p223
      %s226 = sadd.s32 %s225, 1
      %p229 = scmp.eq.s32.totalorder %s23, 1
      %p230 = scmp.ne.s32.totalorder %s225, %s227
      %p231 = scmp.eq.s32.totalorder %s23, 0
      %p232 = por %p230, %p231
      %p233 = scmp.ne.s32.totalorder %s225, %s227
      %p234 = scmp.eq.s32.totalorder %s28, 1
      %p235 = por %p233, %p234
      %p236 = scmp.ne.s32.totalorder %s227, %s228
      %p237 = scmp.eq.s32.totalorder %s28, 0
      %p238 = por %p236, %p237
      %p239 = scmp.ne.s32.totalorder %s227, %s228
      %p240 = scmp.eq.s32.totalorder %s29, 1
      %p241 = por %p239, %p240
      %p243 = scmp.ne.s32.totalorder %s228, %s242
      %p244 = scmp.eq.s32.totalorder %s29, 0
      %p245 = por %p243, %p244
      %s247 = sadd.s32 %s246, 1
      %p250 = scmp.eq.s32.totalorder %s23, 1
      %p251 = scmp.ne.s32.totalorder %s246, %s248
      %p252 = scmp.eq.s32.totalorder %s23, 0
      %p253 = por %p251, %p252
      %p254 = scmp.ne.s32.totalorder %s246, %s248
      %p255 = scmp.eq.s32.totalorder %s28, 1
      %p256 = por %p254, %p255
      %p257 = scmp.ne.s32.totalorder %s248, %s249
      %p258 = scmp.eq.s32.totalorder %s28, 0
      %p259 = por %p257, %p258
      %p260 = scmp.ne.s32.totalorder %s248, %s249
      %p261 = scmp.eq.s32.totalorder %s29, 1
      %p262 = por %p260, %p261
      %p264 = scmp.ne.s32.totalorder %s249, %s263
      %p265 = scmp.eq.s32.totalorder %s29, 0
      %p266 = por %p264, %p265
      %s268 = sadd.s32 %s267, 1
      %p271 = scmp.eq.s32.totalorder %s23, 1
      %p272 = scmp.ne.s32.totalorder %s267, %s269
      %p273 = scmp.eq.s32.totalorder %s23, 0
      %p274 = por %p272, %p273
      %p275 = scmp.ne.s32.totalorder %s267, %s269
      %p276 = scmp.eq.s32.totalorder %s28, 1
      %p277 = por %p275, %p276
      %p278 = scmp.ne.s32.totalorder %s269, %s270
      %p279 = scmp.eq.s32.totalorder %s28, 0
      %p280 = por %p278, %p279
      %p281 = scmp.ne.s32.totalorder %s269, %s270
      %p282 = scmp.eq.s32.totalorder %s29, 1
      %p283 = por %p281, %p282
      %p285 = scmp.ne.s32.totalorder %s270, %s284
      %p286 = scmp.eq.s32.totalorder %s29, 0
      %p287 = por %p285, %p286
      %s289 = sadd.s32 %s288, 1
      %p292 = scmp.eq.s32.totalorder %s23, 1
      %p293 = scmp.ne.s32.totalorder %s288, %s290
      %p294 = scmp.eq.s32.totalorder %s23, 0
      %p295 = por %p293, %p294
      %p296 = scmp.ne.s32.totalorder %s288, %s290
      %p297 = scmp.eq.s32.totalorder %s28, 1
      %p298 = por %p296, %p297
      %p299 = scmp.ne.s32.totalorder %s290, %s291
      %p300 = scmp.eq.s32.totalorder %s28, 0
      %p301 = por %p299, %p300
      %p302 = scmp.ne.s32.totalorder %s290, %s291
      %p303 = scmp.eq.s32.totalorder %s29, 1
      %p304 = por %p302, %p303
      %p306 = scmp.ne.s32.totalorder %s291, %s305
      %p307 = scmp.eq.s32.totalorder %s29, 0
      %p308 = por %p306, %p307
      %s310 = sadd.s32 %s309, 1
      %p313 = scmp.eq.s32.totalorder %s23, 1
      %p314 = scmp.ne.s32.totalorder %s309, %s311
      %p315 = scmp.eq.s32.totalorder %s23, 0
      %p316 = por %p314, %p315
      %p317 = scmp.ne.s32.totalorder %s309, %s311
      %p318 = scmp.eq.s32.totalorder %s28, 1
      %p319 = por %p317, %p318
      %p320 = scmp.ne.s32.totalorder %s311, %s312
      %p321 = scmp.eq.s32.totalorder %s28, 0
      %p322 = por %p320, %p321
      %p323 = scmp.ne.s32.totalorder %s311, %s312
      %p324 = scmp.eq.s32.totalorder %s29, 1
      %p325 = por %p323, %p324
      %p327 = scmp.ne.s32.totalorder %s312, %s326
      %p328 = scmp.eq.s32.totalorder %s29, 0
      %p329 = por %p327, %p328
      %s330 = ssub.s32 %s23, %s30
      %p331 = scmp.eq.s32.totalorder %s330, 0
      %s333 = sadd.s32 %s332, 1
      %s334 = scalar_select %p331, %s332, %s333
      %p337 = pneg %p331
      %p338 = scmp.eq.s32.totalorder %s23, 1
      %p339 = por %p337, %p338
      %p340 = scmp.ne.s32.totalorder %s332, %s335
      %p341 = scmp.eq.s32.totalorder %s23, 0
      %p342 = por %p340, %p341
      %p343 = scmp.ne.s32.totalorder %s332, %s335
      %p344 = scmp.eq.s32.totalorder %s28, 1
      %p345 = por %p343, %p344
      %p346 = scmp.ne.s32.totalorder %s335, %s336
      %p347 = scmp.eq.s32.totalorder %s28, 0
      %p348 = por %p346, %p347
      %p349 = scmp.ne.s32.totalorder %s335, %s336
      %p350 = scmp.eq.s32.totalorder %s29, 1
      %p351 = por %p349, %p350
      %p353 = scmp.ne.s32.totalorder %s336, %s352
      %p354 = scmp.eq.s32.totalorder %s29, 0
      %p355 = por %p353, %p354
      %p356 = scmp.le.s32.totalorder 1, %s23
      %p357 = scmp.lt.s32.totalorder %s23, 3
      %p358 = pnand %p356, %p357
      %p359 = pneg %p358
      // Predicated region
      $region9: #{net_forward.1} parent=5 // pred_check
        _
      $region10: #{net_forward.1} parent=5 // pred_check_branch
        %361 = sbr.rel (%p358) target = $region12
      $region11: #{net_forward.1} parent=5 // pred_region
        %s362 = ssub.s32 %s23, 1
        // Predicated region
        $region13: #{net_forward.1} parent=11 // pred_check
          %p363 = pneg %p70
        $region14: #{net_forward.1} parent=11 // pred_check_branch
          %365 = sbr.rel (%p363) target = $region16
        $region15: #{net_forward.1} parent=11 // pred_region
          _
        $region16: #{net_forward.1} parent=11 // pred_fallthru
          _
        // Predicated region
        $region17: #{net_forward.1} parent=11 // pred_check
          %p366 = pneg %p91
        $region18: #{net_forward.1} parent=11 // pred_check_branch
          %368 = sbr.rel (%p366) target = $region20
        $region19: #{net_forward.1} parent=11 // pred_region
          _
        $region20: #{net_forward.1} parent=11 // pred_fallthru
          _
        // Predicated region
        $region21: #{net_forward.1} parent=11 // pred_check
          %p369 = pneg %p112
        $region22: #{net_forward.1} parent=11 // pred_check_branch
          %371 = sbr.rel (%p369) target = $region24
        $region23: #{net_forward.1} parent=11 // pred_region
          _
        $region24: #{net_forward.1} parent=11 // pred_fallthru
          _
        // Predicated region
        $region25: #{net_forward.1} parent=11 // pred_check
          %p372 = pneg %p133
        $region26: #{net_forward.1} parent=11 // pred_check_branch
          %374 = sbr.rel (%p372) target = $region28
        $region27: #{net_forward.1} parent=11 // pred_region
          _
        $region28: #{net_forward.1} parent=11 // pred_fallthru
          _
        // Predicated region
        $region29: #{net_forward.1} parent=11 // pred_check
          %p375 = pneg %p154
        $region30: #{net_forward.1} parent=11 // pred_check_branch
          %377 = sbr.rel (%p375) target = $region32
        $region31: #{net_forward.1} parent=11 // pred_region
          _
        $region32: #{net_forward.1} parent=11 // pred_fallthru
          _
        // Predicated region
        $region33: #{net_forward.1} parent=11 // pred_check
          %p378 = pneg %p175
        $region34: #{net_forward.1} parent=11 // pred_check_branch
          %380 = sbr.rel (%p378) target = $region36
        $region35: #{net_forward.1} parent=11 // pred_region
          _
        $region36: #{net_forward.1} parent=11 // pred_fallthru
          _
        // Predicated region
        $region37: #{net_forward.1} parent=11 // pred_check
          %p381 = pneg %p196
        $region38: #{net_forward.1} parent=11 // pred_check_branch
          %383 = sbr.rel (%p381) target = $region40
        $region39: #{net_forward.1} parent=11 // pred_region
          _
        $region40: #{net_forward.1} parent=11 // pred_fallthru
          _
        // Predicated region
        $region41: #{net_forward.1} parent=11 // pred_check
          %p384 = pneg %p217
        $region42: #{net_forward.1} parent=11 // pred_check_branch
          %386 = sbr.rel (%p384) target = $region44
        $region43: #{net_forward.1} parent=11 // pred_region
          _
        $region44: #{net_forward.1} parent=11 // pred_fallthru
          _
        // Predicated region
        $region45: #{net_forward.1} parent=11 // pred_check
          %p387 = pneg %p238
        $region46: #{net_forward.1} parent=11 // pred_check_branch
          %389 = sbr.rel (%p387) target = $region48
        $region47: #{net_forward.1} parent=11 // pred_region
          _
        $region48: #{net_forward.1} parent=11 // pred_fallthru
          _
        // Predicated region
        $region49: #{net_forward.1} parent=11 // pred_check
          %p390 = pneg %p259
        $region50: #{net_forward.1} parent=11 // pred_check_branch
          %392 = sbr.rel (%p390) target = $region52
        $region51: #{net_forward.1} parent=11 // pred_region
          _
        $region52: #{net_forward.1} parent=11 // pred_fallthru
          _
        // Predicated region
        $region53: #{net_forward.1} parent=11 // pred_check
          %p393 = pneg %p280
        $region54: #{net_forward.1} parent=11 // pred_check_branch
          %395 = sbr.rel (%p393) target = $region56
        $region55: #{net_forward.1} parent=11 // pred_region
          _
        $region56: #{net_forward.1} parent=11 // pred_fallthru
          _
        // Predicated region
        $region57: #{net_forward.1} parent=11 // pred_check
          %p396 = pneg %p301
        $region58: #{net_forward.1} parent=11 // pred_check_branch
          %398 = sbr.rel (%p396) target = $region60
        $region59: #{net_forward.1} parent=11 // pred_region
          _
        $region60: #{net_forward.1} parent=11 // pred_fallthru
          _
        // Predicated region
        $region61: #{net_forward.1} parent=11 // pred_check
          %p399 = pneg %p322
        $region62: #{net_forward.1} parent=11 // pred_check_branch
          %401 = sbr.rel (%p399) target = $region64
        $region63: #{net_forward.1} parent=11 // pred_region
          _
        $region64: #{net_forward.1} parent=11 // pred_fallthru
          _
      $region12: #{net_forward.1} parent=5 // pred_fallthru
        _
      %p402 = scmp.lt.s32.totalorder %s23, 2
      // Predicated region
      $region65: #{net_forward.1} parent=5 // pred_check
        %p403 = pneg %p402
      $region66: #{net_forward.1} parent=5 // pred_check_branch
        %405 = sbr.rel (%p403) target = $region68
      $region67: #{net_forward.1} parent=5 // pred_region
        // Predicated region
        $region69: #{net_forward.1} parent=67 // pred_check
          %p406 = pneg %p43
        $region70: #{net_forward.1} parent=67 // pred_check_branch
          %408 = sbr.rel (%p406) target = $region72
        $region71: #{net_forward.1} parent=67 // pred_region
          %p409 = scmp.lt.s32.totalorder %s23, 1
          %s410 = scalar_select %p409, %s23, 1
          %s411 = smul.addr %s410, 3
          %s412 = smul.addr %s411, 8
          %s413 = scalar_lea.vmem %s0, %s412
        $region72: #{net_forward.1} parent=67 // pred_fallthru
          _
      $region68: #{net_forward.1} parent=5 // pred_fallthru
        _
      %p414 = scmp.le.s32.totalorder 1, %s23
      %p415 = scmp.lt.s32.totalorder %s23, 3
      %p416 = pnand %p414, %p415
      %p417 = pneg %p416
      // Predicated region
      $region73: #{net_forward.1} parent=5 // pred_check
        _
      $region74: #{net_forward.1} parent=5 // pred_check_branch
        %419 = sbr.rel (%p416) target = $region76
      $region75: #{net_forward.1} parent=5 // pred_region
        %s420 = ssub.s32 %s23, 1
        %p421 = scmp.lt.s32.totalorder %s28, 1
        %s422 = scalar_select %p421, %s28, 1
        %s423 = smul.addr %s422, 3
        %s424 = smul.addr %s423, 8
        %s425 = scalar_lea.vmem %s0, %s424
        %p426 = pneg %p49
        %p427 = pneg %p46
        %p428 = pneg %p70
        %p429 = pneg %p67
        %p430 = pneg %p91
        %p431 = pneg %p88
        %p432 = pneg %p112
        %p433 = pneg %p109
        %p434 = pneg %p133
        %p435 = pneg %p130
        %p436 = pneg %p154
        %p437 = pneg %p151
        %p438 = pneg %p175
        %p439 = pneg %p172
        %p440 = pneg %p196
        %p441 = pneg %p193
        %p442 = pneg %p217
        %p443 = pneg %p214
        %p444 = pneg %p238
        %p445 = pneg %p235
        %p446 = pneg %p259
        %p447 = pneg %p256
        %p448 = pneg %p280
        %p449 = pneg %p277
        %p450 = pneg %p301
        %p451 = pneg %p298
        %p452 = pneg %p322
        %p453 = pneg %p319
        %p454 = pneg %p348
        %p455 = pneg %p345
        %s456 = sand.u32 %s335, 1
        %s457 = scalar_lea.sflag [#allocation3], %s456
        %s458 = sand.u32 %s335, 1
        %s459 = scalar_lea.vmem [#allocation2], %s458
        %p460 = scmp.lt.s32.totalorder %s28, 1
        %s461 = scalar_select %p460, %s28, 1
        %s462 = smul.addr %s461, 3
        %s463 = smul.addr %s462, 8
        %s464 = scalar_lea.vmem %s0, %s463
        %v465 = vld [vmem:[%s464] sm:$0xff]
        %v466 = vld [vmem:[%s464 + $0x8] sm:$0xff]
        %v467 = vld [vmem:[%s464 + $0x10] sm:$0xff]
        %v468 = vld [vmem:[%s1] sm:$0xff]
        %v469 = vld [vmem:[%s1 + $0x8] sm:$0xff]
        %v470 = vld [vmem:[%s1 + $0x10] sm:$0x3f]
        %vm471 = vcmask 195584
        %v473 = vsel %vm471, %v468, 0
        %v476 = vsel %vm471, %v469, 0
        %v479 = vsel %vm471, %v470, 0
        %481 = vmatprep.subr.mxu0 0.0
        %482 = vmatpush1.msra.mxu0 0.0
        %483 = vmatprep.subr.mxu0 0.0
        %484 = vmatpush1.msra.mxu0 0.0
        %485 = vmatprep.subr.mxu0 0.0
        %486 = vmatpush1.msra.mxu0 0.0
        %487 = vmatprep.subr.mxu0 0.0
        %488 = vmatpush1.msra.mxu0 0.0
        %489 = vmatprep.subr.mxu0 0.0
        %490 = vmatpush1.msra.mxu0 0.0
        %491 = vmatprep.subr.mxu0 0.0
        %492 = vmatpush1.msra.mxu0 0.0
        %493 = vmatprep.subr.mxu0 0.0
        %494 = vmatpush1.msra.mxu0 0.0
        %495 = vmatprep.subr.mxu0 0.0
        %496 = vmatpush1.msra.mxu0 0.0
        %497 = vmatprep.subr.mxu0 0.0
        %498 = vmatpush1.msra.mxu0 0.0
        %499 = vmatprep.subr.mxu0 0.0
        %500 = vmatpush1.msra.mxu0 0.0
        %501 = vmatprep.subr.mxu0 0.0
        %502 = vmatpush1.msra.mxu0 0.0
        %503 = vmatprep.subr.mxu0 0.0
        %504 = vmatpush1.msra.mxu0 0.0
        %505 = vmatprep.subr.mxu0 0.0
        %506 = vmatpush1.msra.mxu0 0.0
        %507 = vmatprep.subr.mxu0 0.0
        %508 = vmatpush1.msra.mxu0 %v467
        %509 = vmatprep.subr.mxu0 0.0
        %510 = vmatpush1.msra.mxu0 %v466
        %511 = vmatprep.subr.mxu0 0.0
        %512 = vmatpush1.msra.mxu0 %v465
        %513 = vmatprep.subr.mxu0 0.0
        %514 = vmatpush2.msra.mxu0 0.0
        %515 = vmatprep.subr.mxu0 0.0
        %516 = vmatpush2.msra.mxu0 0.0
        %517 = vmatprep.subr.mxu0 0.0
        %518 = vmatpush2.msra.mxu0 0.0
        %519 = vmatprep.subr.mxu0 0.0
        %520 = vmatpush2.msra.mxu0 0.0
        %521 = vmatprep.subr.mxu0 0.0
        %522 = vmatpush2.msra.mxu0 0.0
        %523 = vmatprep.subr.mxu0 0.0
        %524 = vmatpush2.msra.mxu0 0.0
        %525 = vmatprep.subr.mxu0 0.0
        %526 = vmatpush2.msra.mxu0 0.0
        %527 = vmatprep.subr.mxu0 0.0
        %528 = vmatpush2.msra.mxu0 0.0
        %529 = vmatprep.subr.mxu0 0.0
        %530 = vmatpush2.msra.mxu0 0.0
        %531 = vmatprep.subr.mxu0 0.0
        %532 = vmatpush2.msra.mxu0 0.0
        %533 = vmatprep.subr.mxu0 0.0
        %534 = vmatpush2.msra.mxu0 0.0
        %535 = vmatprep.subr.mxu0 0.0
        %536 = vmatpush2.msra.mxu0 0.0
        %537 = vmatprep.subr.mxu0 0.0
        %538 = vmatpush2.msra.mxu0 0.0
        %539 = vmatprep.subr.mxu0 0.0
        %540 = vmatpush2.msra.mxu0 0.0
        %541 = vmatprep.subr.mxu0 0.0
        %542 = vmatpush2.msra.mxu0 0.0
        %543 = vmatprep.subr.mxu0 0.0
        %544 = vmatpush2.msra.mxu0 0.0
        %545 = vmatprep.mubr.f32.mxu0 0.0
        %546 = vmatmul.mubr.f32.gmra.mxu0 %v473
        %v547 = vpop.f32.mrf.mxu0
        %v548 = vadd.f32 0.0, %v547
        %v549 = vpop.f32.mrf.mxu0
        %550 = vmatprep.mubr.f32.mxu0 0.0
        %551 = vmatmul.mubr.f32.gmra.mxu0 %v476
        %v552 = vpop.f32.mrf.mxu0
        %v553 = vadd.f32 0.0, %v552
        %v554 = vpop.f32.mrf.mxu0
        %555 = vmatprep.mubr.f32.mxu0 0.0
        %556 = vmatmul.mubr.f32.gmra.mxu0 %v479
        %v557 = vpop.f32.mrf.mxu0
        %v558 = vadd.f32 0.0, %v557
        %v559 = vpop.f32.mrf.mxu0
        %560 = vdwg.mxu0
        %v561 = vld [vmem:[%s2] sm:$0xff]
        %v562 = vld [vmem:[%s2 + $0x8] sm:$0xff]
        %v563 = vld [vmem:[%s2 + $0x10] sm:$0xff]
        %v564 = vld [vmem:[%s2 + $0x18] sm:$0xff]
        %v565 = vld [vmem:[%s2 + $0x20] sm:$0xff]
        %v566 = vld [vmem:[%s2 + $0x28] sm:$0xff]
        %v567 = vld [vmem:[%s2 + $0x30] sm:$0xff]
        %v568 = vld [vmem:[%s2 + $0x38] sm:$0xff]
        %v569 = vld [vmem:[%s2 + $0x40] sm:$0xff]
        %v570 = vld [vmem:[%s2 + $0x48] sm:$0xff]
        %v571 = vld [vmem:[%s2 + $0x50] sm:$0xff]
        %v572 = vld [vmem:[%s2 + $0x58] sm:$0xff]
        %v573 = vld [vmem:[%s2 + $0x60] sm:$0xff]
        %v574 = vld [vmem:[%s2 + $0x68] sm:$0xff]
        %v575 = vld [vmem:[%s2 + $0x70] sm:$0xff]
        %v576 = vld [vmem:[%s2 + $0x78] sm:$0xff]
        %v577 = vld [vmem:[%s2 + $0x80] sm:$0xff]
        %v578 = vld [vmem:[%s2 + $0x88] sm:$0xff]
        %v579 = vld [vmem:[%s2 + $0x90] sm:$0xff]
        %v580 = vld [vmem:[%s2 + $0x98] sm:$0xff]
        %v581 = vld [vmem:[%s2 + $0xa0] sm:$0xff]
        %v582 = vld [vmem:[%s2 + $0xa8] sm:$0xff]
        %v583 = vld [vmem:[%s2 + $0xb0] sm:$0xff]
        %v584 = vld [vmem:[%s2 + $0xb8] sm:$0xff]
        %v585 = vld [vmem:[%s2 + $0xc0] sm:$0xff]
        %v586 = vld [vmem:[%s2 + $0xc8] sm:$0xff]
        %v587 = vld [vmem:[%s2 + $0xd0] sm:$0xff]
        %s588 = scalar_lea.vmem %s1, 24
        %v589 = vld [vmem:[%s588] sm:$0xff]
        %v590 = vld [vmem:[%s588 + $0x8] sm:$0xff]
        %v591 = vld [vmem:[%s588 + $0x10] sm:$0x3f]
        %v593 = vsel %vm471, %v589, 0
        %v596 = vsel %vm471, %v590, 0
        %v599 = vsel %vm471, %v591, 0
        %601 = vmatprep.subr.mxu0 0.0
        %602 = vmatpush1.msra.mxu0 0.0
        %603 = vmatprep.subr.mxu0 0.0
        %604 = vmatpush1.msra.mxu0 0.0
        %605 = vmatprep.subr.mxu0 0.0
        %606 = vmatpush1.msra.mxu0 0.0
        %607 = vmatprep.subr.mxu0 0.0
        %608 = vmatpush1.msra.mxu0 0.0
        %609 = vmatprep.subr.mxu0 0.0
        %610 = vmatpush1.msra.mxu0 0.0
        %611 = vmatprep.subr.mxu0 0.0
        %612 = vmatpush1.msra.mxu0 0.0
        %613 = vmatprep.subr.mxu0 0.0
        %614 = vmatpush1.msra.mxu0 0.0
        %615 = vmatprep.subr.mxu0 0.0
        %616 = vmatpush1.msra.mxu0 0.0
        %617 = vmatprep.subr.mxu0 0.0
        %618 = vmatpush1.msra.mxu0 0.0
        %619 = vmatprep.subr.mxu0 0.0
        %620 = vmatpush1.msra.mxu0 0.0
        %621 = vmatprep.subr.mxu0 0.0
        %622 = vmatpush1.msra.mxu0 0.0
        %623 = vmatprep.subr.mxu0 0.0
        %624 = vmatpush1.msra.mxu0 0.0
        %625 = vmatprep.subr.mxu0 0.0
        %626 = vmatpush1.msra.mxu0 0.0
        %627 = vmatprep.subr.mxu0 0.0
        %628 = vmatpush1.msra.mxu0 %v467
        %629 = vmatprep.subr.mxu0 0.0
        %630 = vmatpush1.msra.mxu0 %v466
        %631 = vmatprep.subr.mxu0 0.0
        %632 = vmatpush1.msra.mxu0 %v465
        %633 = vmatprep.subr.mxu0 0.0
        %634 = vmatpush2.msra.mxu0 0.0
        %635 = vmatprep.subr.mxu0 0.0
        %636 = vmatpush2.msra.mxu0 0.0
        %637 = vmatprep.subr.mxu0 0.0
        %638 = vmatpush2.msra.mxu0 0.0
        %639 = vmatprep.subr.mxu0 0.0
        %640 = vmatpush2.msra.mxu0 0.0
        %641 = vmatprep.subr.mxu0 0.0
        %642 = vmatpush2.msra.mxu0 0.0
        %643 = vmatprep.subr.mxu0 0.0
        %644 = vmatpush2.msra.mxu0 0.0
        %645 = vmatprep.subr.mxu0 0.0
        %646 = vmatpush2.msra.mxu0 0.0
        %647 = vmatprep.subr.mxu0 0.0
        %648 = vmatpush2.msra.mxu0 0.0
        %649 = vmatprep.subr.mxu0 0.0
        %650 = vmatpush2.msra.mxu0 0.0
        %651 = vmatprep.subr.mxu0 0.0
        %652 = vmatpush2.msra.mxu0 0.0
        %653 = vmatprep.subr.mxu0 0.0
        %654 = vmatpush2.msra.mxu0 0.0
        %655 = vmatprep.subr.mxu0 0.0
        %656 = vmatpush2.msra.mxu0 0.0
        %657 = vmatprep.subr.mxu0 0.0
        %658 = vmatpush2.msra.mxu0 0.0
        %659 = vmatprep.subr.mxu0 0.0
        %660 = vmatpush2.msra.mxu0 0.0
        %661 = vmatprep.subr.mxu0 0.0
        %662 = vmatpush2.msra.mxu0 0.0
        %663 = vmatprep.subr.mxu0 0.0
        %664 = vmatpush2.msra.mxu0 0.0
        %665 = vmatprep.mubr.f32.mxu0 0.0
        %666 = vmatmul.mubr.f32.gmra.mxu0 %v593
        %v667 = vpop.f32.mrf.mxu0
        %v668 = vadd.f32 0.0, %v667
        %v669 = vpop.f32.mrf.mxu0
        %670 = vmatprep.mubr.f32.mxu0 0.0
        %671 = vmatmul.mubr.f32.gmra.mxu0 %v596
        %v672 = vpop.f32.mrf.mxu0
        %v673 = vadd.f32 0.0, %v672
        %v674 = vpop.f32.mrf.mxu0
        %675 = vmatprep.mubr.f32.mxu0 0.0
        %676 = vmatmul.mubr.f32.gmra.mxu0 %v599
        %v677 = vpop.f32.mrf.mxu0
        %v678 = vadd.f32 0.0, %v677
        %v679 = vpop.f32.mrf.mxu0
        %680 = vdwg.mxu0
        %s681 = scalar_lea.vmem %s2, 216
        %v682 = vld [vmem:[%s681] sm:$0xff]
        %v683 = vld [vmem:[%s681 + $0x8] sm:$0xff]
        %v684 = vld [vmem:[%s681 + $0x10] sm:$0xff]
        %v685 = vld [vmem:[%s681 + $0x18] sm:$0xff]
        %v686 = vld [vmem:[%s681 + $0x20] sm:$0xff]
        %v687 = vld [vmem:[%s681 + $0x28] sm:$0xff]
        %v688 = vld [vmem:[%s681 + $0x30] sm:$0xff]
        %v689 = vld [vmem:[%s681 + $0x38] sm:$0xff]
        %v690 = vld [vmem:[%s681 + $0x40] sm:$0xff]
        %v691 = vld [vmem:[%s681 + $0x48] sm:$0xff]
        %v692 = vld [vmem:[%s681 + $0x50] sm:$0xff]
        %v693 = vld [vmem:[%s681 + $0x58] sm:$0xff]
        %v694 = vld [vmem:[%s681 + $0x60] sm:$0xff]
        %v695 = vld [vmem:[%s681 + $0x68] sm:$0xff]
        %v696 = vld [vmem:[%s681 + $0x70] sm:$0xff]
        %v697 = vld [vmem:[%s681 + $0x78] sm:$0xff]
        %v698 = vld [vmem:[%s681 + $0x80] sm:$0xff]
        %v699 = vld [vmem:[%s681 + $0x88] sm:$0xff]
        %v700 = vld [vmem:[%s681 + $0x90] sm:$0xff]
        %v701 = vld [vmem:[%s681 + $0x98] sm:$0xff]
        %v702 = vld [vmem:[%s681 + $0xa0] sm:$0xff]
        %v703 = vld [vmem:[%s681 + $0xa8] sm:$0xff]
        %v704 = vld [vmem:[%s681 + $0xb0] sm:$0xff]
        %v705 = vld [vmem:[%s681 + $0xb8] sm:$0xff]
        %v706 = vld [vmem:[%s681 + $0xc0] sm:$0xff]
        %v707 = vld [vmem:[%s681 + $0xc8] sm:$0xff]
        %v708 = vld [vmem:[%s681 + $0xd0] sm:$0xff]
        %vm709 = vcmask 588800
        %v711 = vsel %vm709, %v668, 0
        %v714 = vsel %vm709, %v673, 0
        %v717 = vsel %vm709, %v678, 0
        %719 = vmatprep.subr.mxu0 0.0
        %720 = vmatpush1.msra.mxu0 0.0
        %721 = vmatprep.subr.mxu0 0.0
        %722 = vmatpush1.msra.mxu0 0.0
        %723 = vmatprep.subr.mxu0 0.0
        %724 = vmatpush1.msra.mxu0 0.0
        %725 = vmatprep.subr.mxu0 0.0
        %726 = vmatpush1.msra.mxu0 0.0
        %727 = vmatprep.subr.mxu0 0.0
        %728 = vmatpush1.msra.mxu0 0.0
        %729 = vmatprep.subr.mxu0 0.0
        %730 = vmatpush1.msra.mxu0 0.0
        %731 = vmatprep.subr.mxu0 0.0
        %732 = vmatpush1.msra.mxu0 0.0
        %733 = vmatprep.subr.mxu0 %v707
        %734 = vmatpush1.msra.mxu0 %v706
        %735 = vmatprep.subr.mxu0 %v704
        %736 = vmatpush1.msra.mxu0 %v703
        %737 = vmatprep.subr.mxu0 %v701
        %738 = vmatpush1.msra.mxu0 %v700
        %739 = vmatprep.subr.mxu0 %v698
        %740 = vmatpush1.msra.mxu0 %v697
        %741 = vmatprep.subr.mxu0 %v695
        %742 = vmatpush1.msra.mxu0 %v694
        %743 = vmatprep.subr.mxu0 %v692
        %744 = vmatpush1.msra.mxu0 %v691
        %745 = vmatprep.subr.mxu0 %v689
        %746 = vmatpush1.msra.mxu0 %v688
        %747 = vmatprep.subr.mxu0 %v686
        %748 = vmatpush1.msra.mxu0 %v685
        %749 = vmatprep.subr.mxu0 %v683
        %750 = vmatpush1.msra.mxu0 %v682
        %751 = vmatprep.subr.mxu0 0.0
        %752 = vmatpush2.msra.mxu0 0.0
        %753 = vmatprep.subr.mxu0 0.0
        %754 = vmatpush2.msra.mxu0 0.0
        %755 = vmatprep.subr.mxu0 0.0
        %756 = vmatpush2.msra.mxu0 0.0
        %757 = vmatprep.subr.mxu0 0.0
        %758 = vmatpush2.msra.mxu0 0.0
        %759 = vmatprep.subr.mxu0 0.0
        %760 = vmatpush2.msra.mxu0 0.0
        %761 = vmatprep.subr.mxu0 0.0
        %762 = vmatpush2.msra.mxu0 0.0
        %763 = vmatprep.subr.mxu0 0.0
        %764 = vmatpush2.msra.mxu0 0.0
        %765 = vmatprep.subr.mxu0 0.0
        %766 = vmatpush2.msra.mxu0 0.0
        %767 = vmatprep.subr.mxu0 0.0
        %768 = vmatpush2.msra.mxu0 0.0
        %769 = vmatprep.subr.mxu0 0.0
        %770 = vmatpush2.msra.mxu0 0.0
        %771 = vmatprep.subr.mxu0 0.0
        %772 = vmatpush2.msra.mxu0 0.0
        %773 = vmatprep.subr.mxu0 0.0
        %774 = vmatpush2.msra.mxu0 0.0
        %775 = vmatprep.subr.mxu0 0.0
        %776 = vmatpush2.msra.mxu0 0.0
        %777 = vmatprep.subr.mxu0 0.0
        %778 = vmatpush2.msra.mxu0 0.0
        %779 = vmatprep.subr.mxu0 0.0
        %780 = vmatpush2.msra.mxu0 0.0
        %781 = vmatprep.subr.mxu0 0.0
        %782 = vmatpush2.msra.mxu0 0.0
        %783 = vmatprep.mubr.f32.mxu0 0.0
        %784 = vmatmul.mubr.f32.gmra.mxu0 %v711
        %v785 = vpop.f32.mrf.mxu0
        %v786 = vadd.f32 0.0, %v785
        %v787 = vpop.f32.mrf.mxu0
        %v788 = vadd.f32 0.0, %v787
        %789 = vmatprep.mubr.f32.mxu0 0.0
        %790 = vmatmul.mubr.f32.gmra.mxu0 %v714
        %v791 = vpop.f32.mrf.mxu0
        %v792 = vadd.f32 0.0, %v791
        %v793 = vpop.f32.mrf.mxu0
        %v794 = vadd.f32 0.0, %v793
        %795 = vmatprep.mubr.f32.mxu0 0.0
        %796 = vmatmul.mubr.f32.gmra.mxu0 %v717
        %v797 = vpop.f32.mrf.mxu0
        %v798 = vadd.f32 0.0, %v797
        %v799 = vpop.f32.mrf.mxu0
        %v800 = vadd.f32 0.0, %v799
        %801 = vdwg.mxu0
        %802 = vmatprep.subr.mxu0 0.0
        %803 = vmatpush1.msra.mxu0 0.0
        %804 = vmatprep.subr.mxu0 0.0
        %805 = vmatpush1.msra.mxu0 0.0
        %806 = vmatprep.subr.mxu0 0.0
        %807 = vmatpush1.msra.mxu0 0.0
        %808 = vmatprep.subr.mxu0 0.0
        %809 = vmatpush1.msra.mxu0 0.0
        %810 = vmatprep.subr.mxu0 0.0
        %811 = vmatpush1.msra.mxu0 0.0
        %812 = vmatprep.subr.mxu0 0.0
        %813 = vmatpush1.msra.mxu0 0.0
        %814 = vmatprep.subr.mxu0 0.0
        %815 = vmatpush1.msra.mxu0 0.0
        %816 = vmatprep.subr.mxu0 0.0
        %817 = vmatpush1.msra.mxu0 %v708
        %818 = vmatprep.subr.mxu0 0.0
        %819 = vmatpush1.msra.mxu0 %v705
        %820 = vmatprep.subr.mxu0 0.0
        %821 = vmatpush1.msra.mxu0 %v702
        %822 = vmatprep.subr.mxu0 0.0
        %823 = vmatpush1.msra.mxu0 %v699
        %824 = vmatprep.subr.mxu0 0.0
        %825 = vmatpush1.msra.mxu0 %v696
        %826 = vmatprep.subr.mxu0 0.0
        %827 = vmatpush1.msra.mxu0 %v693
        %828 = vmatprep.subr.mxu0 0.0
        %829 = vmatpush1.msra.mxu0 %v690
        %830 = vmatprep.subr.mxu0 0.0
        %831 = vmatpush1.msra.mxu0 %v687
        %832 = vmatprep.subr.mxu0 0.0
        %833 = vmatpush1.msra.mxu0 %v684
        %834 = vmatprep.subr.mxu0 0.0
        %835 = vmatpush2.msra.mxu0 0.0
        %836 = vmatprep.subr.mxu0 0.0
        %837 = vmatpush2.msra.mxu0 0.0
        %838 = vmatprep.subr.mxu0 0.0
        %839 = vmatpush2.msra.mxu0 0.0
        %840 = vmatprep.subr.mxu0 0.0
        %841 = vmatpush2.msra.mxu0 0.0
        %842 = vmatprep.subr.mxu0 0.0
        %843 = vmatpush2.msra.mxu0 0.0
        %844 = vmatprep.subr.mxu0 0.0
        %845 = vmatpush2.msra.mxu0 0.0
        %846 = vmatprep.subr.mxu0 0.0
        %847 = vmatpush2.msra.mxu0 0.0
        %848 = vmatprep.subr.mxu0 0.0
        %849 = vmatpush2.msra.mxu0 0.0
        %850 = vmatprep.subr.mxu0 0.0
        %851 = vmatpush2.msra.mxu0 0.0
        %852 = vmatprep.subr.mxu0 0.0
        %853 = vmatpush2.msra.mxu0 0.0
        %854 = vmatprep.subr.mxu0 0.0
        %855 = vmatpush2.msra.mxu0 0.0
        %856 = vmatprep.subr.mxu0 0.0
        %857 = vmatpush2.msra.mxu0 0.0
        %858 = vmatprep.subr.mxu0 0.0
        %859 = vmatpush2.msra.mxu0 0.0
        %860 = vmatprep.subr.mxu0 0.0
        %861 = vmatpush2.msra.mxu0 0.0
        %862 = vmatprep.subr.mxu0 0.0
        %863 = vmatpush2.msra.mxu0 0.0
        %864 = vmatprep.subr.mxu0 0.0
        %865 = vmatpush2.msra.mxu0 0.0
        %866 = vmatprep.mubr.f32.mxu0 0.0
        %867 = vmatmul.mubr.f32.gmra.mxu0 %v711
        %v868 = vpop.f32.mrf.mxu0
        %v869 = vadd.f32 0.0, %v868
        %v870 = vpop.f32.mrf.mxu0
        %871 = vmatprep.mubr.f32.mxu0 0.0
        %872 = vmatmul.mubr.f32.gmra.mxu0 %v714
        %v873 = vpop.f32.mrf.mxu0
        %v874 = vadd.f32 0.0, %v873
        %v875 = vpop.f32.mrf.mxu0
        %876 = vmatprep.mubr.f32.mxu0 0.0
        %877 = vmatmul.mubr.f32.gmra.mxu0 %v717
        %v878 = vpop.f32.mrf.mxu0
        %v879 = vadd.f32 0.0, %v878
        %v880 = vpop.f32.mrf.mxu0
        %881 = vdwg.mxu0
        %v883 = vsel %vm709, %v548, 0
        %v886 = vsel %vm709, %v553, 0
        %v889 = vsel %vm709, %v558, 0
        %891 = vmatprep.subr.mxu0 0.0
        %892 = vmatpush1.msra.mxu0 0.0
        %893 = vmatprep.subr.mxu0 0.0
        %894 = vmatpush1.msra.mxu0 0.0
        %895 = vmatprep.subr.mxu0 0.0
        %896 = vmatpush1.msra.mxu0 0.0
        %897 = vmatprep.subr.mxu0 0.0
        %898 = vmatpush1.msra.mxu0 0.0
        %899 = vmatprep.subr.mxu0 0.0
        %900 = vmatpush1.msra.mxu0 0.0
        %901 = vmatprep.subr.mxu0 0.0
        %902 = vmatpush1.msra.mxu0 0.0
        %903 = vmatprep.subr.mxu0 0.0
        %904 = vmatpush1.msra.mxu0 0.0
        %905 = vmatprep.subr.mxu0 %v586
        %906 = vmatpush1.msra.mxu0 %v585
        %907 = vmatprep.subr.mxu0 %v583
        %908 = vmatpush1.msra.mxu0 %v582
        %909 = vmatprep.subr.mxu0 %v580
        %910 = vmatpush1.msra.mxu0 %v579
        %911 = vmatprep.subr.mxu0 %v577
        %912 = vmatpush1.msra.mxu0 %v576
        %913 = vmatprep.subr.mxu0 %v574
        %914 = vmatpush1.msra.mxu0 %v573
        %915 = vmatprep.subr.mxu0 %v571
        %916 = vmatpush1.msra.mxu0 %v570
        %917 = vmatprep.subr.mxu0 %v568
        %918 = vmatpush1.msra.mxu0 %v567
        %919 = vmatprep.subr.mxu0 %v565
        %920 = vmatpush1.msra.mxu0 %v564
        %921 = vmatprep.subr.mxu0 %v562
        %922 = vmatpush1.msra.mxu0 %v561
        %923 = vmatprep.subr.mxu0 0.0
        %924 = vmatpush2.msra.mxu0 0.0
        %925 = vmatprep.subr.mxu0 0.0
        %926 = vmatpush2.msra.mxu0 0.0
        %927 = vmatprep.subr.mxu0 0.0
        %928 = vmatpush2.msra.mxu0 0.0
        %929 = vmatprep.subr.mxu0 0.0
        %930 = vmatpush2.msra.mxu0 0.0
        %931 = vmatprep.subr.mxu0 0.0
        %932 = vmatpush2.msra.mxu0 0.0
        %933 = vmatprep.subr.mxu0 0.0
        %934 = vmatpush2.msra.mxu0 0.0
        %935 = vmatprep.subr.mxu0 0.0
        %936 = vmatpush2.msra.mxu0 0.0
        %937 = vmatprep.subr.mxu0 0.0
        %938 = vmatpush2.msra.mxu0 0.0
        %939 = vmatprep.subr.mxu0 0.0
        %940 = vmatpush2.msra.mxu0 0.0
        %941 = vmatprep.subr.mxu0 0.0
        %942 = vmatpush2.msra.mxu0 0.0
        %943 = vmatprep.subr.mxu0 0.0
        %944 = vmatpush2.msra.mxu0 0.0
        %945 = vmatprep.subr.mxu0 0.0
        %946 = vmatpush2.msra.mxu0 0.0
        %947 = vmatprep.subr.mxu0 0.0
        %948 = vmatpush2.msra.mxu0 0.0
        %949 = vmatprep.subr.mxu0 0.0
        %950 = vmatpush2.msra.mxu0 0.0
        %951 = vmatprep.subr.mxu0 0.0
        %952 = vmatpush2.msra.mxu0 0.0
        %953 = vmatprep.subr.mxu0 0.0
        %954 = vmatpush2.msra.mxu0 0.0
        %955 = vmatprep.mubr.f32.mxu0 0.0
        %956 = vmatmul.mubr.f32.gmra.mxu0 %v883
        %v957 = vpop.f32.mrf.mxu0
        %v958 = vadd.f32 %v786, %v957
        %v959 = vpop.f32.mrf.mxu0
        %v960 = vadd.f32 %v788, %v959
        %961 = vmatprep.mubr.f32.mxu0 0.0
        %962 = vmatmul.mubr.f32.gmra.mxu0 %v886
        %v963 = vpop.f32.mrf.mxu0
        %v964 = vadd.f32 %v792, %v963
        %v965 = vpop.f32.mrf.mxu0
        %v966 = vadd.f32 %v794, %v965
        %967 = vmatprep.mubr.f32.mxu0 0.0
        %968 = vmatmul.mubr.f32.gmra.mxu0 %v889
        %v969 = vpop.f32.mrf.mxu0
        %v970 = vadd.f32 %v798, %v969
        %v971 = vpop.f32.mrf.mxu0
        %v972 = vadd.f32 %v800, %v971
        %973 = vdwg.mxu0
        %974 = vmatprep.subr.mxu0 0.0
        %975 = vmatpush1.msra.mxu0 0.0
        %976 = vmatprep.subr.mxu0 0.0
        %977 = vmatpush1.msra.mxu0 0.0
        %978 = vmatprep.subr.mxu0 0.0
        %979 = vmatpush1.msra.mxu0 0.0
        %980 = vmatprep.subr.mxu0 0.0
        %981 = vmatpush1.msra.mxu0 0.0
        %982 = vmatprep.subr.mxu0 0.0
        %983 = vmatpush1.msra.mxu0 0.0
        %984 = vmatprep.subr.mxu0 0.0
        %985 = vmatpush1.msra.mxu0 0.0
        %986 = vmatprep.subr.mxu0 0.0
        %987 = vmatpush1.msra.mxu0 0.0
        %988 = vmatprep.subr.mxu0 0.0
        %989 = vmatpush1.msra.mxu0 %v587
        %990 = vmatprep.subr.mxu0 0.0
        %991 = vmatpush1.msra.mxu0 %v584
        %992 = vmatprep.subr.mxu0 0.0
        %993 = vmatpush1.msra.mxu0 %v581
        %994 = vmatprep.subr.mxu0 0.0
        %995 = vmatpush1.msra.mxu0 %v578
        %996 = vmatprep.subr.mxu0 0.0
        %997 = vmatpush1.msra.mxu0 %v575
        %998 = vmatprep.subr.mxu0 0.0
        %999 = vmatpush1.msra.mxu0 %v572
        %1000 = vmatprep.subr.mxu0 0.0
        %1001 = vmatpush1.msra.mxu0 %v569
        %1002 = vmatprep.subr.mxu0 0.0
        %1003 = vmatpush1.msra.mxu0 %v566
        %1004 = vmatprep.subr.mxu0 0.0
        %1005 = vmatpush1.msra.mxu0 %v563
        %1006 = vmatprep.subr.mxu0 0.0
        %1007 = vmatpush2.msra.mxu0 0.0
        %1008 = vmatprep.subr.mxu0 0.0
        %1009 = vmatpush2.msra.mxu0 0.0
        %1010 = vmatprep.subr.mxu0 0.0
        %1011 = vmatpush2.msra.mxu0 0.0
        %1012 = vmatprep.subr.mxu0 0.0
        %1013 = vmatpush2.msra.mxu0 0.0
        %1014 = vmatprep.subr.mxu0 0.0
        %1015 = vmatpush2.msra.mxu0 0.0
        %1016 = vmatprep.subr.mxu0 0.0
        %1017 = vmatpush2.msra.mxu0 0.0
        %1018 = vmatprep.subr.mxu0 0.0
        %1019 = vmatpush2.msra.mxu0 0.0
        %1020 = vmatprep.subr.mxu0 0.0
        %1021 = vmatpush2.msra.mxu0 0.0
        %1022 = vmatprep.subr.mxu0 0.0
        %1023 = vmatpush2.msra.mxu0 0.0
        %1024 = vmatprep.subr.mxu0 0.0
        %1025 = vmatpush2.msra.mxu0 0.0
        %1026 = vmatprep.subr.mxu0 0.0
        %1027 = vmatpush2.msra.mxu0 0.0
        %1028 = vmatprep.subr.mxu0 0.0
        %1029 = vmatpush2.msra.mxu0 0.0
        %1030 = vmatprep.subr.mxu0 0.0
        %1031 = vmatpush2.msra.mxu0 0.0
        %1032 = vmatprep.subr.mxu0 0.0
        %1033 = vmatpush2.msra.mxu0 0.0
        %1034 = vmatprep.subr.mxu0 0.0
        %1035 = vmatpush2.msra.mxu0 0.0
        %1036 = vmatprep.subr.mxu0 0.0
        %1037 = vmatpush2.msra.mxu0 0.0
        %1038 = vmatprep.mubr.f32.mxu0 0.0
        %1039 = vmatmul.mubr.f32.gmra.mxu0 %v883
        %v1040 = vpop.f32.mrf.mxu0
        %v1041 = vadd.f32 %v869, %v1040
        %v1042 = vpop.f32.mrf.mxu0
        %1043 = vmatprep.mubr.f32.mxu0 0.0
        %1044 = vmatmul.mubr.f32.gmra.mxu0 %v886
        %v1045 = vpop.f32.mrf.mxu0
        %v1046 = vadd.f32 %v874, %v1045
        %v1047 = vpop.f32.mrf.mxu0
        %1048 = vmatprep.mubr.f32.mxu0 0.0
        %1049 = vmatmul.mubr.f32.gmra.mxu0 %v889
        %v1050 = vpop.f32.mrf.mxu0
        %v1051 = vadd.f32 %v879, %v1050
        %v1052 = vpop.f32.mrf.mxu0
        %1053 = vdwg.mxu0
        %s1054 = scalar_lea.vmem %s1, 48
        %v1055 = vld [vmem:[%s1054] sm:$0xff]
        %v1056 = vld [vmem:[%s1054 + $0x8] sm:$0xff]
        %v1057 = vld [vmem:[%s1054 + $0x10] sm:$0x3f]
        %v1059 = vsel %vm471, %v1055, 0
        %v1062 = vsel %vm471, %v1056, 0
        %v1065 = vsel %vm471, %v1057, 0
        %1067 = vmatprep.subr.mxu0 0.0
        %1068 = vmatpush1.msra.mxu0 0.0
        %1069 = vmatprep.subr.mxu0 0.0
        %1070 = vmatpush1.msra.mxu0 0.0
        %1071 = vmatprep.subr.mxu0 0.0
        %1072 = vmatpush1.msra.mxu0 0.0
        %1073 = vmatprep.subr.mxu0 0.0
        %1074 = vmatpush1.msra.mxu0 0.0
        %1075 = vmatprep.subr.mxu0 0.0
        %1076 = vmatpush1.msra.mxu0 0.0
        %1077 = vmatprep.subr.mxu0 0.0
        %1078 = vmatpush1.msra.mxu0 0.0
        %1079 = vmatprep.subr.mxu0 0.0
        %1080 = vmatpush1.msra.mxu0 0.0
        %1081 = vmatprep.subr.mxu0 0.0
        %1082 = vmatpush1.msra.mxu0 0.0
        %1083 = vmatprep.subr.mxu0 0.0
        %1084 = vmatpush1.msra.mxu0 0.0
        %1085 = vmatprep.subr.mxu0 0.0
        %1086 = vmatpush1.msra.mxu0 0.0
        %1087 = vmatprep.subr.mxu0 0.0
        %1088 = vmatpush1.msra.mxu0 0.0
        %1089 = vmatprep.subr.mxu0 0.0
        %1090 = vmatpush1.msra.mxu0 0.0
        %1091 = vmatprep.subr.mxu0 0.0
        %1092 = vmatpush1.msra.mxu0 0.0
        %1093 = vmatprep.subr.mxu0 0.0
        %1094 = vmatpush1.msra.mxu0 %v467
        %1095 = vmatprep.subr.mxu0 0.0
        %1096 = vmatpush1.msra.mxu0 %v466
        %1097 = vmatprep.subr.mxu0 0.0
        %1098 = vmatpush1.msra.mxu0 %v465
        %1099 = vmatprep.subr.mxu0 0.0
        %1100 = vmatpush2.msra.mxu0 0.0
        %1101 = vmatprep.subr.mxu0 0.0
        %1102 = vmatpush2.msra.mxu0 0.0
        %1103 = vmatprep.subr.mxu0 0.0
        %1104 = vmatpush2.msra.mxu0 0.0
        %1105 = vmatprep.subr.mxu0 0.0
        %1106 = vmatpush2.msra.mxu0 0.0
        %1107 = vmatprep.subr.mxu0 0.0
        %1108 = vmatpush2.msra.mxu0 0.0
        %1109 = vmatprep.subr.mxu0 0.0
        %1110 = vmatpush2.msra.mxu0 0.0
        %1111 = vmatprep.subr.mxu0 0.0
        %1112 = vmatpush2.msra.mxu0 0.0
        %1113 = vmatprep.subr.mxu0 0.0
        %1114 = vmatpush2.msra.mxu0 0.0
        %1115 = vmatprep.subr.mxu0 0.0
        %1116 = vmatpush2.msra.mxu0 0.0
        %1117 = vmatprep.subr.mxu0 0.0
        %1118 = vmatpush2.msra.mxu0 0.0
        %1119 = vmatprep.subr.mxu0 0.0
        %1120 = vmatpush2.msra.mxu0 0.0
        %1121 = vmatprep.subr.mxu0 0.0
        %1122 = vmatpush2.msra.mxu0 0.0
        %1123 = vmatprep.subr.mxu0 0.0
        %1124 = vmatpush2.msra.mxu0 0.0
        %1125 = vmatprep.subr.mxu0 0.0
        %1126 = vmatpush2.msra.mxu0 0.0
        %1127 = vmatprep.subr.mxu0 0.0
        %1128 = vmatpush2.msra.mxu0 0.0
        %1129 = vmatprep.subr.mxu0 0.0
        %1130 = vmatpush2.msra.mxu0 0.0
        %1131 = vmatprep.mubr.f32.mxu0 0.0
        %1132 = vmatmul.mubr.f32.gmra.mxu0 %v1059
        %v1133 = vpop.f32.mrf.mxu0
        %v1134 = vadd.f32 0.0, %v1133
        %v1135 = vpop.f32.mrf.mxu0
        %1136 = vmatprep.mubr.f32.mxu0 0.0
        %1137 = vmatmul.mubr.f32.gmra.mxu0 %v1062
        %v1138 = vpop.f32.mrf.mxu0
        %v1139 = vadd.f32 0.0, %v1138
        %v1140 = vpop.f32.mrf.mxu0
        %1141 = vmatprep.mubr.f32.mxu0 0.0
        %1142 = vmatmul.mubr.f32.gmra.mxu0 %v1065
        %v1143 = vpop.f32.mrf.mxu0
        %v1144 = vadd.f32 0.0, %v1143
        %v1145 = vpop.f32.mrf.mxu0
        %1146 = vdwg.mxu0
        %s1147 = scalar_lea.vmem %s2, 432
        %v1148 = vld [vmem:[%s1147] sm:$0xff]
        %v1149 = vld [vmem:[%s1147 + $0x8] sm:$0xff]
        %v1150 = vld [vmem:[%s1147 + $0x10] sm:$0xff]
        %v1151 = vld [vmem:[%s1147 + $0x18] sm:$0xff]
        %v1152 = vld [vmem:[%s1147 + $0x20] sm:$0xff]
        %v1153 = vld [vmem:[%s1147 + $0x28] sm:$0xff]
        %v1154 = vld [vmem:[%s1147 + $0x30] sm:$0xff]
        %v1155 = vld [vmem:[%s1147 + $0x38] sm:$0xff]
        %v1156 = vld [vmem:[%s1147 + $0x40] sm:$0xff]
        %v1157 = vld [vmem:[%s1147 + $0x48] sm:$0xff]
        %v1158 = vld [vmem:[%s1147 + $0x50] sm:$0xff]
        %v1159 = vld [vmem:[%s1147 + $0x58] sm:$0xff]
        %v1160 = vld [vmem:[%s1147 + $0x60] sm:$0xff]
        %v1161 = vld [vmem:[%s1147 + $0x68] sm:$0xff]
        %v1162 = vld [vmem:[%s1147 + $0x70] sm:$0xff]
        %v1163 = vld [vmem:[%s1147 + $0x78] sm:$0xff]
        %v1164 = vld [vmem:[%s1147 + $0x80] sm:$0xff]
        %v1165 = vld [vmem:[%s1147 + $0x88] sm:$0xff]
        %v1166 = vld [vmem:[%s1147 + $0x90] sm:$0xff]
        %v1167 = vld [vmem:[%s1147 + $0x98] sm:$0xff]
        %v1168 = vld [vmem:[%s1147 + $0xa0] sm:$0xff]
        %v1169 = vld [vmem:[%s1147 + $0xa8] sm:$0xff]
        %v1170 = vld [vmem:[%s1147 + $0xb0] sm:$0xff]
        %v1171 = vld [vmem:[%s1147 + $0xb8] sm:$0xff]
        %v1172 = vld [vmem:[%s1147 + $0xc0] sm:$0xff]
        %v1173 = vld [vmem:[%s1147 + $0xc8] sm:$0xff]
        %v1174 = vld [vmem:[%s1147 + $0xd0] sm:$0xff]
        %v1176 = vsel %vm709, %v1134, 0
        %v1179 = vsel %vm709, %v1139, 0
        %v1182 = vsel %vm709, %v1144, 0
        %1184 = vmatprep.subr.mxu0 0.0
        %1185 = vmatpush1.msra.mxu0 0.0
        %1186 = vmatprep.subr.mxu0 0.0
        %1187 = vmatpush1.msra.mxu0 0.0
        %1188 = vmatprep.subr.mxu0 0.0
        %1189 = vmatpush1.msra.mxu0 0.0
        %1190 = vmatprep.subr.mxu0 0.0
        %1191 = vmatpush1.msra.mxu0 0.0
        %1192 = vmatprep.subr.mxu0 0.0
        %1193 = vmatpush1.msra.mxu0 0.0
        %1194 = vmatprep.subr.mxu0 0.0
        %1195 = vmatpush1.msra.mxu0 0.0
        %1196 = vmatprep.subr.mxu0 0.0
        %1197 = vmatpush1.msra.mxu0 0.0
        %1198 = vmatprep.subr.mxu0 %v1173
        %1199 = vmatpush1.msra.mxu0 %v1172
        %1200 = vmatprep.subr.mxu0 %v1170
        %1201 = vmatpush1.msra.mxu0 %v1169
        %1202 = vmatprep.subr.mxu0 %v1167
        %1203 = vmatpush1.msra.mxu0 %v1166
        %1204 = vmatprep.subr.mxu0 %v1164
        %1205 = vmatpush1.msra.mxu0 %v1163
        %1206 = vmatprep.subr.mxu0 %v1161
        %1207 = vmatpush1.msra.mxu0 %v1160
        %1208 = vmatprep.subr.mxu0 %v1158
        %1209 = vmatpush1.msra.mxu0 %v1157
        %1210 = vmatprep.subr.mxu0 %v1155
        %1211 = vmatpush1.msra.mxu0 %v1154
        %1212 = vmatprep.subr.mxu0 %v1152
        %1213 = vmatpush1.msra.mxu0 %v1151
        %1214 = vmatprep.subr.mxu0 %v1149
        %1215 = vmatpush1.msra.mxu0 %v1148
        %1216 = vmatprep.subr.mxu0 0.0
        %1217 = vmatpush2.msra.mxu0 0.0
        %1218 = vmatprep.subr.mxu0 0.0
        %1219 = vmatpush2.msra.mxu0 0.0
        %1220 = vmatprep.subr.mxu0 0.0
        %1221 = vmatpush2.msra.mxu0 0.0
        %1222 = vmatprep.subr.mxu0 0.0
        %1223 = vmatpush2.msra.mxu0 0.0
        %1224 = vmatprep.subr.mxu0 0.0
        %1225 = vmatpush2.msra.mxu0 0.0
        %1226 = vmatprep.subr.mxu0 0.0
        %1227 = vmatpush2.msra.mxu0 0.0
        %1228 = vmatprep.subr.mxu0 0.0
        %1229 = vmatpush2.msra.mxu0 0.0
        %1230 = vmatprep.subr.mxu0 0.0
        %1231 = vmatpush2.msra.mxu0 0.0
        %1232 = vmatprep.subr.mxu0 0.0
        %1233 = vmatpush2.msra.mxu0 0.0
        %1234 = vmatprep.subr.mxu0 0.0
        %1235 = vmatpush2.msra.mxu0 0.0
        %1236 = vmatprep.subr.mxu0 0.0
        %1237 = vmatpush2.msra.mxu0 0.0
        %1238 = vmatprep.subr.mxu0 0.0
        %1239 = vmatpush2.msra.mxu0 0.0
        %1240 = vmatprep.subr.mxu0 0.0
        %1241 = vmatpush2.msra.mxu0 0.0
        %1242 = vmatprep.subr.mxu0 0.0
        %1243 = vmatpush2.msra.mxu0 0.0
        %1244 = vmatprep.subr.mxu0 0.0
        %1245 = vmatpush2.msra.mxu0 0.0
        %1246 = vmatprep.subr.mxu0 0.0
        %1247 = vmatpush2.msra.mxu0 0.0
        %1248 = vmatprep.mubr.f32.mxu0 0.0
        %1249 = vmatmul.mubr.f32.gmra.mxu0 %v1176
        %v1250 = vpop.f32.mrf.mxu0
        %v1251 = vadd.f32 0.0, %v1250
        %v1252 = vpop.f32.mrf.mxu0
        %v1253 = vadd.f32 0.0, %v1252
        %1254 = vmatprep.mubr.f32.mxu0 0.0
        %1255 = vmatmul.mubr.f32.gmra.mxu0 %v1179
        %v1256 = vpop.f32.mrf.mxu0
        %v1257 = vadd.f32 0.0, %v1256
        %v1258 = vpop.f32.mrf.mxu0
        %v1259 = vadd.f32 0.0, %v1258
        %1260 = vmatprep.mubr.f32.mxu0 0.0
        %1261 = vmatmul.mubr.f32.gmra.mxu0 %v1182
        %v1262 = vpop.f32.mrf.mxu0
        %v1263 = vadd.f32 0.0, %v1262
        %v1264 = vpop.f32.mrf.mxu0
        %v1265 = vadd.f32 0.0, %v1264
        %1266 = vdwg.mxu0
        %1267 = vmatprep.subr.mxu0 0.0
        %1268 = vmatpush1.msra.mxu0 0.0
        %1269 = vmatprep.subr.mxu0 0.0
        %1270 = vmatpush1.msra.mxu0 0.0
        %1271 = vmatprep.subr.mxu0 0.0
        %1272 = vmatpush1.msra.mxu0 0.0
        %1273 = vmatprep.subr.mxu0 0.0
        %1274 = vmatpush1.msra.mxu0 0.0
        %1275 = vmatprep.subr.mxu0 0.0
        %1276 = vmatpush1.msra.mxu0 0.0
        %1277 = vmatprep.subr.mxu0 0.0
        %1278 = vmatpush1.msra.mxu0 0.0
        %1279 = vmatprep.subr.mxu0 0.0
        %1280 = vmatpush1.msra.mxu0 0.0
        %1281 = vmatprep.subr.mxu0 0.0
        %1282 = vmatpush1.msra.mxu0 %v1174
        %1283 = vmatprep.subr.mxu0 0.0
        %1284 = vmatpush1.msra.mxu0 %v1171
        %1285 = vmatprep.subr.mxu0 0.0
        %1286 = vmatpush1.msra.mxu0 %v1168
        %1287 = vmatprep.subr.mxu0 0.0
        %1288 = vmatpush1.msra.mxu0 %v1165
        %1289 = vmatprep.subr.mxu0 0.0
        %1290 = vmatpush1.msra.mxu0 %v1162
        %1291 = vmatprep.subr.mxu0 0.0
        %1292 = vmatpush1.msra.mxu0 %v1159
        %1293 = vmatprep.subr.mxu0 0.0
        %1294 = vmatpush1.msra.mxu0 %v1156
        %1295 = vmatprep.subr.mxu0 0.0
        %1296 = vmatpush1.msra.mxu0 %v1153
        %1297 = vmatprep.subr.mxu0 0.0
        %1298 = vmatpush1.msra.mxu0 %v1150
        %1299 = vmatprep.subr.mxu0 0.0
        %1300 = vmatpush2.msra.mxu0 0.0
        %1301 = vmatprep.subr.mxu0 0.0
        %1302 = vmatpush2.msra.mxu0 0.0
        %1303 = vmatprep.subr.mxu0 0.0
        %1304 = vmatpush2.msra.mxu0 0.0
        %1305 = vmatprep.subr.mxu0 0.0
        %1306 = vmatpush2.msra.mxu0 0.0
        %1307 = vmatprep.subr.mxu0 0.0
        %1308 = vmatpush2.msra.mxu0 0.0
        %1309 = vmatprep.subr.mxu0 0.0
        %1310 = vmatpush2.msra.mxu0 0.0
        %1311 = vmatprep.subr.mxu0 0.0
        %1312 = vmatpush2.msra.mxu0 0.0
        %1313 = vmatprep.subr.mxu0 0.0
        %1314 = vmatpush2.msra.mxu0 0.0
        %1315 = vmatprep.subr.mxu0 0.0
        %1316 = vmatpush2.msra.mxu0 0.0
        %1317 = vmatprep.subr.mxu0 0.0
        %1318 = vmatpush2.msra.mxu0 0.0
        %1319 = vmatprep.subr.mxu0 0.0
        %1320 = vmatpush2.msra.mxu0 0.0
        %1321 = vmatprep.subr.mxu0 0.0
        %1322 = vmatpush2.msra.mxu0 0.0
        %1323 = vmatprep.subr.mxu0 0.0
        %1324 = vmatpush2.msra.mxu0 0.0
        %1325 = vmatprep.subr.mxu0 0.0
        %1326 = vmatpush2.msra.mxu0 0.0
        %1327 = vmatprep.subr.mxu0 0.0
        %1328 = vmatpush2.msra.mxu0 0.0
        %1329 = vmatprep.subr.mxu0 0.0
        %1330 = vmatpush2.msra.mxu0 0.0
        %1331 = vmatprep.mubr.f32.mxu0 0.0
        %1332 = vmatmul.mubr.f32.gmra.mxu0 %v1176
        %v1333 = vpop.f32.mrf.mxu0
        %v1334 = vadd.f32 0.0, %v1333
        %v1335 = vpop.f32.mrf.mxu0
        %1336 = vmatprep.mubr.f32.mxu0 0.0
        %1337 = vmatmul.mubr.f32.gmra.mxu0 %v1179
        %v1338 = vpop.f32.mrf.mxu0
        %v1339 = vadd.f32 0.0, %v1338
        %v1340 = vpop.f32.mrf.mxu0
        %1341 = vmatprep.mubr.f32.mxu0 0.0
        %1342 = vmatmul.mubr.f32.gmra.mxu0 %v1182
        %v1343 = vpop.f32.mrf.mxu0
        %v1344 = vadd.f32 0.0, %v1343
        %v1345 = vpop.f32.mrf.mxu0
        %1346 = vdwg.mxu0
        %v1347 = vadd.f32 %v958, %v1251
        %v1348 = vadd.f32 %v960, %v1253
        %v1349 = vadd.f32 %v1041, %v1334
        %v1350 = vadd.f32 %v964, %v1257
        %v1351 = vadd.f32 %v966, %v1259
        %v1352 = vadd.f32 %v1046, %v1339
        %v1353 = vadd.f32 %v970, %v1263
        %v1354 = vadd.f32 %v972, %v1265
        %v1355 = vadd.f32 %v1051, %v1344
        %v1356 = vld [vmem:[%s3] sm:$0x7]
        %v1358 = vlaneseq
        %v1359 = vshrl.u32 %v1358, 7
        %v1360 = vsub.s32 0, %v1359
        %v1361 = vrot.slane %v1356, %v1360
        %v1362 = vlaneseq
        %v1363 = vshrl.u32 %v1362, 7
        %v1364 = vsub.s32 1, %v1363
        %v1365 = vrot.slane %v1356, %v1364
        %v1366 = vlaneseq
        %v1367 = vshrl.u32 %v1366, 7
        %v1368 = vsub.s32 2, %v1367
        %v1369 = vrot.slane %v1356, %v1368
        %v1373 = vadd.f32 %v1347, %v1361
        %v1374 = vadd.f32 %v1348, %v1365
        %v1375 = vadd.f32 %v1349, %v1369
        %v1376 = vadd.f32 %v1350, %v1361
        %v1377 = vadd.f32 %v1351, %v1365
        %v1378 = vadd.f32 %v1352, %v1369
        %v1379 = vadd.f32 %v1353, %v1361
        %v1380 = vadd.f32 %v1354, %v1365
        %v1381 = vadd.f32 %v1355, %v1369
        %v1382 = vmax.f32 %v1373, 0.0
        %v1383 = vmax.f32 %v1374, 0.0
        %v1384 = vmax.f32 %v1375, 0.0
        %v1385 = vmax.f32 %v1376, 0.0
        %v1386 = vmax.f32 %v1377, 0.0
        %v1387 = vmax.f32 %v1378, 0.0
        %v1388 = vmax.f32 %v1379, 0.0
        %v1389 = vmax.f32 %v1380, 0.0
        %v1390 = vmax.f32 %v1381, 0.0
        %v1391 = vld [vmem:[%s4] sm:$0xff]
        %v1392 = vld [vmem:[%s4 + $0x8] sm:$0x3]
        %vm1393 = vcmask 179200
        %v1395 = vsel %vm1393, %v1391, 0
        %v1398 = vsel %vm1393, %v1392, 0
        %vm1400 = vcmask 1045504
        %v1402 = vsel %vm1400, %v1388, 0
        %v1405 = vsel %vm1400, %v1389, 0
        %v1408 = vsel %vm1400, %v1390, 0
        %1410 = vmatprep.subr.mxu0 0.0
        %1411 = vmatpush1.msra.mxu0 0.0
        %1412 = vmatprep.subr.mxu0 0.0
        %1413 = vmatpush1.msra.mxu0 0.0
        %1414 = vmatprep.subr.mxu0 0.0
        %1415 = vmatpush1.msra.mxu0 0.0
        %1416 = vmatprep.subr.mxu0 0.0
        %1417 = vmatpush1.msra.mxu0 0.0
        %1418 = vmatprep.subr.mxu0 0.0
        %1419 = vmatpush1.msra.mxu0 0.0
        %1420 = vmatprep.subr.mxu0 0.0
        %1421 = vmatpush1.msra.mxu0 0.0
        %1422 = vmatprep.subr.mxu0 0.0
        %1423 = vmatpush1.msra.mxu0 0.0
        %1424 = vmatprep.subr.mxu0 0.0
        %1425 = vmatpush1.msra.mxu0 0.0
        %1426 = vmatprep.subr.mxu0 0.0
        %1427 = vmatpush1.msra.mxu0 0.0
        %1428 = vmatprep.subr.mxu0 0.0
        %1429 = vmatpush1.msra.mxu0 0.0
        %1430 = vmatprep.subr.mxu0 0.0
        %1431 = vmatpush1.msra.mxu0 0.0
        %1432 = vmatprep.subr.mxu0 0.0
        %1433 = vmatpush1.msra.mxu0 0.0
        %1434 = vmatprep.subr.mxu0 0.0
        %1435 = vmatpush1.msra.mxu0 0.0
        %1436 = vmatprep.subr.mxu0 %v1405
        %1437 = vmatpush1.msra.mxu0 %v1402
        %1438 = vmatprep.subr.mxu0 %v1386
        %1439 = vmatpush1.msra.mxu0 %v1385
        %1440 = vmatprep.subr.mxu0 %v1383
        %1441 = vmatpush1.msra.mxu0 %v1382
        %1442 = vmatprep.subr.mxu0 0.0
        %1443 = vmatpush2.msra.mxu0 0.0
        %1444 = vmatprep.subr.mxu0 0.0
        %1445 = vmatpush2.msra.mxu0 0.0
        %1446 = vmatprep.subr.mxu0 0.0
        %1447 = vmatpush2.msra.mxu0 0.0
        %1448 = vmatprep.subr.mxu0 0.0
        %1449 = vmatpush2.msra.mxu0 0.0
        %1450 = vmatprep.subr.mxu0 0.0
        %1451 = vmatpush2.msra.mxu0 0.0
        %1452 = vmatprep.subr.mxu0 0.0
        %1453 = vmatpush2.msra.mxu0 0.0
        %1454 = vmatprep.subr.mxu0 0.0
        %1455 = vmatpush2.msra.mxu0 0.0
        %1456 = vmatprep.subr.mxu0 0.0
        %1457 = vmatpush2.msra.mxu0 0.0
        %1458 = vmatprep.subr.mxu0 0.0
        %1459 = vmatpush2.msra.mxu0 0.0
        %1460 = vmatprep.subr.mxu0 0.0
        %1461 = vmatpush2.msra.mxu0 0.0
        %1462 = vmatprep.subr.mxu0 0.0
        %1463 = vmatpush2.msra.mxu0 0.0
        %1464 = vmatprep.subr.mxu0 0.0
        %1465 = vmatpush2.msra.mxu0 0.0
        %1466 = vmatprep.subr.mxu0 0.0
        %1467 = vmatpush2.msra.mxu0 0.0
        %1468 = vmatprep.subr.mxu0 0.0
        %1469 = vmatpush2.msra.mxu0 0.0
        %1470 = vmatprep.subr.mxu0 0.0
        %1471 = vmatpush2.msra.mxu0 0.0
        %1472 = vmatprep.subr.mxu0 0.0
        %1473 = vmatpush2.msra.mxu0 0.0
        %1474 = vmatprep.mubr.f32.mxu0 0.0
        %1475 = vmatmul.mubr.f32.gmra.mxu0 %v1395
        %v1476 = vpop.f32.mrf.mxu0
        %v1477 = vadd.f32 0.0, %v1476
        %v1478 = vpop.f32.mrf.mxu0
        %v1479 = vadd.f32 0.0, %v1478
        %1480 = vmatprep.mubr.f32.mxu0 0.0
        %1481 = vmatmul.mubr.f32.gmra.mxu0 %v1398
        %v1482 = vpop.f32.mrf.mxu0
        %v1483 = vadd.f32 0.0, %v1482
        %v1484 = vpop.f32.mrf.mxu0
        %v1485 = vadd.f32 0.0, %v1484
        %1486 = vdwg.mxu0
        %1487 = vmatprep.subr.mxu0 0.0
        %1488 = vmatpush1.msra.mxu0 0.0
        %1489 = vmatprep.subr.mxu0 0.0
        %1490 = vmatpush1.msra.mxu0 0.0
        %1491 = vmatprep.subr.mxu0 0.0
        %1492 = vmatpush1.msra.mxu0 0.0
        %1493 = vmatprep.subr.mxu0 0.0
        %1494 = vmatpush1.msra.mxu0 0.0
        %1495 = vmatprep.subr.mxu0 0.0
        %1496 = vmatpush1.msra.mxu0 0.0
        %1497 = vmatprep.subr.mxu0 0.0
        %1498 = vmatpush1.msra.mxu0 0.0
        %1499 = vmatprep.subr.mxu0 0.0
        %1500 = vmatpush1.msra.mxu0 0.0
        %1501 = vmatprep.subr.mxu0 0.0
        %1502 = vmatpush1.msra.mxu0 0.0
        %1503 = vmatprep.subr.mxu0 0.0
        %1504 = vmatpush1.msra.mxu0 0.0
        %1505 = vmatprep.subr.mxu0 0.0
        %1506 = vmatpush1.msra.mxu0 0.0
        %1507 = vmatprep.subr.mxu0 0.0
        %1508 = vmatpush1.msra.mxu0 0.0
        %1509 = vmatprep.subr.mxu0 0.0
        %1510 = vmatpush1.msra.mxu0 0.0
        %1511 = vmatprep.subr.mxu0 0.0
        %1512 = vmatpush1.msra.mxu0 0.0
        %1513 = vmatprep.subr.mxu0 0.0
        %1514 = vmatpush1.msra.mxu0 %v1408
        %1515 = vmatprep.subr.mxu0 0.0
        %1516 = vmatpush1.msra.mxu0 %v1387
        %1517 = vmatprep.subr.mxu0 0.0
        %1518 = vmatpush1.msra.mxu0 %v1384
        %1519 = vmatprep.subr.mxu0 0.0
        %1520 = vmatpush2.msra.mxu0 0.0
        %1521 = vmatprep.subr.mxu0 0.0
        %1522 = vmatpush2.msra.mxu0 0.0
        %1523 = vmatprep.subr.mxu0 0.0
        %1524 = vmatpush2.msra.mxu0 0.0
        %1525 = vmatprep.subr.mxu0 0.0
        %1526 = vmatpush2.msra.mxu0 0.0
        %1527 = vmatprep.subr.mxu0 0.0
        %1528 = vmatpush2.msra.mxu0 0.0
        %1529 = vmatprep.subr.mxu0 0.0
        %1530 = vmatpush2.msra.mxu0 0.0
        %1531 = vmatprep.subr.mxu0 0.0
        %1532 = vmatpush2.msra.mxu0 0.0
        %1533 = vmatprep.subr.mxu0 0.0
        %1534 = vmatpush2.msra.mxu0 0.0
        %1535 = vmatprep.subr.mxu0 0.0
        %1536 = vmatpush2.msra.mxu0 0.0
        %1537 = vmatprep.subr.mxu0 0.0
        %1538 = vmatpush2.msra.mxu0 0.0
        %1539 = vmatprep.subr.mxu0 0.0
        %1540 = vmatpush2.msra.mxu0 0.0
        %1541 = vmatprep.subr.mxu0 0.0
        %1542 = vmatpush2.msra.mxu0 0.0
        %1543 = vmatprep.subr.mxu0 0.0
        %1544 = vmatpush2.msra.mxu0 0.0
        %1545 = vmatprep.subr.mxu0 0.0
        %1546 = vmatpush2.msra.mxu0 0.0
        %1547 = vmatprep.subr.mxu0 0.0
        %1548 = vmatpush2.msra.mxu0 0.0
        %1549 = vmatprep.subr.mxu0 0.0
        %1550 = vmatpush2.msra.mxu0 0.0
        %1551 = vmatprep.mubr.f32.mxu0 0.0
        %1552 = vmatmul.mubr.f32.gmra.mxu0 %v1395
        %v1553 = vpop.f32.mrf.mxu0
        %v1554 = vadd.f32 0.0, %v1553
        %v1555 = vpop.f32.mrf.mxu0
        %1556 = vmatprep.mubr.f32.mxu0 0.0
        %1557 = vmatmul.mubr.f32.gmra.mxu0 %v1398
        %v1558 = vpop.f32.mrf.mxu0
        %v1559 = vadd.f32 0.0, %v1558
        %v1560 = vpop.f32.mrf.mxu0
        %1561 = vdwg.mxu0
        %v1562 = vld [vmem:[%s5] sm:$0xff]
        %v1563 = vld [vmem:[%s5 + $0x8] sm:$0xff]
        %v1564 = vld [vmem:[%s5 + $0x10] sm:$0xff]
        %v1565 = vld [vmem:[%s5 + $0x18] sm:$0xff]
        %v1566 = vld [vmem:[%s5 + $0x20] sm:$0xff]
        %v1567 = vld [vmem:[%s5 + $0x28] sm:$0xff]
        %v1568 = vld [vmem:[%s5 + $0x30] sm:$0xff]
        %v1569 = vld [vmem:[%s5 + $0x38] sm:$0xff]
        %v1570 = vld [vmem:[%s5 + $0x40] sm:$0xff]
        %v1571 = vld [vmem:[%s5 + $0x48] sm:$0xff]
        %v1572 = vld [vmem:[%s5 + $0x50] sm:$0xff]
        %v1573 = vld [vmem:[%s5 + $0x58] sm:$0xff]
        %v1574 = vld [vmem:[%s5 + $0x60] sm:$0xff]
        %v1575 = vld [vmem:[%s5 + $0x68] sm:$0xff]
        %v1576 = vld [vmem:[%s5 + $0x70] sm:$0xff]
        %v1577 = vld [vmem:[%s5 + $0x78] sm:$0xff]
        %v1578 = vld [vmem:[%s5 + $0x80] sm:$0xff]
        %v1579 = vld [vmem:[%s5 + $0x88] sm:$0xff]
        %v1580 = vld [vmem:[%s5 + $0x90] sm:$0xff]
        %v1581 = vld [vmem:[%s5 + $0x98] sm:$0xff]
        %v1582 = vld [vmem:[%s5 + $0xa0] sm:$0xff]
        %v1583 = vld [vmem:[%s5 + $0xa8] sm:$0xff]
        %v1584 = vld [vmem:[%s5 + $0xb0] sm:$0xff]
        %v1585 = vld [vmem:[%s5 + $0xb8] sm:$0xff]
        %v1586 = vld [vmem:[%s5 + $0xc0] sm:$0xff]
        %v1587 = vld [vmem:[%s5 + $0xc8] sm:$0xff]
        %v1588 = vld [vmem:[%s5 + $0xd0] sm:$0xff]
        %v1589 = vld [vmem:[%s5 + $0xd8] sm:$0xff]
        %v1590 = vld [vmem:[%s5 + $0xe0] sm:$0xff]
        %v1591 = vld [vmem:[%s5 + $0xe8] sm:$0xff]
        %v1592 = vld [vmem:[%s5 + $0xf0] sm:$0xff]
        %v1593 = vld [vmem:[%s5 + $0xf8] sm:$0xff]
        %v1594 = vld [vmem:[%s5 + $0x100] sm:$0xff]
        %v1595 = vld [vmem:[%s5 + $0x108] sm:$0xff]
        %v1596 = vld [vmem:[%s5 + $0x110] sm:$0xff]
        %v1597 = vld [vmem:[%s5 + $0x118] sm:$0xff]
        %v1598 = vld [vmem:[%s5 + $0x120] sm:$0xff]
        %v1599 = vld [vmem:[%s5 + $0x128] sm:$0xff]
        %v1600 = vld [vmem:[%s5 + $0x130] sm:$0xff]
        %v1601 = vld [vmem:[%s5 + $0x138] sm:$0xff]
        %v1602 = vld [vmem:[%s5 + $0x140] sm:$0xff]
        %v1603 = vld [vmem:[%s5 + $0x148] sm:$0xff]
        %v1604 = vld [vmem:[%s5 + $0x150] sm:$0xff]
        %v1605 = vld [vmem:[%s5 + $0x158] sm:$0xff]
        %v1606 = vld [vmem:[%s5 + $0x160] sm:$0xff]
        %v1607 = vld [vmem:[%s5 + $0x168] sm:$0xff]
        %v1608 = vld [vmem:[%s5 + $0x170] sm:$0xff]
        %v1609 = vld [vmem:[%s5 + $0x178] sm:$0xff]
        %v1610 = vld [vmem:[%s5 + $0x180] sm:$0xff]
        %v1611 = vld [vmem:[%s5 + $0x188] sm:$0xff]
        %v1612 = vld [vmem:[%s5 + $0x190] sm:$0xff]
        %v1613 = vld [vmem:[%s5 + $0x198] sm:$0xff]
        %v1614 = vld [vmem:[%s5 + $0x1a0] sm:$0xff]
        %v1615 = vld [vmem:[%s5 + $0x1a8] sm:$0xff]
        %v1616 = vld [vmem:[%s5 + $0x1b0] sm:$0xff]
        %v1617 = vld [vmem:[%s5 + $0x1b8] sm:$0xff]
        %v1618 = vld [vmem:[%s5 + $0x1c0] sm:$0xff]
        %v1619 = vld [vmem:[%s5 + $0x1c8] sm:$0xff]
        %v1620 = vld [vmem:[%s5 + $0x1d0] sm:$0xff]
        %v1621 = vld [vmem:[%s5 + $0x1d8] sm:$0xff]
        %v1622 = vld [vmem:[%s5 + $0x1e0] sm:$0xff]
        %v1623 = vld [vmem:[%s5 + $0x1e8] sm:$0xff]
        %v1624 = vld [vmem:[%s5 + $0x1f0] sm:$0xff]
        %v1625 = vld [vmem:[%s5 + $0x1f8] sm:$0xff]
        %v1626 = vld [vmem:[%s5 + $0x200] sm:$0xff]
        %v1627 = vld [vmem:[%s5 + $0x208] sm:$0xff]
        %v1628 = vld [vmem:[%s5 + $0x210] sm:$0xff]
        %v1629 = vld [vmem:[%s5 + $0x218] sm:$0xff]
        %v1630 = vld [vmem:[%s5 + $0x220] sm:$0xff]
        %v1631 = vld [vmem:[%s5 + $0x228] sm:$0xff]
        %v1632 = vld [vmem:[%s5 + $0x230] sm:$0xff]
        %v1633 = vld [vmem:[%s5 + $0x238] sm:$0xff]
        %v1634 = vld [vmem:[%s5 + $0x240] sm:$0xff]
        %v1635 = vld [vmem:[%s5 + $0x248] sm:$0xff]
        %v1636 = vld [vmem:[%s5 + $0x250] sm:$0xff]
        %v1637 = vld [vmem:[%s5 + $0x258] sm:$0xff]
        %v1638 = vld [vmem:[%s5 + $0x260] sm:$0xff]
        %v1639 = vld [vmem:[%s5 + $0x268] sm:$0xff]
        %v1640 = vld [vmem:[%s5 + $0x270] sm:$0xff]
        %v1641 = vld [vmem:[%s5 + $0x278] sm:$0xff]
        %v1642 = vld [vmem:[%s5 + $0x280] sm:$0xff]
        %v1643 = vld [vmem:[%s5 + $0x288] sm:$0xff]
        %v1644 = vld [vmem:[%s5 + $0x290] sm:$0xff]
        %v1645 = vld [vmem:[%s5 + $0x298] sm:$0xff]
        %v1646 = vld [vmem:[%s5 + $0x2a0] sm:$0xff]
        %v1647 = vld [vmem:[%s5 + $0x2a8] sm:$0xff]
        %v1648 = vld [vmem:[%s5 + $0x2b0] sm:$0xff]
        %v1649 = vld [vmem:[%s5 + $0x2b8] sm:$0xff]
        %s1650 = scalar_lea.vmem %s4, 16
        %v1651 = vld [vmem:[%s1650] sm:$0xff]
        %v1652 = vld [vmem:[%s1650 + $0x8] sm:$0x3]
        %v1654 = vsel %vm1393, %v1651, 0
        %v1657 = vsel %vm1393, %v1652, 0
        %1659 = vmatprep.subr.mxu0 0.0
        %1660 = vmatpush1.msra.mxu0 0.0
        %1661 = vmatprep.subr.mxu0 0.0
        %1662 = vmatpush1.msra.mxu0 0.0
        %1663 = vmatprep.subr.mxu0 0.0
        %1664 = vmatpush1.msra.mxu0 0.0
        %1665 = vmatprep.subr.mxu0 0.0
        %1666 = vmatpush1.msra.mxu0 0.0
        %1667 = vmatprep.subr.mxu0 0.0
        %1668 = vmatpush1.msra.mxu0 0.0
        %1669 = vmatprep.subr.mxu0 0.0
        %1670 = vmatpush1.msra.mxu0 0.0
        %1671 = vmatprep.subr.mxu0 0.0
        %1672 = vmatpush1.msra.mxu0 0.0
        %1673 = vmatprep.subr.mxu0 0.0
        %1674 = vmatpush1.msra.mxu0 0.0
        %1675 = vmatprep.subr.mxu0 0.0
        %1676 = vmatpush1.msra.mxu0 0.0
        %1677 = vmatprep.subr.mxu0 0.0
        %1678 = vmatpush1.msra.mxu0 0.0
        %1679 = vmatprep.subr.mxu0 0.0
        %1680 = vmatpush1.msra.mxu0 0.0
        %1681 = vmatprep.subr.mxu0 0.0
        %1682 = vmatpush1.msra.mxu0 0.0
        %1683 = vmatprep.subr.mxu0 0.0
        %1684 = vmatpush1.msra.mxu0 0.0
        %1685 = vmatprep.subr.mxu0 %v1405
        %1686 = vmatpush1.msra.mxu0 %v1402
        %1687 = vmatprep.subr.mxu0 %v1386
        %1688 = vmatpush1.msra.mxu0 %v1385
        %1689 = vmatprep.subr.mxu0 %v1383
        %1690 = vmatpush1.msra.mxu0 %v1382
        %1691 = vmatprep.subr.mxu0 0.0
        %1692 = vmatpush2.msra.mxu0 0.0
        %1693 = vmatprep.subr.mxu0 0.0
        %1694 = vmatpush2.msra.mxu0 0.0
        %1695 = vmatprep.subr.mxu0 0.0
        %1696 = vmatpush2.msra.mxu0 0.0
        %1697 = vmatprep.subr.mxu0 0.0
        %1698 = vmatpush2.msra.mxu0 0.0
        %1699 = vmatprep.subr.mxu0 0.0
        %1700 = vmatpush2.msra.mxu0 0.0
        %1701 = vmatprep.subr.mxu0 0.0
        %1702 = vmatpush2.msra.mxu0 0.0
        %1703 = vmatprep.subr.mxu0 0.0
        %1704 = vmatpush2.msra.mxu0 0.0
        %1705 = vmatprep.subr.mxu0 0.0
        %1706 = vmatpush2.msra.mxu0 0.0
        %1707 = vmatprep.subr.mxu0 0.0
        %1708 = vmatpush2.msra.mxu0 0.0
        %1709 = vmatprep.subr.mxu0 0.0
        %1710 = vmatpush2.msra.mxu0 0.0
        %1711 = vmatprep.subr.mxu0 0.0
        %1712 = vmatpush2.msra.mxu0 0.0
        %1713 = vmatprep.subr.mxu0 0.0
        %1714 = vmatpush2.msra.mxu0 0.0
        %1715 = vmatprep.subr.mxu0 0.0
        %1716 = vmatpush2.msra.mxu0 0.0
        %1717 = vmatprep.subr.mxu0 0.0
        %1718 = vmatpush2.msra.mxu0 0.0
        %1719 = vmatprep.subr.mxu0 0.0
        %1720 = vmatpush2.msra.mxu0 0.0
        %1721 = vmatprep.subr.mxu0 0.0
        %1722 = vmatpush2.msra.mxu0 0.0
        %1723 = vmatprep.mubr.f32.mxu0 0.0
        %1724 = vmatmul.mubr.f32.gmra.mxu0 %v1654
        %v1725 = vpop.f32.mrf.mxu0
        %v1726 = vadd.f32 0.0, %v1725
        %v1727 = vpop.f32.mrf.mxu0
        %v1728 = vadd.f32 0.0, %v1727
        %1729 = vmatprep.mubr.f32.mxu0 0.0
        %1730 = vmatmul.mubr.f32.gmra.mxu0 %v1657
        %v1731 = vpop.f32.mrf.mxu0
        %v1732 = vadd.f32 0.0, %v1731
        %v1733 = vpop.f32.mrf.mxu0
        %v1734 = vadd.f32 0.0, %v1733
        %1735 = vdwg.mxu0
        %1736 = vmatprep.subr.mxu0 0.0
        %1737 = vmatpush1.msra.mxu0 0.0
        %1738 = vmatprep.subr.mxu0 0.0
        %1739 = vmatpush1.msra.mxu0 0.0
        %1740 = vmatprep.subr.mxu0 0.0
        %1741 = vmatpush1.msra.mxu0 0.0
        %1742 = vmatprep.subr.mxu0 0.0
        %1743 = vmatpush1.msra.mxu0 0.0
        %1744 = vmatprep.subr.mxu0 0.0
        %1745 = vmatpush1.msra.mxu0 0.0
        %1746 = vmatprep.subr.mxu0 0.0
        %1747 = vmatpush1.msra.mxu0 0.0
        %1748 = vmatprep.subr.mxu0 0.0
        %1749 = vmatpush1.msra.mxu0 0.0
        %1750 = vmatprep.subr.mxu0 0.0
        %1751 = vmatpush1.msra.mxu0 0.0
        %1752 = vmatprep.subr.mxu0 0.0
        %1753 = vmatpush1.msra.mxu0 0.0
        %1754 = vmatprep.subr.mxu0 0.0
        %1755 = vmatpush1.msra.mxu0 0.0
        %1756 = vmatprep.subr.mxu0 0.0
        %1757 = vmatpush1.msra.mxu0 0.0
        %1758 = vmatprep.subr.mxu0 0.0
        %1759 = vmatpush1.msra.mxu0 0.0
        %1760 = vmatprep.subr.mxu0 0.0
        %1761 = vmatpush1.msra.mxu0 0.0
        %1762 = vmatprep.subr.mxu0 0.0
        %1763 = vmatpush1.msra.mxu0 %v1408
        %1764 = vmatprep.subr.mxu0 0.0
        %1765 = vmatpush1.msra.mxu0 %v1387
        %1766 = vmatprep.subr.mxu0 0.0
        %1767 = vmatpush1.msra.mxu0 %v1384
        %1768 = vmatprep.subr.mxu0 0.0
        %1769 = vmatpush2.msra.mxu0 0.0
        %1770 = vmatprep.subr.mxu0 0.0
        %1771 = vmatpush2.msra.mxu0 0.0
        %1772 = vmatprep.subr.mxu0 0.0
        %1773 = vmatpush2.msra.mxu0 0.0
        %1774 = vmatprep.subr.mxu0 0.0
        %1775 = vmatpush2.msra.mxu0 0.0
        %1776 = vmatprep.subr.mxu0 0.0
        %1777 = vmatpush2.msra.mxu0 0.0
        %1778 = vmatprep.subr.mxu0 0.0
        %1779 = vmatpush2.msra.mxu0 0.0
        %1780 = vmatprep.subr.mxu0 0.0
        %1781 = vmatpush2.msra.mxu0 0.0
        %1782 = vmatprep.subr.mxu0 0.0
        %1783 = vmatpush2.msra.mxu0 0.0
        %1784 = vmatprep.subr.mxu0 0.0
        %1785 = vmatpush2.msra.mxu0 0.0
        %1786 = vmatprep.subr.mxu0 0.0
        %1787 = vmatpush2.msra.mxu0 0.0
        %1788 = vmatprep.subr.mxu0 0.0
        %1789 = vmatpush2.msra.mxu0 0.0
        %1790 = vmatprep.subr.mxu0 0.0
        %1791 = vmatpush2.msra.mxu0 0.0
        %1792 = vmatprep.subr.mxu0 0.0
        %1793 = vmatpush2.msra.mxu0 0.0
        %1794 = vmatprep.subr.mxu0 0.0
        %1795 = vmatpush2.msra.mxu0 0.0
        %1796 = vmatprep.subr.mxu0 0.0
        %1797 = vmatpush2.msra.mxu0 0.0
        %1798 = vmatprep.subr.mxu0 0.0
        %1799 = vmatpush2.msra.mxu0 0.0
        %1800 = vmatprep.mubr.f32.mxu0 0.0
        %1801 = vmatmul.mubr.f32.gmra.mxu0 %v1654
        %v1802 = vpop.f32.mrf.mxu0
        %v1803 = vadd.f32 0.0, %v1802
        %v1804 = vpop.f32.mrf.mxu0
        %1805 = vmatprep.mubr.f32.mxu0 0.0
        %1806 = vmatmul.mubr.f32.gmra.mxu0 %v1657
        %v1807 = vpop.f32.mrf.mxu0
        %v1808 = vadd.f32 0.0, %v1807
        %v1809 = vpop.f32.mrf.mxu0
        %1810 = vdwg.mxu0
        %s1811 = scalar_lea.vmem %s5, 704
        %v1812 = vld [vmem:[%s1811] sm:$0xff]
        %v1813 = vld [vmem:[%s1811 + $0x8] sm:$0xff]
        %v1814 = vld [vmem:[%s1811 + $0x10] sm:$0xff]
        %v1815 = vld [vmem:[%s1811 + $0x18] sm:$0xff]
        %v1816 = vld [vmem:[%s1811 + $0x20] sm:$0xff]
        %v1817 = vld [vmem:[%s1811 + $0x28] sm:$0xff]
        %v1818 = vld [vmem:[%s1811 + $0x30] sm:$0xff]
        %v1819 = vld [vmem:[%s1811 + $0x38] sm:$0xff]
        %v1820 = vld [vmem:[%s1811 + $0x40] sm:$0xff]
        %v1821 = vld [vmem:[%s1811 + $0x48] sm:$0xff]
        %v1822 = vld [vmem:[%s1811 + $0x50] sm:$0xff]
        %v1823 = vld [vmem:[%s1811 + $0x58] sm:$0xff]
        %v1824 = vld [vmem:[%s1811 + $0x60] sm:$0xff]
        %v1825 = vld [vmem:[%s1811 + $0x68] sm:$0xff]
        %v1826 = vld [vmem:[%s1811 + $0x70] sm:$0xff]
        %v1827 = vld [vmem:[%s1811 + $0x78] sm:$0xff]
        %v1828 = vld [vmem:[%s1811 + $0x80] sm:$0xff]
        %v1829 = vld [vmem:[%s1811 + $0x88] sm:$0xff]
        %v1830 = vld [vmem:[%s1811 + $0x90] sm:$0xff]
        %v1831 = vld [vmem:[%s1811 + $0x98] sm:$0xff]
        %v1832 = vld [vmem:[%s1811 + $0xa0] sm:$0xff]
        %v1833 = vld [vmem:[%s1811 + $0xa8] sm:$0xff]
        %v1834 = vld [vmem:[%s1811 + $0xb0] sm:$0xff]
        %v1835 = vld [vmem:[%s1811 + $0xb8] sm:$0xff]
        %v1836 = vld [vmem:[%s1811 + $0xc0] sm:$0xff]
        %v1837 = vld [vmem:[%s1811 + $0xc8] sm:$0xff]
        %v1838 = vld [vmem:[%s1811 + $0xd0] sm:$0xff]
        %v1839 = vld [vmem:[%s1811 + $0xd8] sm:$0xff]
        %v1840 = vld [vmem:[%s1811 + $0xe0] sm:$0xff]
        %v1841 = vld [vmem:[%s1811 + $0xe8] sm:$0xff]
        %v1842 = vld [vmem:[%s1811 + $0xf0] sm:$0xff]
        %v1843 = vld [vmem:[%s1811 + $0xf8] sm:$0xff]
        %v1844 = vld [vmem:[%s1811 + $0x100] sm:$0xff]
        %v1845 = vld [vmem:[%s1811 + $0x108] sm:$0xff]
        %v1846 = vld [vmem:[%s1811 + $0x110] sm:$0xff]
        %v1847 = vld [vmem:[%s1811 + $0x118] sm:$0xff]
        %v1848 = vld [vmem:[%s1811 + $0x120] sm:$0xff]
        %v1849 = vld [vmem:[%s1811 + $0x128] sm:$0xff]
        %v1850 = vld [vmem:[%s1811 + $0x130] sm:$0xff]
        %v1851 = vld [vmem:[%s1811 + $0x138] sm:$0xff]
        %v1852 = vld [vmem:[%s1811 + $0x140] sm:$0xff]
        %v1853 = vld [vmem:[%s1811 + $0x148] sm:$0xff]
        %v1854 = vld [vmem:[%s1811 + $0x150] sm:$0xff]
        %v1855 = vld [vmem:[%s1811 + $0x158] sm:$0xff]
        %v1856 = vld [vmem:[%s1811 + $0x160] sm:$0xff]
        %v1857 = vld [vmem:[%s1811 + $0x168] sm:$0xff]
        %v1858 = vld [vmem:[%s1811 + $0x170] sm:$0xff]
        %v1859 = vld [vmem:[%s1811 + $0x178] sm:$0xff]
        %v1860 = vld [vmem:[%s1811 + $0x180] sm:$0xff]
        %v1861 = vld [vmem:[%s1811 + $0x188] sm:$0xff]
        %v1862 = vld [vmem:[%s1811 + $0x190] sm:$0xff]
        %v1863 = vld [vmem:[%s1811 + $0x198] sm:$0xff]
        %v1864 = vld [vmem:[%s1811 + $0x1a0] sm:$0xff]
        %v1865 = vld [vmem:[%s1811 + $0x1a8] sm:$0xff]
        %v1866 = vld [vmem:[%s1811 + $0x1b0] sm:$0xff]
        %v1867 = vld [vmem:[%s1811 + $0x1b8] sm:$0xff]
        %v1868 = vld [vmem:[%s1811 + $0x1c0] sm:$0xff]
        %v1869 = vld [vmem:[%s1811 + $0x1c8] sm:$0xff]
        %v1870 = vld [vmem:[%s1811 + $0x1d0] sm:$0xff]
        %v1871 = vld [vmem:[%s1811 + $0x1d8] sm:$0xff]
        %v1872 = vld [vmem:[%s1811 + $0x1e0] sm:$0xff]
        %v1873 = vld [vmem:[%s1811 + $0x1e8] sm:$0xff]
        %v1874 = vld [vmem:[%s1811 + $0x1f0] sm:$0xff]
        %v1875 = vld [vmem:[%s1811 + $0x1f8] sm:$0xff]
        %v1876 = vld [vmem:[%s1811 + $0x200] sm:$0xff]
        %v1877 = vld [vmem:[%s1811 + $0x208] sm:$0xff]
        %v1878 = vld [vmem:[%s1811 + $0x210] sm:$0xff]
        %v1879 = vld [vmem:[%s1811 + $0x218] sm:$0xff]
        %v1880 = vld [vmem:[%s1811 + $0x220] sm:$0xff]
        %v1881 = vld [vmem:[%s1811 + $0x228] sm:$0xff]
        %v1882 = vld [vmem:[%s1811 + $0x230] sm:$0xff]
        %v1883 = vld [vmem:[%s1811 + $0x238] sm:$0xff]
        %v1884 = vld [vmem:[%s1811 + $0x240] sm:$0xff]
        %v1885 = vld [vmem:[%s1811 + $0x248] sm:$0xff]
        %v1886 = vld [vmem:[%s1811 + $0x250] sm:$0xff]
        %v1887 = vld [vmem:[%s1811 + $0x258] sm:$0xff]
        %v1888 = vld [vmem:[%s1811 + $0x260] sm:$0xff]
        %v1889 = vld [vmem:[%s1811 + $0x268] sm:$0xff]
        %v1890 = vld [vmem:[%s1811 + $0x270] sm:$0xff]
        %v1891 = vld [vmem:[%s1811 + $0x278] sm:$0xff]
        %v1892 = vld [vmem:[%s1811 + $0x280] sm:$0xff]
        %v1893 = vld [vmem:[%s1811 + $0x288] sm:$0xff]
        %v1894 = vld [vmem:[%s1811 + $0x290] sm:$0xff]
        %v1895 = vld [vmem:[%s1811 + $0x298] sm:$0xff]
        %v1896 = vld [vmem:[%s1811 + $0x2a0] sm:$0xff]
        %v1897 = vld [vmem:[%s1811 + $0x2a8] sm:$0xff]
        %v1898 = vld [vmem:[%s1811 + $0x2b0] sm:$0xff]
        %v1899 = vld [vmem:[%s1811 + $0x2b8] sm:$0xff]
        %vm1900 = vcmask 785408
        %v1902 = vsel %vm1900, %v1803, 0
        %v1905 = vsel %vm1900, %v1808, 0
        %1907 = vmatprep.subr.mxu0 %v1843
        %1908 = vmatpush1.msra.mxu0 %v1842
        %1909 = vmatprep.subr.mxu0 %v1841
        %1910 = vmatpush1.msra.mxu0 %v1840
        %1911 = vmatprep.subr.mxu0 %v1839
        %1912 = vmatpush1.msra.mxu0 %v1838
        %1913 = vmatprep.subr.mxu0 %v1837
        %1914 = vmatpush1.msra.mxu0 %v1836
        %1915 = vmatprep.subr.mxu0 %v1835
        %1916 = vmatpush1.msra.mxu0 %v1834
        %1917 = vmatprep.subr.mxu0 %v1833
        %1918 = vmatpush1.msra.mxu0 %v1832
        %1919 = vmatprep.subr.mxu0 %v1831
        %1920 = vmatpush1.msra.mxu0 %v1830
        %1921 = vmatprep.subr.mxu0 %v1829
        %1922 = vmatpush1.msra.mxu0 %v1828
        %1923 = vmatprep.subr.mxu0 %v1827
        %1924 = vmatpush1.msra.mxu0 %v1826
        %1925 = vmatprep.subr.mxu0 %v1825
        %1926 = vmatpush1.msra.mxu0 %v1824
        %1927 = vmatprep.subr.mxu0 %v1823
        %1928 = vmatpush1.msra.mxu0 %v1822
        %1929 = vmatprep.subr.mxu0 %v1821
        %1930 = vmatpush1.msra.mxu0 %v1820
        %1931 = vmatprep.subr.mxu0 %v1819
        %1932 = vmatpush1.msra.mxu0 %v1818
        %1933 = vmatprep.subr.mxu0 %v1817
        %1934 = vmatpush1.msra.mxu0 %v1816
        %1935 = vmatprep.subr.mxu0 %v1815
        %1936 = vmatpush1.msra.mxu0 %v1814
        %1937 = vmatprep.subr.mxu0 %v1813
        %1938 = vmatpush1.msra.mxu0 %v1812
        %1939 = vmatprep.subr.mxu0 %v1875
        %1940 = vmatpush2.msra.mxu0 %v1874
        %1941 = vmatprep.subr.mxu0 %v1873
        %1942 = vmatpush2.msra.mxu0 %v1872
        %1943 = vmatprep.subr.mxu0 %v1871
        %1944 = vmatpush2.msra.mxu0 %v1870
        %1945 = vmatprep.subr.mxu0 %v1869
        %1946 = vmatpush2.msra.mxu0 %v1868
        %1947 = vmatprep.subr.mxu0 %v1867
        %1948 = vmatpush2.msra.mxu0 %v1866
        %1949 = vmatprep.subr.mxu0 %v1865
        %1950 = vmatpush2.msra.mxu0 %v1864
        %1951 = vmatprep.subr.mxu0 %v1863
        %1952 = vmatpush2.msra.mxu0 %v1862
        %1953 = vmatprep.subr.mxu0 %v1861
        %1954 = vmatpush2.msra.mxu0 %v1860
        %1955 = vmatprep.subr.mxu0 %v1859
        %1956 = vmatpush2.msra.mxu0 %v1858
        %1957 = vmatprep.subr.mxu0 %v1857
        %1958 = vmatpush2.msra.mxu0 %v1856
        %1959 = vmatprep.subr.mxu0 %v1855
        %1960 = vmatpush2.msra.mxu0 %v1854
        %1961 = vmatprep.subr.mxu0 %v1853
        %1962 = vmatpush2.msra.mxu0 %v1852
        %1963 = vmatprep.subr.mxu0 %v1851
        %1964 = vmatpush2.msra.mxu0 %v1850
        %1965 = vmatprep.subr.mxu0 %v1849
        %1966 = vmatpush2.msra.mxu0 %v1848
        %1967 = vmatprep.subr.mxu0 %v1847
        %1968 = vmatpush2.msra.mxu0 %v1846
        %1969 = vmatprep.subr.mxu0 %v1845
        %1970 = vmatpush2.msra.mxu0 %v1844
        %1971 = vmatprep.mubr.f32.mxu0 %v1728
        %1972 = vmatmul.mubr.f32.gmra.mxu0 %v1726
        %v1973 = vpop.f32.mrf.mxu0
        %v1974 = vadd.f32 0.0, %v1973
        %v1975 = vpop.f32.mrf.mxu0
        %v1976 = vadd.f32 0.0, %v1975
        %1977 = vmatprep.mubr.f32.mxu0 %v1734
        %1978 = vmatmul.mubr.f32.gmra.mxu0 %v1732
        %v1979 = vpop.f32.mrf.mxu0
        %v1980 = vadd.f32 0.0, %v1979
        %v1981 = vpop.f32.mrf.mxu0
        %v1982 = vadd.f32 0.0, %v1981
        %1983 = vdwg.mxu0
        %1984 = vmatprep.subr.mxu0 0.0
        %1985 = vmatpush1.msra.mxu0 0.0
        %1986 = vmatprep.subr.mxu0 0.0
        %1987 = vmatpush1.msra.mxu0 0.0
        %1988 = vmatprep.subr.mxu0 0.0
        %1989 = vmatpush1.msra.mxu0 0.0
        %1990 = vmatprep.subr.mxu0 0.0
        %1991 = vmatpush1.msra.mxu0 0.0
        %1992 = vmatprep.subr.mxu0 %v1899
        %1993 = vmatpush1.msra.mxu0 %v1898
        %1994 = vmatprep.subr.mxu0 %v1897
        %1995 = vmatpush1.msra.mxu0 %v1896
        %1996 = vmatprep.subr.mxu0 %v1895
        %1997 = vmatpush1.msra.mxu0 %v1894
        %1998 = vmatprep.subr.mxu0 %v1893
        %1999 = vmatpush1.msra.mxu0 %v1892
        %2000 = vmatprep.subr.mxu0 %v1891
        %2001 = vmatpush1.msra.mxu0 %v1890
        %2002 = vmatprep.subr.mxu0 %v1889
        %2003 = vmatpush1.msra.mxu0 %v1888
        %2004 = vmatprep.subr.mxu0 %v1887
        %2005 = vmatpush1.msra.mxu0 %v1886
        %2006 = vmatprep.subr.mxu0 %v1885
        %2007 = vmatpush1.msra.mxu0 %v1884
        %2008 = vmatprep.subr.mxu0 %v1883
        %2009 = vmatpush1.msra.mxu0 %v1882
        %2010 = vmatprep.subr.mxu0 %v1881
        %2011 = vmatpush1.msra.mxu0 %v1880
        %2012 = vmatprep.subr.mxu0 %v1879
        %2013 = vmatpush1.msra.mxu0 %v1878
        %2014 = vmatprep.subr.mxu0 %v1877
        %2015 = vmatpush1.msra.mxu0 %v1876
        %2016 = vmatprep.subr.mxu0 0.0
        %2017 = vmatpush2.msra.mxu0 0.0
        %2018 = vmatprep.subr.mxu0 0.0
        %2019 = vmatpush2.msra.mxu0 0.0
        %2020 = vmatprep.subr.mxu0 0.0
        %2021 = vmatpush2.msra.mxu0 0.0
        %2022 = vmatprep.subr.mxu0 0.0
        %2023 = vmatpush2.msra.mxu0 0.0
        %2024 = vmatprep.subr.mxu0 0.0
        %2025 = vmatpush2.msra.mxu0 0.0
        %2026 = vmatprep.subr.mxu0 0.0
        %2027 = vmatpush2.msra.mxu0 0.0
        %2028 = vmatprep.subr.mxu0 0.0
        %2029 = vmatpush2.msra.mxu0 0.0
        %2030 = vmatprep.subr.mxu0 0.0
        %2031 = vmatpush2.msra.mxu0 0.0
        %2032 = vmatprep.subr.mxu0 0.0
        %2033 = vmatpush2.msra.mxu0 0.0
        %2034 = vmatprep.subr.mxu0 0.0
        %2035 = vmatpush2.msra.mxu0 0.0
        %2036 = vmatprep.subr.mxu0 0.0
        %2037 = vmatpush2.msra.mxu0 0.0
        %2038 = vmatprep.subr.mxu0 0.0
        %2039 = vmatpush2.msra.mxu0 0.0
        %2040 = vmatprep.subr.mxu0 0.0
        %2041 = vmatpush2.msra.mxu0 0.0
        %2042 = vmatprep.subr.mxu0 0.0
        %2043 = vmatpush2.msra.mxu0 0.0
        %2044 = vmatprep.subr.mxu0 0.0
        %2045 = vmatpush2.msra.mxu0 0.0
        %2046 = vmatprep.subr.mxu0 0.0
        %2047 = vmatpush2.msra.mxu0 0.0
        %2048 = vmatprep.mubr.f32.mxu0 0.0
        %2049 = vmatmul.mubr.f32.gmra.mxu0 %v1902
        %v2050 = vpop.f32.mrf.mxu0
        %v2051 = vadd.f32 %v1974, %v2050
        %v2052 = vpop.f32.mrf.mxu0
        %v2053 = vadd.f32 %v1976, %v2052
        %2054 = vmatprep.mubr.f32.mxu0 0.0
        %2055 = vmatmul.mubr.f32.gmra.mxu0 %v1905
        %v2056 = vpop.f32.mrf.mxu0
        %v2057 = vadd.f32 %v1980, %v2056
        %v2058 = vpop.f32.mrf.mxu0
        %v2059 = vadd.f32 %v1982, %v2058
        %2060 = vdwg.mxu0
        %v2062 = vsel %vm1900, %v1554, 0
        %v2065 = vsel %vm1900, %v1559, 0
        %2067 = vmatprep.subr.mxu0 %v1593
        %2068 = vmatpush1.msra.mxu0 %v1592
        %2069 = vmatprep.subr.mxu0 %v1591
        %2070 = vmatpush1.msra.mxu0 %v1590
        %2071 = vmatprep.subr.mxu0 %v1589
        %2072 = vmatpush1.msra.mxu0 %v1588
        %2073 = vmatprep.subr.mxu0 %v1587
        %2074 = vmatpush1.msra.mxu0 %v1586
        %2075 = vmatprep.subr.mxu0 %v1585
        %2076 = vmatpush1.msra.mxu0 %v1584
        %2077 = vmatprep.subr.mxu0 %v1583
        %2078 = vmatpush1.msra.mxu0 %v1582
        %2079 = vmatprep.subr.mxu0 %v1581
        %2080 = vmatpush1.msra.mxu0 %v1580
        %2081 = vmatprep.subr.mxu0 %v1579
        %2082 = vmatpush1.msra.mxu0 %v1578
        %2083 = vmatprep.subr.mxu0 %v1577
        %2084 = vmatpush1.msra.mxu0 %v1576
        %2085 = vmatprep.subr.mxu0 %v1575
        %2086 = vmatpush1.msra.mxu0 %v1574
        %2087 = vmatprep.subr.mxu0 %v1573
        %2088 = vmatpush1.msra.mxu0 %v1572
        %2089 = vmatprep.subr.mxu0 %v1571
        %2090 = vmatpush1.msra.mxu0 %v1570
        %2091 = vmatprep.subr.mxu0 %v1569
        %2092 = vmatpush1.msra.mxu0 %v1568
        %2093 = vmatprep.subr.mxu0 %v1567
        %2094 = vmatpush1.msra.mxu0 %v1566
        %2095 = vmatprep.subr.mxu0 %v1565
        %2096 = vmatpush1.msra.mxu0 %v1564
        %2097 = vmatprep.subr.mxu0 %v1563
        %2098 = vmatpush1.msra.mxu0 %v1562
        %2099 = vmatprep.subr.mxu0 %v1625
        %2100 = vmatpush2.msra.mxu0 %v1624
        %2101 = vmatprep.subr.mxu0 %v1623
        %2102 = vmatpush2.msra.mxu0 %v1622
        %2103 = vmatprep.subr.mxu0 %v1621
        %2104 = vmatpush2.msra.mxu0 %v1620
        %2105 = vmatprep.subr.mxu0 %v1619
        %2106 = vmatpush2.msra.mxu0 %v1618
        %2107 = vmatprep.subr.mxu0 %v1617
        %2108 = vmatpush2.msra.mxu0 %v1616
        %2109 = vmatprep.subr.mxu0 %v1615
        %2110 = vmatpush2.msra.mxu0 %v1614
        %2111 = vmatprep.subr.mxu0 %v1613
        %2112 = vmatpush2.msra.mxu0 %v1612
        %2113 = vmatprep.subr.mxu0 %v1611
        %2114 = vmatpush2.msra.mxu0 %v1610
        %2115 = vmatprep.subr.mxu0 %v1609
        %2116 = vmatpush2.msra.mxu0 %v1608
        %2117 = vmatprep.subr.mxu0 %v1607
        %2118 = vmatpush2.msra.mxu0 %v1606
        %2119 = vmatprep.subr.mxu0 %v1605
        %2120 = vmatpush2.msra.mxu0 %v1604
        %2121 = vmatprep.subr.mxu0 %v1603
        %2122 = vmatpush2.msra.mxu0 %v1602
        %2123 = vmatprep.subr.mxu0 %v1601
        %2124 = vmatpush2.msra.mxu0 %v1600
        %2125 = vmatprep.subr.mxu0 %v1599
        %2126 = vmatpush2.msra.mxu0 %v1598
        %2127 = vmatprep.subr.mxu0 %v1597
        %2128 = vmatpush2.msra.mxu0 %v1596
        %2129 = vmatprep.subr.mxu0 %v1595
        %2130 = vmatpush2.msra.mxu0 %v1594
        %2131 = vmatprep.mubr.f32.mxu0 %v1479
        %2132 = vmatmul.mubr.f32.gmra.mxu0 %v1477
        %v2133 = vpop.f32.mrf.mxu0
        %v2134 = vadd.f32 %v2051, %v2133
        %v2135 = vpop.f32.mrf.mxu0
        %v2136 = vadd.f32 %v2053, %v2135
        %2137 = vmatprep.mubr.f32.mxu0 %v1485
        %2138 = vmatmul.mubr.f32.gmra.mxu0 %v1483
        %v2139 = vpop.f32.mrf.mxu0
        %v2140 = vadd.f32 %v2057, %v2139
        %v2141 = vpop.f32.mrf.mxu0
        %v2142 = vadd.f32 %v2059, %v2141
        %2143 = vdwg.mxu0
        %2144 = vmatprep.subr.mxu0 0.0
        %2145 = vmatpush1.msra.mxu0 0.0
        %2146 = vmatprep.subr.mxu0 0.0
        %2147 = vmatpush1.msra.mxu0 0.0
        %2148 = vmatprep.subr.mxu0 0.0
        %2149 = vmatpush1.msra.mxu0 0.0
        %2150 = vmatprep.subr.mxu0 0.0
        %2151 = vmatpush1.msra.mxu0 0.0
        %2152 = vmatprep.subr.mxu0 %v1649
        %2153 = vmatpush1.msra.mxu0 %v1648
        %2154 = vmatprep.subr.mxu0 %v1647
        %2155 = vmatpush1.msra.mxu0 %v1646
        %2156 = vmatprep.subr.mxu0 %v1645
        %2157 = vmatpush1.msra.mxu0 %v1644
        %2158 = vmatprep.subr.mxu0 %v1643
        %2159 = vmatpush1.msra.mxu0 %v1642
        %2160 = vmatprep.subr.mxu0 %v1641
        %2161 = vmatpush1.msra.mxu0 %v1640
        %2162 = vmatprep.subr.mxu0 %v1639
        %2163 = vmatpush1.msra.mxu0 %v1638
        %2164 = vmatprep.subr.mxu0 %v1637
        %2165 = vmatpush1.msra.mxu0 %v1636
        %2166 = vmatprep.subr.mxu0 %v1635
        %2167 = vmatpush1.msra.mxu0 %v1634
        %2168 = vmatprep.subr.mxu0 %v1633
        %2169 = vmatpush1.msra.mxu0 %v1632
        %2170 = vmatprep.subr.mxu0 %v1631
        %2171 = vmatpush1.msra.mxu0 %v1630
        %2172 = vmatprep.subr.mxu0 %v1629
        %2173 = vmatpush1.msra.mxu0 %v1628
        %2174 = vmatprep.subr.mxu0 %v1627
        %2175 = vmatpush1.msra.mxu0 %v1626
        %2176 = vmatprep.subr.mxu0 0.0
        %2177 = vmatpush2.msra.mxu0 0.0
        %2178 = vmatprep.subr.mxu0 0.0
        %2179 = vmatpush2.msra.mxu0 0.0
        %2180 = vmatprep.subr.mxu0 0.0
        %2181 = vmatpush2.msra.mxu0 0.0
        %2182 = vmatprep.subr.mxu0 0.0
        %2183 = vmatpush2.msra.mxu0 0.0
        %2184 = vmatprep.subr.mxu0 0.0
        %2185 = vmatpush2.msra.mxu0 0.0
        %2186 = vmatprep.subr.mxu0 0.0
        %2187 = vmatpush2.msra.mxu0 0.0
        %2188 = vmatprep.subr.mxu0 0.0
        %2189 = vmatpush2.msra.mxu0 0.0
        %2190 = vmatprep.subr.mxu0 0.0
        %2191 = vmatpush2.msra.mxu0 0.0
        %2192 = vmatprep.subr.mxu0 0.0
        %2193 = vmatpush2.msra.mxu0 0.0
        %2194 = vmatprep.subr.mxu0 0.0
        %2195 = vmatpush2.msra.mxu0 0.0
        %2196 = vmatprep.subr.mxu0 0.0
        %2197 = vmatpush2.msra.mxu0 0.0
        %2198 = vmatprep.subr.mxu0 0.0
        %2199 = vmatpush2.msra.mxu0 0.0
        %2200 = vmatprep.subr.mxu0 0.0
        %2201 = vmatpush2.msra.mxu0 0.0
        %2202 = vmatprep.subr.mxu0 0.0
        %2203 = vmatpush2.msra.mxu0 0.0
        %2204 = vmatprep.subr.mxu0 0.0
        %2205 = vmatpush2.msra.mxu0 0.0
        %2206 = vmatprep.subr.mxu0 0.0
        %2207 = vmatpush2.msra.mxu0 0.0
        %2208 = vmatprep.mubr.f32.mxu0 0.0
        %2209 = vmatmul.mubr.f32.gmra.mxu0 %v2062
        %v2210 = vpop.f32.mrf.mxu0
        %v2211 = vadd.f32 %v2134, %v2210
        %v2212 = vpop.f32.mrf.mxu0
        %v2213 = vadd.f32 %v2136, %v2212
        %2214 = vmatprep.mubr.f32.mxu0 0.0
        %2215 = vmatmul.mubr.f32.gmra.mxu0 %v2065
        %v2216 = vpop.f32.mrf.mxu0
        %v2217 = vadd.f32 %v2140, %v2216
        %v2218 = vpop.f32.mrf.mxu0
        %v2219 = vadd.f32 %v2142, %v2218
        %2220 = vdwg.mxu0
        %s2221 = scalar_lea.vmem %s4, 32
        %v2222 = vld [vmem:[%s2221] sm:$0xff]
        %v2223 = vld [vmem:[%s2221 + $0x8] sm:$0x3]
        %v2225 = vsel %vm1393, %v2222, 0
        %v2228 = vsel %vm1393, %v2223, 0
        %2230 = vmatprep.subr.mxu0 0.0
        %2231 = vmatpush1.msra.mxu0 0.0
        %2232 = vmatprep.subr.mxu0 0.0
        %2233 = vmatpush1.msra.mxu0 0.0
        %2234 = vmatprep.subr.mxu0 0.0
        %2235 = vmatpush1.msra.mxu0 0.0
        %2236 = vmatprep.subr.mxu0 0.0
        %2237 = vmatpush1.msra.mxu0 0.0
        %2238 = vmatprep.subr.mxu0 0.0
        %2239 = vmatpush1.msra.mxu0 0.0
        %2240 = vmatprep.subr.mxu0 0.0
        %2241 = vmatpush1.msra.mxu0 0.0
        %2242 = vmatprep.subr.mxu0 0.0
        %2243 = vmatpush1.msra.mxu0 0.0
        %2244 = vmatprep.subr.mxu0 0.0
        %2245 = vmatpush1.msra.mxu0 0.0
        %2246 = vmatprep.subr.mxu0 0.0
        %2247 = vmatpush1.msra.mxu0 0.0
        %2248 = vmatprep.subr.mxu0 0.0
        %2249 = vmatpush1.msra.mxu0 0.0
        %2250 = vmatprep.subr.mxu0 0.0
        %2251 = vmatpush1.msra.mxu0 0.0
        %2252 = vmatprep.subr.mxu0 0.0
        %2253 = vmatpush1.msra.mxu0 0.0
        %2254 = vmatprep.subr.mxu0 0.0
        %2255 = vmatpush1.msra.mxu0 0.0
        %2256 = vmatprep.subr.mxu0 %v1405
        %2257 = vmatpush1.msra.mxu0 %v1402
        %2258 = vmatprep.subr.mxu0 %v1386
        %2259 = vmatpush1.msra.mxu0 %v1385
        %2260 = vmatprep.subr.mxu0 %v1383
        %2261 = vmatpush1.msra.mxu0 %v1382
        %2262 = vmatprep.subr.mxu0 0.0
        %2263 = vmatpush2.msra.mxu0 0.0
        %2264 = vmatprep.subr.mxu0 0.0
        %2265 = vmatpush2.msra.mxu0 0.0
        %2266 = vmatprep.subr.mxu0 0.0
        %2267 = vmatpush2.msra.mxu0 0.0
        %2268 = vmatprep.subr.mxu0 0.0
        %2269 = vmatpush2.msra.mxu0 0.0
        %2270 = vmatprep.subr.mxu0 0.0
        %2271 = vmatpush2.msra.mxu0 0.0
        %2272 = vmatprep.subr.mxu0 0.0
        %2273 = vmatpush2.msra.mxu0 0.0
        %2274 = vmatprep.subr.mxu0 0.0
        %2275 = vmatpush2.msra.mxu0 0.0
        %2276 = vmatprep.subr.mxu0 0.0
        %2277 = vmatpush2.msra.mxu0 0.0
        %2278 = vmatprep.subr.mxu0 0.0
        %2279 = vmatpush2.msra.mxu0 0.0
        %2280 = vmatprep.subr.mxu0 0.0
        %2281 = vmatpush2.msra.mxu0 0.0
        %2282 = vmatprep.subr.mxu0 0.0
        %2283 = vmatpush2.msra.mxu0 0.0
        %2284 = vmatprep.subr.mxu0 0.0
        %2285 = vmatpush2.msra.mxu0 0.0
        %2286 = vmatprep.subr.mxu0 0.0
        %2287 = vmatpush2.msra.mxu0 0.0
        %2288 = vmatprep.subr.mxu0 0.0
        %2289 = vmatpush2.msra.mxu0 0.0
        %2290 = vmatprep.subr.mxu0 0.0
        %2291 = vmatpush2.msra.mxu0 0.0
        %2292 = vmatprep.subr.mxu0 0.0
        %2293 = vmatpush2.msra.mxu0 0.0
        %2294 = vmatprep.mubr.f32.mxu0 0.0
        %2295 = vmatmul.mubr.f32.gmra.mxu0 %v2225
        %v2296 = vpop.f32.mrf.mxu0
        %v2297 = vadd.f32 0.0, %v2296
        %v2298 = vpop.f32.mrf.mxu0
        %v2299 = vadd.f32 0.0, %v2298
        %2300 = vmatprep.mubr.f32.mxu0 0.0
        %2301 = vmatmul.mubr.f32.gmra.mxu0 %v2228
        %v2302 = vpop.f32.mrf.mxu0
        %v2303 = vadd.f32 0.0, %v2302
        %v2304 = vpop.f32.mrf.mxu0
        %v2305 = vadd.f32 0.0, %v2304
        %2306 = vdwg.mxu0
        %2307 = vmatprep.subr.mxu0 0.0
        %2308 = vmatpush1.msra.mxu0 0.0
        %2309 = vmatprep.subr.mxu0 0.0
        %2310 = vmatpush1.msra.mxu0 0.0
        %2311 = vmatprep.subr.mxu0 0.0
        %2312 = vmatpush1.msra.mxu0 0.0
        %2313 = vmatprep.subr.mxu0 0.0
        %2314 = vmatpush1.msra.mxu0 0.0
        %2315 = vmatprep.subr.mxu0 0.0
        %2316 = vmatpush1.msra.mxu0 0.0
        %2317 = vmatprep.subr.mxu0 0.0
        %2318 = vmatpush1.msra.mxu0 0.0
        %2319 = vmatprep.subr.mxu0 0.0
        %2320 = vmatpush1.msra.mxu0 0.0
        %2321 = vmatprep.subr.mxu0 0.0
        %2322 = vmatpush1.msra.mxu0 0.0
        %2323 = vmatprep.subr.mxu0 0.0
        %2324 = vmatpush1.msra.mxu0 0.0
        %2325 = vmatprep.subr.mxu0 0.0
        %2326 = vmatpush1.msra.mxu0 0.0
        %2327 = vmatprep.subr.mxu0 0.0
        %2328 = vmatpush1.msra.mxu0 0.0
        %2329 = vmatprep.subr.mxu0 0.0
        %2330 = vmatpush1.msra.mxu0 0.0
        %2331 = vmatprep.subr.mxu0 0.0
        %2332 = vmatpush1.msra.mxu0 0.0
        %2333 = vmatprep.subr.mxu0 0.0
        %2334 = vmatpush1.msra.mxu0 %v1408
        %2335 = vmatprep.subr.mxu0 0.0
        %2336 = vmatpush1.msra.mxu0 %v1387
        %2337 = vmatprep.subr.mxu0 0.0
        %2338 = vmatpush1.msra.mxu0 %v1384
        %2339 = vmatprep.subr.mxu0 0.0
        %2340 = vmatpush2.msra.mxu0 0.0
        %2341 = vmatprep.subr.mxu0 0.0
        %2342 = vmatpush2.msra.mxu0 0.0
        %2343 = vmatprep.subr.mxu0 0.0
        %2344 = vmatpush2.msra.mxu0 0.0
        %2345 = vmatprep.subr.mxu0 0.0
        %2346 = vmatpush2.msra.mxu0 0.0
        %2347 = vmatprep.subr.mxu0 0.0
        %2348 = vmatpush2.msra.mxu0 0.0
        %2349 = vmatprep.subr.mxu0 0.0
        %2350 = vmatpush2.msra.mxu0 0.0
        %2351 = vmatprep.subr.mxu0 0.0
        %2352 = vmatpush2.msra.mxu0 0.0
        %2353 = vmatprep.subr.mxu0 0.0
        %2354 = vmatpush2.msra.mxu0 0.0
        %2355 = vmatprep.subr.mxu0 0.0
        %2356 = vmatpush2.msra.mxu0 0.0
        %2357 = vmatprep.subr.mxu0 0.0
        %2358 = vmatpush2.msra.mxu0 0.0
        %2359 = vmatprep.subr.mxu0 0.0
        %2360 = vmatpush2.msra.mxu0 0.0
        %2361 = vmatprep.subr.mxu0 0.0
        %2362 = vmatpush2.msra.mxu0 0.0
        %2363 = vmatprep.subr.mxu0 0.0
        %2364 = vmatpush2.msra.mxu0 0.0
        %2365 = vmatprep.subr.mxu0 0.0
        %2366 = vmatpush2.msra.mxu0 0.0
        %2367 = vmatprep.subr.mxu0 0.0
        %2368 = vmatpush2.msra.mxu0 0.0
        %2369 = vmatprep.subr.mxu0 0.0
        %2370 = vmatpush2.msra.mxu0 0.0
        %2371 = vmatprep.mubr.f32.mxu0 0.0
        %2372 = vmatmul.mubr.f32.gmra.mxu0 %v2225
        %v2373 = vpop.f32.mrf.mxu0
        %v2374 = vadd.f32 0.0, %v2373
        %v2375 = vpop.f32.mrf.mxu0
        %2376 = vmatprep.mubr.f32.mxu0 0.0
        %2377 = vmatmul.mubr.f32.gmra.mxu0 %v2228
        %v2378 = vpop.f32.mrf.mxu0
        %v2379 = vadd.f32 0.0, %v2378
        %v2380 = vpop.f32.mrf.mxu0
        %2381 = vdwg.mxu0
        %s2382 = scalar_lea.vmem %s5, 1408
        %v2383 = vld [vmem:[%s2382] sm:$0xff]
        %v2384 = vld [vmem:[%s2382 + $0x8] sm:$0xff]
        %v2385 = vld [vmem:[%s2382 + $0x10] sm:$0xff]
        %v2386 = vld [vmem:[%s2382 + $0x18] sm:$0xff]
        %v2387 = vld [vmem:[%s2382 + $0x20] sm:$0xff]
        %v2388 = vld [vmem:[%s2382 + $0x28] sm:$0xff]
        %v2389 = vld [vmem:[%s2382 + $0x30] sm:$0xff]
        %v2390 = vld [vmem:[%s2382 + $0x38] sm:$0xff]
        %v2391 = vld [vmem:[%s2382 + $0x40] sm:$0xff]
        %v2392 = vld [vmem:[%s2382 + $0x48] sm:$0xff]
        %v2393 = vld [vmem:[%s2382 + $0x50] sm:$0xff]
        %v2394 = vld [vmem:[%s2382 + $0x58] sm:$0xff]
        %v2395 = vld [vmem:[%s2382 + $0x60] sm:$0xff]
        %v2396 = vld [vmem:[%s2382 + $0x68] sm:$0xff]
        %v2397 = vld [vmem:[%s2382 + $0x70] sm:$0xff]
        %v2398 = vld [vmem:[%s2382 + $0x78] sm:$0xff]
        %v2399 = vld [vmem:[%s2382 + $0x80] sm:$0xff]
        %v2400 = vld [vmem:[%s2382 + $0x88] sm:$0xff]
        %v2401 = vld [vmem:[%s2382 + $0x90] sm:$0xff]
        %v2402 = vld [vmem:[%s2382 + $0x98] sm:$0xff]
        %v2403 = vld [vmem:[%s2382 + $0xa0] sm:$0xff]
        %v2404 = vld [vmem:[%s2382 + $0xa8] sm:$0xff]
        %v2405 = vld [vmem:[%s2382 + $0xb0] sm:$0xff]
        %v2406 = vld [vmem:[%s2382 + $0xb8] sm:$0xff]
        %v2407 = vld [vmem:[%s2382 + $0xc0] sm:$0xff]
        %v2408 = vld [vmem:[%s2382 + $0xc8] sm:$0xff]
        %v2409 = vld [vmem:[%s2382 + $0xd0] sm:$0xff]
        %v2410 = vld [vmem:[%s2382 + $0xd8] sm:$0xff]
        %v2411 = vld [vmem:[%s2382 + $0xe0] sm:$0xff]
        %v2412 = vld [vmem:[%s2382 + $0xe8] sm:$0xff]
        %v2413 = vld [vmem:[%s2382 + $0xf0] sm:$0xff]
        %v2414 = vld [vmem:[%s2382 + $0xf8] sm:$0xff]
        %v2415 = vld [vmem:[%s2382 + $0x100] sm:$0xff]
        %v2416 = vld [vmem:[%s2382 + $0x108] sm:$0xff]
        %v2417 = vld [vmem:[%s2382 + $0x110] sm:$0xff]
        %v2418 = vld [vmem:[%s2382 + $0x118] sm:$0xff]
        %v2419 = vld [vmem:[%s2382 + $0x120] sm:$0xff]
        %v2420 = vld [vmem:[%s2382 + $0x128] sm:$0xff]
        %v2421 = vld [vmem:[%s2382 + $0x130] sm:$0xff]
        %v2422 = vld [vmem:[%s2382 + $0x138] sm:$0xff]
        %v2423 = vld [vmem:[%s2382 + $0x140] sm:$0xff]
        %v2424 = vld [vmem:[%s2382 + $0x148] sm:$0xff]
        %v2425 = vld [vmem:[%s2382 + $0x150] sm:$0xff]
        %v2426 = vld [vmem:[%s2382 + $0x158] sm:$0xff]
        %v2427 = vld [vmem:[%s2382 + $0x160] sm:$0xff]
        %v2428 = vld [vmem:[%s2382 + $0x168] sm:$0xff]
        %v2429 = vld [vmem:[%s2382 + $0x170] sm:$0xff]
        %v2430 = vld [vmem:[%s2382 + $0x178] sm:$0xff]
        %v2431 = vld [vmem:[%s2382 + $0x180] sm:$0xff]
        %v2432 = vld [vmem:[%s2382 + $0x188] sm:$0xff]
        %v2433 = vld [vmem:[%s2382 + $0x190] sm:$0xff]
        %v2434 = vld [vmem:[%s2382 + $0x198] sm:$0xff]
        %v2435 = vld [vmem:[%s2382 + $0x1a0] sm:$0xff]
        %v2436 = vld [vmem:[%s2382 + $0x1a8] sm:$0xff]
        %v2437 = vld [vmem:[%s2382 + $0x1b0] sm:$0xff]
        %v2438 = vld [vmem:[%s2382 + $0x1b8] sm:$0xff]
        %v2439 = vld [vmem:[%s2382 + $0x1c0] sm:$0xff]
        %v2440 = vld [vmem:[%s2382 + $0x1c8] sm:$0xff]
        %v2441 = vld [vmem:[%s2382 + $0x1d0] sm:$0xff]
        %v2442 = vld [vmem:[%s2382 + $0x1d8] sm:$0xff]
        %v2443 = vld [vmem:[%s2382 + $0x1e0] sm:$0xff]
        %v2444 = vld [vmem:[%s2382 + $0x1e8] sm:$0xff]
        %v2445 = vld [vmem:[%s2382 + $0x1f0] sm:$0xff]
        %v2446 = vld [vmem:[%s2382 + $0x1f8] sm:$0xff]
        %v2447 = vld [vmem:[%s2382 + $0x200] sm:$0xff]
        %v2448 = vld [vmem:[%s2382 + $0x208] sm:$0xff]
        %v2449 = vld [vmem:[%s2382 + $0x210] sm:$0xff]
        %v2450 = vld [vmem:[%s2382 + $0x218] sm:$0xff]
        %v2451 = vld [vmem:[%s2382 + $0x220] sm:$0xff]
        %v2452 = vld [vmem:[%s2382 + $0x228] sm:$0xff]
        %v2453 = vld [vmem:[%s2382 + $0x230] sm:$0xff]
        %v2454 = vld [vmem:[%s2382 + $0x238] sm:$0xff]
        %v2455 = vld [vmem:[%s2382 + $0x240] sm:$0xff]
        %v2456 = vld [vmem:[%s2382 + $0x248] sm:$0xff]
        %v2457 = vld [vmem:[%s2382 + $0x250] sm:$0xff]
        %v2458 = vld [vmem:[%s2382 + $0x258] sm:$0xff]
        %v2459 = vld [vmem:[%s2382 + $0x260] sm:$0xff]
        %v2460 = vld [vmem:[%s2382 + $0x268] sm:$0xff]
        %v2461 = vld [vmem:[%s2382 + $0x270] sm:$0xff]
        %v2462 = vld [vmem:[%s2382 + $0x278] sm:$0xff]
        %v2463 = vld [vmem:[%s2382 + $0x280] sm:$0xff]
        %v2464 = vld [vmem:[%s2382 + $0x288] sm:$0xff]
        %v2465 = vld [vmem:[%s2382 + $0x290] sm:$0xff]
        %v2466 = vld [vmem:[%s2382 + $0x298] sm:$0xff]
        %v2467 = vld [vmem:[%s2382 + $0x2a0] sm:$0xff]
        %v2468 = vld [vmem:[%s2382 + $0x2a8] sm:$0xff]
        %v2469 = vld [vmem:[%s2382 + $0x2b0] sm:$0xff]
        %v2470 = vld [vmem:[%s2382 + $0x2b8] sm:$0xff]
        %v2472 = vsel %vm1900, %v2374, 0
        %v2475 = vsel %vm1900, %v2379, 0
        %2477 = vmatprep.subr.mxu0 %v2414
        %2478 = vmatpush1.msra.mxu0 %v2413
        %2479 = vmatprep.subr.mxu0 %v2412
        %2480 = vmatpush1.msra.mxu0 %v2411
        %2481 = vmatprep.subr.mxu0 %v2410
        %2482 = vmatpush1.msra.mxu0 %v2409
        %2483 = vmatprep.subr.mxu0 %v2408
        %2484 = vmatpush1.msra.mxu0 %v2407
        %2485 = vmatprep.subr.mxu0 %v2406
        %2486 = vmatpush1.msra.mxu0 %v2405
        %2487 = vmatprep.subr.mxu0 %v2404
        %2488 = vmatpush1.msra.mxu0 %v2403
        %2489 = vmatprep.subr.mxu0 %v2402
        %2490 = vmatpush1.msra.mxu0 %v2401
        %2491 = vmatprep.subr.mxu0 %v2400
        %2492 = vmatpush1.msra.mxu0 %v2399
        %2493 = vmatprep.subr.mxu0 %v2398
        %2494 = vmatpush1.msra.mxu0 %v2397
        %2495 = vmatprep.subr.mxu0 %v2396
        %2496 = vmatpush1.msra.mxu0 %v2395
        %2497 = vmatprep.subr.mxu0 %v2394
        %2498 = vmatpush1.msra.mxu0 %v2393
        %2499 = vmatprep.subr.mxu0 %v2392
        %2500 = vmatpush1.msra.mxu0 %v2391
        %2501 = vmatprep.subr.mxu0 %v2390
        %2502 = vmatpush1.msra.mxu0 %v2389
        %2503 = vmatprep.subr.mxu0 %v2388
        %2504 = vmatpush1.msra.mxu0 %v2387
        %2505 = vmatprep.subr.mxu0 %v2386
        %2506 = vmatpush1.msra.mxu0 %v2385
        %2507 = vmatprep.subr.mxu0 %v2384
        %2508 = vmatpush1.msra.mxu0 %v2383
        %2509 = vmatprep.subr.mxu0 %v2446
        %2510 = vmatpush2.msra.mxu0 %v2445
        %2511 = vmatprep.subr.mxu0 %v2444
        %2512 = vmatpush2.msra.mxu0 %v2443
        %2513 = vmatprep.subr.mxu0 %v2442
        %2514 = vmatpush2.msra.mxu0 %v2441
        %2515 = vmatprep.subr.mxu0 %v2440
        %2516 = vmatpush2.msra.mxu0 %v2439
        %2517 = vmatprep.subr.mxu0 %v2438
        %2518 = vmatpush2.msra.mxu0 %v2437
        %2519 = vmatprep.subr.mxu0 %v2436
        %2520 = vmatpush2.msra.mxu0 %v2435
        %2521 = vmatprep.subr.mxu0 %v2434
        %2522 = vmatpush2.msra.mxu0 %v2433
        %2523 = vmatprep.subr.mxu0 %v2432
        %2524 = vmatpush2.msra.mxu0 %v2431
        %2525 = vmatprep.subr.mxu0 %v2430
        %2526 = vmatpush2.msra.mxu0 %v2429
        %2527 = vmatprep.subr.mxu0 %v2428
        %2528 = vmatpush2.msra.mxu0 %v2427
        %2529 = vmatprep.subr.mxu0 %v2426
        %2530 = vmatpush2.msra.mxu0 %v2425
        %2531 = vmatprep.subr.mxu0 %v2424
        %2532 = vmatpush2.msra.mxu0 %v2423
        %2533 = vmatprep.subr.mxu0 %v2422
        %2534 = vmatpush2.msra.mxu0 %v2421
        %2535 = vmatprep.subr.mxu0 %v2420
        %2536 = vmatpush2.msra.mxu0 %v2419
        %2537 = vmatprep.subr.mxu0 %v2418
        %2538 = vmatpush2.msra.mxu0 %v2417
        %2539 = vmatprep.subr.mxu0 %v2416
        %2540 = vmatpush2.msra.mxu0 %v2415
        %2541 = vmatprep.mubr.f32.mxu0 %v2299
        %2542 = vmatmul.mubr.f32.gmra.mxu0 %v2297
        %v2543 = vpop.f32.mrf.mxu0
        %v2544 = vadd.f32 0.0, %v2543
        %v2545 = vpop.f32.mrf.mxu0
        %v2546 = vadd.f32 0.0, %v2545
        %2547 = vmatprep.mubr.f32.mxu0 %v2305
        %2548 = vmatmul.mubr.f32.gmra.mxu0 %v2303
        %v2549 = vpop.f32.mrf.mxu0
        %v2550 = vadd.f32 0.0, %v2549
        %v2551 = vpop.f32.mrf.mxu0
        %v2552 = vadd.f32 0.0, %v2551
        %2553 = vdwg.mxu0
        %2554 = vmatprep.subr.mxu0 0.0
        %2555 = vmatpush1.msra.mxu0 0.0
        %2556 = vmatprep.subr.mxu0 0.0
        %2557 = vmatpush1.msra.mxu0 0.0
        %2558 = vmatprep.subr.mxu0 0.0
        %2559 = vmatpush1.msra.mxu0 0.0
        %2560 = vmatprep.subr.mxu0 0.0
        %2561 = vmatpush1.msra.mxu0 0.0
        %2562 = vmatprep.subr.mxu0 %v2470
        %2563 = vmatpush1.msra.mxu0 %v2469
        %2564 = vmatprep.subr.mxu0 %v2468
        %2565 = vmatpush1.msra.mxu0 %v2467
        %2566 = vmatprep.subr.mxu0 %v2466
        %2567 = vmatpush1.msra.mxu0 %v2465
        %2568 = vmatprep.subr.mxu0 %v2464
        %2569 = vmatpush1.msra.mxu0 %v2463
        %2570 = vmatprep.subr.mxu0 %v2462
        %2571 = vmatpush1.msra.mxu0 %v2461
        %2572 = vmatprep.subr.mxu0 %v2460
        %2573 = vmatpush1.msra.mxu0 %v2459
        %2574 = vmatprep.subr.mxu0 %v2458
        %2575 = vmatpush1.msra.mxu0 %v2457
        %2576 = vmatprep.subr.mxu0 %v2456
        %2577 = vmatpush1.msra.mxu0 %v2455
        %2578 = vmatprep.subr.mxu0 %v2454
        %2579 = vmatpush1.msra.mxu0 %v2453
        %2580 = vmatprep.subr.mxu0 %v2452
        %2581 = vmatpush1.msra.mxu0 %v2451
        %2582 = vmatprep.subr.mxu0 %v2450
        %2583 = vmatpush1.msra.mxu0 %v2449
        %2584 = vmatprep.subr.mxu0 %v2448
        %2585 = vmatpush1.msra.mxu0 %v2447
        %2586 = vmatprep.subr.mxu0 0.0
        %2587 = vmatpush2.msra.mxu0 0.0
        %2588 = vmatprep.subr.mxu0 0.0
        %2589 = vmatpush2.msra.mxu0 0.0
        %2590 = vmatprep.subr.mxu0 0.0
        %2591 = vmatpush2.msra.mxu0 0.0
        %2592 = vmatprep.subr.mxu0 0.0
        %2593 = vmatpush2.msra.mxu0 0.0
        %2594 = vmatprep.subr.mxu0 0.0
        %2595 = vmatpush2.msra.mxu0 0.0
        %2596 = vmatprep.subr.mxu0 0.0
        %2597 = vmatpush2.msra.mxu0 0.0
        %2598 = vmatprep.subr.mxu0 0.0
        %2599 = vmatpush2.msra.mxu0 0.0
        %2600 = vmatprep.subr.mxu0 0.0
        %2601 = vmatpush2.msra.mxu0 0.0
        %2602 = vmatprep.subr.mxu0 0.0
        %2603 = vmatpush2.msra.mxu0 0.0
        %2604 = vmatprep.subr.mxu0 0.0
        %2605 = vmatpush2.msra.mxu0 0.0
        %2606 = vmatprep.subr.mxu0 0.0
        %2607 = vmatpush2.msra.mxu0 0.0
        %2608 = vmatprep.subr.mxu0 0.0
        %2609 = vmatpush2.msra.mxu0 0.0
        %2610 = vmatprep.subr.mxu0 0.0
        %2611 = vmatpush2.msra.mxu0 0.0
        %2612 = vmatprep.subr.mxu0 0.0
        %2613 = vmatpush2.msra.mxu0 0.0
        %2614 = vmatprep.subr.mxu0 0.0
        %2615 = vmatpush2.msra.mxu0 0.0
        %2616 = vmatprep.subr.mxu0 0.0
        %2617 = vmatpush2.msra.mxu0 0.0
        %2618 = vmatprep.mubr.f32.mxu0 0.0
        %2619 = vmatmul.mubr.f32.gmra.mxu0 %v2472
        %v2620 = vpop.f32.mrf.mxu0
        %v2621 = vadd.f32 %v2544, %v2620
        %v2622 = vpop.f32.mrf.mxu0
        %v2623 = vadd.f32 %v2546, %v2622
        %2624 = vmatprep.mubr.f32.mxu0 0.0
        %2625 = vmatmul.mubr.f32.gmra.mxu0 %v2475
        %v2626 = vpop.f32.mrf.mxu0
        %v2627 = vadd.f32 %v2550, %v2626
        %v2628 = vpop.f32.mrf.mxu0
        %v2629 = vadd.f32 %v2552, %v2628
        %2630 = vdwg.mxu0
        %v2631 = vadd.f32 %v2211, %v2621
        %v2632 = vadd.f32 %v2213, %v2623
        %v2633 = vadd.f32 %v2217, %v2627
        %v2634 = vadd.f32 %v2219, %v2629
        %v2635 = vld [vmem:[%s6] sm:$0x3]
        %v2637 = vlaneseq
        %v2638 = vshrl.u32 %v2637, 7
        %v2639 = vsub.s32 0, %v2638
        %v2640 = vrot.slane %v2635, %v2639
        %v2641 = vlaneseq
        %v2642 = vshrl.u32 %v2641, 7
        %v2643 = vsub.s32 1, %v2642
        %v2644 = vrot.slane %v2635, %v2643
        %v2647 = vadd.f32 %v2631, %v2640
        %v2648 = vadd.f32 %v2632, %v2644
        %v2649 = vadd.f32 %v2633, %v2640
        %v2650 = vadd.f32 %v2634, %v2644
        %v2651 = vmax.f32 %v2647, 0.0
        %v2652 = vmax.f32 %v2648, 0.0
        %v2653 = vmax.f32 %v2649, 0.0
        %v2654 = vmax.f32 %v2650, 0.0
        %v2655 = vld [vmem:[%s7] sm:$0xf]
        %vm2656 = vcmask 80896
        %v2658 = vsel %vm2656, %v2655, 0
        %vm2660 = vcmask 1041408
        %v2662 = vsel %vm2660, %v2653, 0
        %v2665 = vsel %vm2660, %v2654, 0
        %2667 = vmatprep.subr.mxu0 0.0
        %2668 = vmatpush1.msra.mxu0 0.0
        %2669 = vmatprep.subr.mxu0 0.0
        %2670 = vmatpush1.msra.mxu0 0.0
        %2671 = vmatprep.subr.mxu0 0.0
        %2672 = vmatpush1.msra.mxu0 0.0
        %2673 = vmatprep.subr.mxu0 0.0
        %2674 = vmatpush1.msra.mxu0 0.0
        %2675 = vmatprep.subr.mxu0 0.0
        %2676 = vmatpush1.msra.mxu0 0.0
        %2677 = vmatprep.subr.mxu0 0.0
        %2678 = vmatpush1.msra.mxu0 0.0
        %2679 = vmatprep.subr.mxu0 0.0
        %2680 = vmatpush1.msra.mxu0 0.0
        %2681 = vmatprep.subr.mxu0 0.0
        %2682 = vmatpush1.msra.mxu0 0.0
        %2683 = vmatprep.subr.mxu0 0.0
        %2684 = vmatpush1.msra.mxu0 0.0
        %2685 = vmatprep.subr.mxu0 0.0
        %2686 = vmatpush1.msra.mxu0 0.0
        %2687 = vmatprep.subr.mxu0 0.0
        %2688 = vmatpush1.msra.mxu0 0.0
        %2689 = vmatprep.subr.mxu0 0.0
        %2690 = vmatpush1.msra.mxu0 0.0
        %2691 = vmatprep.subr.mxu0 0.0
        %2692 = vmatpush1.msra.mxu0 0.0
        %2693 = vmatprep.subr.mxu0 0.0
        %2694 = vmatpush1.msra.mxu0 0.0
        %2695 = vmatprep.subr.mxu0 %v2665
        %2696 = vmatpush1.msra.mxu0 %v2662
        %2697 = vmatprep.subr.mxu0 %v2652
        %2698 = vmatpush1.msra.mxu0 %v2651
        %2699 = vmatprep.subr.mxu0 0.0
        %2700 = vmatpush2.msra.mxu0 0.0
        %2701 = vmatprep.subr.mxu0 0.0
        %2702 = vmatpush2.msra.mxu0 0.0
        %2703 = vmatprep.subr.mxu0 0.0
        %2704 = vmatpush2.msra.mxu0 0.0
        %2705 = vmatprep.subr.mxu0 0.0
        %2706 = vmatpush2.msra.mxu0 0.0
        %2707 = vmatprep.subr.mxu0 0.0
        %2708 = vmatpush2.msra.mxu0 0.0
        %2709 = vmatprep.subr.mxu0 0.0
        %2710 = vmatpush2.msra.mxu0 0.0
        %2711 = vmatprep.subr.mxu0 0.0
        %2712 = vmatpush2.msra.mxu0 0.0
        %2713 = vmatprep.subr.mxu0 0.0
        %2714 = vmatpush2.msra.mxu0 0.0
        %2715 = vmatprep.subr.mxu0 0.0
        %2716 = vmatpush2.msra.mxu0 0.0
        %2717 = vmatprep.subr.mxu0 0.0
        %2718 = vmatpush2.msra.mxu0 0.0
        %2719 = vmatprep.subr.mxu0 0.0
        %2720 = vmatpush2.msra.mxu0 0.0
        %2721 = vmatprep.subr.mxu0 0.0
        %2722 = vmatpush2.msra.mxu0 0.0
        %2723 = vmatprep.subr.mxu0 0.0
        %2724 = vmatpush2.msra.mxu0 0.0
        %2725 = vmatprep.subr.mxu0 0.0
        %2726 = vmatpush2.msra.mxu0 0.0
        %2727 = vmatprep.subr.mxu0 0.0
        %2728 = vmatpush2.msra.mxu0 0.0
        %2729 = vmatprep.subr.mxu0 0.0
        %2730 = vmatpush2.msra.mxu0 0.0
        %2731 = vmatprep.mubr.f32.mxu0 0.0
        %2732 = vmatmul.mubr.f32.gmra.mxu0 %v2658
        %v2733 = vpop.f32.mrf.mxu0
        %v2734 = vadd.f32 0.0, %v2733
        %v2735 = vpop.f32.mrf.mxu0
        %v2736 = vadd.f32 0.0, %v2735
        %2737 = vdwg.mxu0
        %v2738 = vld [vmem:[%s8] sm:$0xff]
        %v2739 = vld [vmem:[%s8 + $0x8] sm:$0xff]
        %v2740 = vld [vmem:[%s8 + $0x10] sm:$0xff]
        %v2741 = vld [vmem:[%s8 + $0x18] sm:$0xff]
        %v2742 = vld [vmem:[%s8 + $0x20] sm:$0xff]
        %v2743 = vld [vmem:[%s8 + $0x28] sm:$0xff]
        %v2744 = vld [vmem:[%s8 + $0x30] sm:$0xff]
        %v2745 = vld [vmem:[%s8 + $0x38] sm:$0xff]
        %v2746 = vld [vmem:[%s8 + $0x40] sm:$0xff]
        %v2747 = vld [vmem:[%s8 + $0x48] sm:$0xff]
        %v2748 = vld [vmem:[%s8 + $0x50] sm:$0xff]
        %v2749 = vld [vmem:[%s8 + $0x58] sm:$0xff]
        %v2750 = vld [vmem:[%s8 + $0x60] sm:$0xff]
        %v2751 = vld [vmem:[%s8 + $0x68] sm:$0xff]
        %v2752 = vld [vmem:[%s8 + $0x70] sm:$0xff]
        %v2753 = vld [vmem:[%s8 + $0x78] sm:$0xff]
        %v2754 = vld [vmem:[%s8 + $0x80] sm:$0xff]
        %v2755 = vld [vmem:[%s8 + $0x88] sm:$0xff]
        %v2756 = vld [vmem:[%s8 + $0x90] sm:$0xff]
        %v2757 = vld [vmem:[%s8 + $0x98] sm:$0xff]
        %s2758 = scalar_lea.vmem %s7, 4
        %v2759 = vld [vmem:[%s2758] sm:$0xf]
        %v2761 = vsel %vm2656, %v2759, 0
        %2763 = vmatprep.subr.mxu0 0.0
        %2764 = vmatpush1.msra.mxu0 0.0
        %2765 = vmatprep.subr.mxu0 0.0
        %2766 = vmatpush1.msra.mxu0 0.0
        %2767 = vmatprep.subr.mxu0 0.0
        %2768 = vmatpush1.msra.mxu0 0.0
        %2769 = vmatprep.subr.mxu0 0.0
        %2770 = vmatpush1.msra.mxu0 0.0
        %2771 = vmatprep.subr.mxu0 0.0
        %2772 = vmatpush1.msra.mxu0 0.0
        %2773 = vmatprep.subr.mxu0 0.0
        %2774 = vmatpush1.msra.mxu0 0.0
        %2775 = vmatprep.subr.mxu0 0.0
        %2776 = vmatpush1.msra.mxu0 0.0
        %2777 = vmatprep.subr.mxu0 0.0
        %2778 = vmatpush1.msra.mxu0 0.0
        %2779 = vmatprep.subr.mxu0 0.0
        %2780 = vmatpush1.msra.mxu0 0.0
        %2781 = vmatprep.subr.mxu0 0.0
        %2782 = vmatpush1.msra.mxu0 0.0
        %2783 = vmatprep.subr.mxu0 0.0
        %2784 = vmatpush1.msra.mxu0 0.0
        %2785 = vmatprep.subr.mxu0 0.0
        %2786 = vmatpush1.msra.mxu0 0.0
        %2787 = vmatprep.subr.mxu0 0.0
        %2788 = vmatpush1.msra.mxu0 0.0
        %2789 = vmatprep.subr.mxu0 0.0
        %2790 = vmatpush1.msra.mxu0 0.0
        %2791 = vmatprep.subr.mxu0 %v2665
        %2792 = vmatpush1.msra.mxu0 %v2662
        %2793 = vmatprep.subr.mxu0 %v2652
        %2794 = vmatpush1.msra.mxu0 %v2651
        %2795 = vmatprep.subr.mxu0 0.0
        %2796 = vmatpush2.msra.mxu0 0.0
        %2797 = vmatprep.subr.mxu0 0.0
        %2798 = vmatpush2.msra.mxu0 0.0
        %2799 = vmatprep.subr.mxu0 0.0
        %2800 = vmatpush2.msra.mxu0 0.0
        %2801 = vmatprep.subr.mxu0 0.0
        %2802 = vmatpush2.msra.mxu0 0.0
        %2803 = vmatprep.subr.mxu0 0.0
        %2804 = vmatpush2.msra.mxu0 0.0
        %2805 = vmatprep.subr.mxu0 0.0
        %2806 = vmatpush2.msra.mxu0 0.0
        %2807 = vmatprep.subr.mxu0 0.0
        %2808 = vmatpush2.msra.mxu0 0.0
        %2809 = vmatprep.subr.mxu0 0.0
        %2810 = vmatpush2.msra.mxu0 0.0
        %2811 = vmatprep.subr.mxu0 0.0
        %2812 = vmatpush2.msra.mxu0 0.0
        %2813 = vmatprep.subr.mxu0 0.0
        %2814 = vmatpush2.msra.mxu0 0.0
        %2815 = vmatprep.subr.mxu0 0.0
        %2816 = vmatpush2.msra.mxu0 0.0
        %2817 = vmatprep.subr.mxu0 0.0
        %2818 = vmatpush2.msra.mxu0 0.0
        %2819 = vmatprep.subr.mxu0 0.0
        %2820 = vmatpush2.msra.mxu0 0.0
        %2821 = vmatprep.subr.mxu0 0.0
        %2822 = vmatpush2.msra.mxu0 0.0
        %2823 = vmatprep.subr.mxu0 0.0
        %2824 = vmatpush2.msra.mxu0 0.0
        %2825 = vmatprep.subr.mxu0 0.0
        %2826 = vmatpush2.msra.mxu0 0.0
        %2827 = vmatprep.mubr.f32.mxu0 0.0
        %2828 = vmatmul.mubr.f32.gmra.mxu0 %v2761
        %v2829 = vpop.f32.mrf.mxu0
        %v2830 = vadd.f32 0.0, %v2829
        %v2831 = vpop.f32.mrf.mxu0
        %v2832 = vadd.f32 0.0, %v2831
        %2833 = vdwg.mxu0
        %s2834 = scalar_lea.vmem %s8, 160
        %v2835 = vld [vmem:[%s2834] sm:$0xff]
        %v2836 = vld [vmem:[%s2834 + $0x8] sm:$0xff]
        %v2837 = vld [vmem:[%s2834 + $0x10] sm:$0xff]
        %v2838 = vld [vmem:[%s2834 + $0x18] sm:$0xff]
        %v2839 = vld [vmem:[%s2834 + $0x20] sm:$0xff]
        %v2840 = vld [vmem:[%s2834 + $0x28] sm:$0xff]
        %v2841 = vld [vmem:[%s2834 + $0x30] sm:$0xff]
        %v2842 = vld [vmem:[%s2834 + $0x38] sm:$0xff]
        %v2843 = vld [vmem:[%s2834 + $0x40] sm:$0xff]
        %v2844 = vld [vmem:[%s2834 + $0x48] sm:$0xff]
        %v2845 = vld [vmem:[%s2834 + $0x50] sm:$0xff]
        %v2846 = vld [vmem:[%s2834 + $0x58] sm:$0xff]
        %v2847 = vld [vmem:[%s2834 + $0x60] sm:$0xff]
        %v2848 = vld [vmem:[%s2834 + $0x68] sm:$0xff]
        %v2849 = vld [vmem:[%s2834 + $0x70] sm:$0xff]
        %v2850 = vld [vmem:[%s2834 + $0x78] sm:$0xff]
        %v2851 = vld [vmem:[%s2834 + $0x80] sm:$0xff]
        %v2852 = vld [vmem:[%s2834 + $0x88] sm:$0xff]
        %v2853 = vld [vmem:[%s2834 + $0x90] sm:$0xff]
        %v2854 = vld [vmem:[%s2834 + $0x98] sm:$0xff]
        %vm2855 = vcmask 261120
        %v2857 = vsel %vm2855, %v2832, 0
        %2859 = vmatprep.subr.mxu0 0.0
        %2860 = vmatpush1.msra.mxu0 %v2850
        %2861 = vmatprep.subr.mxu0 0.0
        %2862 = vmatpush1.msra.mxu0 %v2849
        %2863 = vmatprep.subr.mxu0 0.0
        %2864 = vmatpush1.msra.mxu0 %v2848
        %2865 = vmatprep.subr.mxu0 0.0
        %2866 = vmatpush1.msra.mxu0 %v2847
        %2867 = vmatprep.subr.mxu0 0.0
        %2868 = vmatpush1.msra.mxu0 %v2846
        %2869 = vmatprep.subr.mxu0 0.0
        %2870 = vmatpush1.msra.mxu0 %v2845
        %2871 = vmatprep.subr.mxu0 0.0
        %2872 = vmatpush1.msra.mxu0 %v2844
        %2873 = vmatprep.subr.mxu0 0.0
        %2874 = vmatpush1.msra.mxu0 %v2843
        %2875 = vmatprep.subr.mxu0 0.0
        %2876 = vmatpush1.msra.mxu0 %v2842
        %2877 = vmatprep.subr.mxu0 0.0
        %2878 = vmatpush1.msra.mxu0 %v2841
        %2879 = vmatprep.subr.mxu0 0.0
        %2880 = vmatpush1.msra.mxu0 %v2840
        %2881 = vmatprep.subr.mxu0 0.0
        %2882 = vmatpush1.msra.mxu0 %v2839
        %2883 = vmatprep.subr.mxu0 0.0
        %2884 = vmatpush1.msra.mxu0 %v2838
        %2885 = vmatprep.subr.mxu0 0.0
        %2886 = vmatpush1.msra.mxu0 %v2837
        %2887 = vmatprep.subr.mxu0 0.0
        %2888 = vmatpush1.msra.mxu0 %v2836
        %2889 = vmatprep.subr.mxu0 0.0
        %2890 = vmatpush1.msra.mxu0 %v2835
        %2891 = vmatprep.subr.mxu0 0.0
        %2892 = vmatpush2.msra.mxu0 0.0
        %2893 = vmatprep.subr.mxu0 0.0
        %2894 = vmatpush2.msra.mxu0 0.0
        %2895 = vmatprep.subr.mxu0 0.0
        %2896 = vmatpush2.msra.mxu0 0.0
        %2897 = vmatprep.subr.mxu0 0.0
        %2898 = vmatpush2.msra.mxu0 0.0
        %2899 = vmatprep.subr.mxu0 0.0
        %2900 = vmatpush2.msra.mxu0 0.0
        %2901 = vmatprep.subr.mxu0 0.0
        %2902 = vmatpush2.msra.mxu0 0.0
        %2903 = vmatprep.subr.mxu0 0.0
        %2904 = vmatpush2.msra.mxu0 0.0
        %2905 = vmatprep.subr.mxu0 0.0
        %2906 = vmatpush2.msra.mxu0 0.0
        %2907 = vmatprep.subr.mxu0 0.0
        %2908 = vmatpush2.msra.mxu0 0.0
        %2909 = vmatprep.subr.mxu0 0.0
        %2910 = vmatpush2.msra.mxu0 0.0
        %2911 = vmatprep.subr.mxu0 0.0
        %2912 = vmatpush2.msra.mxu0 0.0
        %2913 = vmatprep.subr.mxu0 0.0
        %2914 = vmatpush2.msra.mxu0 0.0
        %2915 = vmatprep.subr.mxu0 0.0
        %2916 = vmatpush2.msra.mxu0 %v2854
        %2917 = vmatprep.subr.mxu0 0.0
        %2918 = vmatpush2.msra.mxu0 %v2853
        %2919 = vmatprep.subr.mxu0 0.0
        %2920 = vmatpush2.msra.mxu0 %v2852
        %2921 = vmatprep.subr.mxu0 0.0
        %2922 = vmatpush2.msra.mxu0 %v2851
        %2923 = vmatprep.mubr.f32.mxu0 %v2857
        %2924 = vmatmul.mubr.f32.gmra.mxu0 %v2830
        %v2925 = vpop.f32.mrf.mxu0
        %v2926 = vadd.f32 0.0, %v2925
        %v2927 = vpop.f32.mrf.mxu0
        %2928 = vdwg.mxu0
        %v2930 = vsel %vm2855, %v2736, 0
        %2932 = vmatprep.subr.mxu0 0.0
        %2933 = vmatpush1.msra.mxu0 %v2753
        %2934 = vmatprep.subr.mxu0 0.0
        %2935 = vmatpush1.msra.mxu0 %v2752
        %2936 = vmatprep.subr.mxu0 0.0
        %2937 = vmatpush1.msra.mxu0 %v2751
        %2938 = vmatprep.subr.mxu0 0.0
        %2939 = vmatpush1.msra.mxu0 %v2750
        %2940 = vmatprep.subr.mxu0 0.0
        %2941 = vmatpush1.msra.mxu0 %v2749
        %2942 = vmatprep.subr.mxu0 0.0
        %2943 = vmatpush1.msra.mxu0 %v2748
        %2944 = vmatprep.subr.mxu0 0.0
        %2945 = vmatpush1.msra.mxu0 %v2747
        %2946 = vmatprep.subr.mxu0 0.0
        %2947 = vmatpush1.msra.mxu0 %v2746
        %2948 = vmatprep.subr.mxu0 0.0
        %2949 = vmatpush1.msra.mxu0 %v2745
        %2950 = vmatprep.subr.mxu0 0.0
        %2951 = vmatpush1.msra.mxu0 %v2744
        %2952 = vmatprep.subr.mxu0 0.0
        %2953 = vmatpush1.msra.mxu0 %v2743
        %2954 = vmatprep.subr.mxu0 0.0
        %2955 = vmatpush1.msra.mxu0 %v2742
        %2956 = vmatprep.subr.mxu0 0.0
        %2957 = vmatpush1.msra.mxu0 %v2741
        %2958 = vmatprep.subr.mxu0 0.0
        %2959 = vmatpush1.msra.mxu0 %v2740
        %2960 = vmatprep.subr.mxu0 0.0
        %2961 = vmatpush1.msra.mxu0 %v2739
        %2962 = vmatprep.subr.mxu0 0.0
        %2963 = vmatpush1.msra.mxu0 %v2738
        %2964 = vmatprep.subr.mxu0 0.0
        %2965 = vmatpush2.msra.mxu0 0.0
        %2966 = vmatprep.subr.mxu0 0.0
        %2967 = vmatpush2.msra.mxu0 0.0
        %2968 = vmatprep.subr.mxu0 0.0
        %2969 = vmatpush2.msra.mxu0 0.0
        %2970 = vmatprep.subr.mxu0 0.0
        %2971 = vmatpush2.msra.mxu0 0.0
        %2972 = vmatprep.subr.mxu0 0.0
        %2973 = vmatpush2.msra.mxu0 0.0
        %2974 = vmatprep.subr.mxu0 0.0
        %2975 = vmatpush2.msra.mxu0 0.0
        %2976 = vmatprep.subr.mxu0 0.0
        %2977 = vmatpush2.msra.mxu0 0.0
        %2978 = vmatprep.subr.mxu0 0.0
        %2979 = vmatpush2.msra.mxu0 0.0
        %2980 = vmatprep.subr.mxu0 0.0
        %2981 = vmatpush2.msra.mxu0 0.0
        %2982 = vmatprep.subr.mxu0 0.0
        %2983 = vmatpush2.msra.mxu0 0.0
        %2984 = vmatprep.subr.mxu0 0.0
        %2985 = vmatpush2.msra.mxu0 0.0
        %2986 = vmatprep.subr.mxu0 0.0
        %2987 = vmatpush2.msra.mxu0 0.0
        %2988 = vmatprep.subr.mxu0 0.0
        %2989 = vmatpush2.msra.mxu0 %v2757
        %2990 = vmatprep.subr.mxu0 0.0
        %2991 = vmatpush2.msra.mxu0 %v2756
        %2992 = vmatprep.subr.mxu0 0.0
        %2993 = vmatpush2.msra.mxu0 %v2755
        %2994 = vmatprep.subr.mxu0 0.0
        %2995 = vmatpush2.msra.mxu0 %v2754
        %2996 = vmatprep.mubr.f32.mxu0 %v2930
        %2997 = vmatmul.mubr.f32.gmra.mxu0 %v2734
        %v2998 = vpop.f32.mrf.mxu0
        %v2999 = vadd.f32 %v2926, %v2998
        %v3000 = vpop.f32.mrf.mxu0
        %3001 = vdwg.mxu0
        %s3002 = scalar_lea.vmem %s7, 8
        %v3003 = vld [vmem:[%s3002] sm:$0xf]
        %v3005 = vsel %vm2656, %v3003, 0
        %3007 = vmatprep.subr.mxu0 0.0
        %3008 = vmatpush1.msra.mxu0 0.0
        %3009 = vmatprep.subr.mxu0 0.0
        %3010 = vmatpush1.msra.mxu0 0.0
        %3011 = vmatprep.subr.mxu0 0.0
        %3012 = vmatpush1.msra.mxu0 0.0
        %3013 = vmatprep.subr.mxu0 0.0
        %3014 = vmatpush1.msra.mxu0 0.0
        %3015 = vmatprep.subr.mxu0 0.0
        %3016 = vmatpush1.msra.mxu0 0.0
        %3017 = vmatprep.subr.mxu0 0.0
        %3018 = vmatpush1.msra.mxu0 0.0
        %3019 = vmatprep.subr.mxu0 0.0
        %3020 = vmatpush1.msra.mxu0 0.0
        %3021 = vmatprep.subr.mxu0 0.0
        %3022 = vmatpush1.msra.mxu0 0.0
        %3023 = vmatprep.subr.mxu0 0.0
        %3024 = vmatpush1.msra.mxu0 0.0
        %3025 = vmatprep.subr.mxu0 0.0
        %3026 = vmatpush1.msra.mxu0 0.0
        %3027 = vmatprep.subr.mxu0 0.0
        %3028 = vmatpush1.msra.mxu0 0.0
        %3029 = vmatprep.subr.mxu0 0.0
        %3030 = vmatpush1.msra.mxu0 0.0
        %3031 = vmatprep.subr.mxu0 0.0
        %3032 = vmatpush1.msra.mxu0 0.0
        %3033 = vmatprep.subr.mxu0 0.0
        %3034 = vmatpush1.msra.mxu0 0.0
        %3035 = vmatprep.subr.mxu0 %v2665
        %3036 = vmatpush1.msra.mxu0 %v2662
        %3037 = vmatprep.subr.mxu0 %v2652
        %3038 = vmatpush1.msra.mxu0 %v2651
        %3039 = vmatprep.subr.mxu0 0.0
        %3040 = vmatpush2.msra.mxu0 0.0
        %3041 = vmatprep.subr.mxu0 0.0
        %3042 = vmatpush2.msra.mxu0 0.0
        %3043 = vmatprep.subr.mxu0 0.0
        %3044 = vmatpush2.msra.mxu0 0.0
        %3045 = vmatprep.subr.mxu0 0.0
        %3046 = vmatpush2.msra.mxu0 0.0
        %3047 = vmatprep.subr.mxu0 0.0
        %3048 = vmatpush2.msra.mxu0 0.0
        %3049 = vmatprep.subr.mxu0 0.0
        %3050 = vmatpush2.msra.mxu0 0.0
        %3051 = vmatprep.subr.mxu0 0.0
        %3052 = vmatpush2.msra.mxu0 0.0
        %3053 = vmatprep.subr.mxu0 0.0
        %3054 = vmatpush2.msra.mxu0 0.0
        %3055 = vmatprep.subr.mxu0 0.0
        %3056 = vmatpush2.msra.mxu0 0.0
        %3057 = vmatprep.subr.mxu0 0.0
        %3058 = vmatpush2.msra.mxu0 0.0
        %3059 = vmatprep.subr.mxu0 0.0
        %3060 = vmatpush2.msra.mxu0 0.0
        %3061 = vmatprep.subr.mxu0 0.0
        %3062 = vmatpush2.msra.mxu0 0.0
        %3063 = vmatprep.subr.mxu0 0.0
        %3064 = vmatpush2.msra.mxu0 0.0
        %3065 = vmatprep.subr.mxu0 0.0
        %3066 = vmatpush2.msra.mxu0 0.0
        %3067 = vmatprep.subr.mxu0 0.0
        %3068 = vmatpush2.msra.mxu0 0.0
        %3069 = vmatprep.subr.mxu0 0.0
        %3070 = vmatpush2.msra.mxu0 0.0
        %3071 = vmatprep.mubr.f32.mxu0 0.0
        %3072 = vmatmul.mubr.f32.gmra.mxu0 %v3005
        %v3073 = vpop.f32.mrf.mxu0
        %v3074 = vadd.f32 0.0, %v3073
        %v3075 = vpop.f32.mrf.mxu0
        %v3076 = vadd.f32 0.0, %v3075
        %3077 = vdwg.mxu0
        %s3078 = scalar_lea.vmem %s8, 320
        %v3079 = vld [vmem:[%s3078] sm:$0xff]
        %v3080 = vld [vmem:[%s3078 + $0x8] sm:$0xff]
        %v3081 = vld [vmem:[%s3078 + $0x10] sm:$0xff]
        %v3082 = vld [vmem:[%s3078 + $0x18] sm:$0xff]
        %v3083 = vld [vmem:[%s3078 + $0x20] sm:$0xff]
        %v3084 = vld [vmem:[%s3078 + $0x28] sm:$0xff]
        %v3085 = vld [vmem:[%s3078 + $0x30] sm:$0xff]
        %v3086 = vld [vmem:[%s3078 + $0x38] sm:$0xff]
        %v3087 = vld [vmem:[%s3078 + $0x40] sm:$0xff]
        %v3088 = vld [vmem:[%s3078 + $0x48] sm:$0xff]
        %v3089 = vld [vmem:[%s3078 + $0x50] sm:$0xff]
        %v3090 = vld [vmem:[%s3078 + $0x58] sm:$0xff]
        %v3091 = vld [vmem:[%s3078 + $0x60] sm:$0xff]
        %v3092 = vld [vmem:[%s3078 + $0x68] sm:$0xff]
        %v3093 = vld [vmem:[%s3078 + $0x70] sm:$0xff]
        %v3094 = vld [vmem:[%s3078 + $0x78] sm:$0xff]
        %v3095 = vld [vmem:[%s3078 + $0x80] sm:$0xff]
        %v3096 = vld [vmem:[%s3078 + $0x88] sm:$0xff]
        %v3097 = vld [vmem:[%s3078 + $0x90] sm:$0xff]
        %v3098 = vld [vmem:[%s3078 + $0x98] sm:$0xff]
        %v3100 = vsel %vm2855, %v3076, 0
        %3102 = vmatprep.subr.mxu0 0.0
        %3103 = vmatpush1.msra.mxu0 %v3094
        %3104 = vmatprep.subr.mxu0 0.0
        %3105 = vmatpush1.msra.mxu0 %v3093
        %3106 = vmatprep.subr.mxu0 0.0
        %3107 = vmatpush1.msra.mxu0 %v3092
        %3108 = vmatprep.subr.mxu0 0.0
        %3109 = vmatpush1.msra.mxu0 %v3091
        %3110 = vmatprep.subr.mxu0 0.0
        %3111 = vmatpush1.msra.mxu0 %v3090
        %3112 = vmatprep.subr.mxu0 0.0
        %3113 = vmatpush1.msra.mxu0 %v3089
        %3114 = vmatprep.subr.mxu0 0.0
        %3115 = vmatpush1.msra.mxu0 %v3088
        %3116 = vmatprep.subr.mxu0 0.0
        %3117 = vmatpush1.msra.mxu0 %v3087
        %3118 = vmatprep.subr.mxu0 0.0
        %3119 = vmatpush1.msra.mxu0 %v3086
        %3120 = vmatprep.subr.mxu0 0.0
        %3121 = vmatpush1.msra.mxu0 %v3085
        %3122 = vmatprep.subr.mxu0 0.0
        %3123 = vmatpush1.msra.mxu0 %v3084
        %3124 = vmatprep.subr.mxu0 0.0
        %3125 = vmatpush1.msra.mxu0 %v3083
        %3126 = vmatprep.subr.mxu0 0.0
        %3127 = vmatpush1.msra.mxu0 %v3082
        %3128 = vmatprep.subr.mxu0 0.0
        %3129 = vmatpush1.msra.mxu0 %v3081
        %3130 = vmatprep.subr.mxu0 0.0
        %3131 = vmatpush1.msra.mxu0 %v3080
        %3132 = vmatprep.subr.mxu0 0.0
        %3133 = vmatpush1.msra.mxu0 %v3079
        %3134 = vmatprep.subr.mxu0 0.0
        %3135 = vmatpush2.msra.mxu0 0.0
        %3136 = vmatprep.subr.mxu0 0.0
        %3137 = vmatpush2.msra.mxu0 0.0
        %3138 = vmatprep.subr.mxu0 0.0
        %3139 = vmatpush2.msra.mxu0 0.0
        %3140 = vmatprep.subr.mxu0 0.0
        %3141 = vmatpush2.msra.mxu0 0.0
        %3142 = vmatprep.subr.mxu0 0.0
        %3143 = vmatpush2.msra.mxu0 0.0
        %3144 = vmatprep.subr.mxu0 0.0
        %3145 = vmatpush2.msra.mxu0 0.0
        %3146 = vmatprep.subr.mxu0 0.0
        %3147 = vmatpush2.msra.mxu0 0.0
        %3148 = vmatprep.subr.mxu0 0.0
        %3149 = vmatpush2.msra.mxu0 0.0
        %3150 = vmatprep.subr.mxu0 0.0
        %3151 = vmatpush2.msra.mxu0 0.0
        %3152 = vmatprep.subr.mxu0 0.0
        %3153 = vmatpush2.msra.mxu0 0.0
        %3154 = vmatprep.subr.mxu0 0.0
        %3155 = vmatpush2.msra.mxu0 0.0
        %3156 = vmatprep.subr.mxu0 0.0
        %3157 = vmatpush2.msra.mxu0 0.0
        %3158 = vmatprep.subr.mxu0 0.0
        %3159 = vmatpush2.msra.mxu0 %v3098
        %3160 = vmatprep.subr.mxu0 0.0
        %3161 = vmatpush2.msra.mxu0 %v3097
        %3162 = vmatprep.subr.mxu0 0.0
        %3163 = vmatpush2.msra.mxu0 %v3096
        %3164 = vmatprep.subr.mxu0 0.0
        %3165 = vmatpush2.msra.mxu0 %v3095
        %3166 = vmatprep.mubr.f32.mxu0 %v3100
        %3167 = vmatmul.mubr.f32.gmra.mxu0 %v3074
        %v3168 = vpop.f32.mrf.mxu0
        %v3169 = vadd.f32 0.0, %v3168
        %v3170 = vpop.f32.mrf.mxu0
        %3171 = vdwg.mxu0
        %v3172 = vadd.f32 %v2999, %v3169
        %v3173 = vld [vmem:[%s9] sm:$0x1]
        %v3175 = vlaneseq
        %v3176 = vshrl.u32 %v3175, 7
        %v3177 = vsub.s32 0, %v3176
        %v3178 = vrot.slane %v3173, %v3177
        %v3180 = vadd.f32 %v3172, %v3178
        %v3181 = vmax.f32 %v3180, 0.0
        %v3182 = vld [vmem:[%s11] sm:$0x1]
        %v3183 = vld [vmem:[%s10] sm:$0xff]
        %v3184 = vld [vmem:[%s10 + $0x8] sm:$0xff]
        %v3185 = vld [vmem:[%s10 + $0x10] sm:$0xff]
        %v3186 = vld [vmem:[%s10 + $0x18] sm:$0xff]
        %v3187 = vld [vmem:[%s10 + $0x20] sm:$0xff]
        %vm3188 = vcmask 326656
        %v3190 = vsel %vm3188, %v3181, 0
        %3192 = vmatprep.subr.mxu0 0.0
        %3193 = vmatpush1.msra.mxu0 0.0
        %3194 = vmatprep.subr.mxu0 0.0
        %3195 = vmatpush1.msra.mxu0 0.0
        %3196 = vmatprep.subr.mxu0 0.0
        %3197 = vmatpush1.msra.mxu0 0.0
        %3198 = vmatprep.subr.mxu0 0.0
        %3199 = vmatpush1.msra.mxu0 0.0
        %3200 = vmatprep.subr.mxu0 0.0
        %3201 = vmatpush1.msra.mxu0 0.0
        %3202 = vmatprep.subr.mxu0 0.0
        %3203 = vmatpush1.msra.mxu0 0.0
        %3204 = vmatprep.subr.mxu0 0.0
        %3205 = vmatpush1.msra.mxu0 0.0
        %3206 = vmatprep.subr.mxu0 0.0
        %3207 = vmatpush1.msra.mxu0 0.0
        %3208 = vmatprep.subr.mxu0 0.0
        %3209 = vmatpush1.msra.mxu0 0.0
        %3210 = vmatprep.subr.mxu0 0.0
        %3211 = vmatpush1.msra.mxu0 0.0
        %3212 = vmatprep.subr.mxu0 0.0
        %3213 = vmatpush1.msra.mxu0 0.0
        %3214 = vmatprep.subr.mxu0 0.0
        %3215 = vmatpush1.msra.mxu0 %v3187
        %3216 = vmatprep.subr.mxu0 0.0
        %3217 = vmatpush1.msra.mxu0 %v3186
        %3218 = vmatprep.subr.mxu0 0.0
        %3219 = vmatpush1.msra.mxu0 %v3185
        %3220 = vmatprep.subr.mxu0 0.0
        %3221 = vmatpush1.msra.mxu0 %v3184
        %3222 = vmatprep.subr.mxu0 0.0
        %3223 = vmatpush1.msra.mxu0 %v3183
        %3224 = vmatprep.subr.mxu0 0.0
        %3225 = vmatpush2.msra.mxu0 0.0
        %3226 = vmatprep.subr.mxu0 0.0
        %3227 = vmatpush2.msra.mxu0 0.0
        %3228 = vmatprep.subr.mxu0 0.0
        %3229 = vmatpush2.msra.mxu0 0.0
        %3230 = vmatprep.subr.mxu0 0.0
        %3231 = vmatpush2.msra.mxu0 0.0
        %3232 = vmatprep.subr.mxu0 0.0
        %3233 = vmatpush2.msra.mxu0 0.0
        %3234 = vmatprep.subr.mxu0 0.0
        %3235 = vmatpush2.msra.mxu0 0.0
        %3236 = vmatprep.subr.mxu0 0.0
        %3237 = vmatpush2.msra.mxu0 0.0
        %3238 = vmatprep.subr.mxu0 0.0
        %3239 = vmatpush2.msra.mxu0 0.0
        %3240 = vmatprep.subr.mxu0 0.0
        %3241 = vmatpush2.msra.mxu0 0.0
        %3242 = vmatprep.subr.mxu0 0.0
        %3243 = vmatpush2.msra.mxu0 0.0
        %3244 = vmatprep.subr.mxu0 0.0
        %3245 = vmatpush2.msra.mxu0 0.0
        %3246 = vmatprep.subr.mxu0 0.0
        %3247 = vmatpush2.msra.mxu0 0.0
        %3248 = vmatprep.subr.mxu0 0.0
        %3249 = vmatpush2.msra.mxu0 0.0
        %3250 = vmatprep.subr.mxu0 0.0
        %3251 = vmatpush2.msra.mxu0 0.0
        %3252 = vmatprep.subr.mxu0 0.0
        %3253 = vmatpush2.msra.mxu0 0.0
        %3254 = vmatprep.subr.mxu0 0.0
        %3255 = vmatpush2.msra.mxu0 0.0
        %3256 = vmatprep.mubr.f32.mxu0 0.0
        %3257 = vmatmul.mubr.f32.gmra.mxu0 %v3190
        %v3258 = vpop.f32.mrf.mxu0
        %v3259 = vadd.f32 0.0, %v3258
        %v3260 = vpop.f32.mrf.mxu0
        %3261 = vdwg.mxu0
        %v3262 = vadd.f32 %v3182, %v3259
        %s3263 = scalar_lea.vmem %s10, 40
        %v3264 = vld [vmem:[%s3263] sm:$0xff]
        %v3265 = vld [vmem:[%s3263 + $0x8] sm:$0xff]
        %v3266 = vld [vmem:[%s3263 + $0x10] sm:$0xff]
        %v3267 = vld [vmem:[%s3263 + $0x18] sm:$0xff]
        %v3268 = vld [vmem:[%s3263 + $0x20] sm:$0xff]
        %v3269 = vrot.slane %v3181, 1
        %v3270 = vsel %vm3188, %v3269, 0
        %3272 = vmatprep.subr.mxu0 0.0
        %3273 = vmatpush1.msra.mxu0 0.0
        %3274 = vmatprep.subr.mxu0 0.0
        %3275 = vmatpush1.msra.mxu0 0.0
        %3276 = vmatprep.subr.mxu0 0.0
        %3277 = vmatpush1.msra.mxu0 0.0
        %3278 = vmatprep.subr.mxu0 0.0
        %3279 = vmatpush1.msra.mxu0 0.0
        %3280 = vmatprep.subr.mxu0 0.0
        %3281 = vmatpush1.msra.mxu0 0.0
        %3282 = vmatprep.subr.mxu0 0.0
        %3283 = vmatpush1.msra.mxu0 0.0
        %3284 = vmatprep.subr.mxu0 0.0
        %3285 = vmatpush1.msra.mxu0 0.0
        %3286 = vmatprep.subr.mxu0 0.0
        %3287 = vmatpush1.msra.mxu0 0.0
        %3288 = vmatprep.subr.mxu0 0.0
        %3289 = vmatpush1.msra.mxu0 0.0
        %3290 = vmatprep.subr.mxu0 0.0
        %3291 = vmatpush1.msra.mxu0 0.0
        %3292 = vmatprep.subr.mxu0 0.0
        %3293 = vmatpush1.msra.mxu0 0.0
        %3294 = vmatprep.subr.mxu0 0.0
        %3295 = vmatpush1.msra.mxu0 %v3268
        %3296 = vmatprep.subr.mxu0 0.0
        %3297 = vmatpush1.msra.mxu0 %v3267
        %3298 = vmatprep.subr.mxu0 0.0
        %3299 = vmatpush1.msra.mxu0 %v3266
        %3300 = vmatprep.subr.mxu0 0.0
        %3301 = vmatpush1.msra.mxu0 %v3265
        %3302 = vmatprep.subr.mxu0 0.0
        %3303 = vmatpush1.msra.mxu0 %v3264
        %3304 = vmatprep.subr.mxu0 0.0
        %3305 = vmatpush2.msra.mxu0 0.0
        %3306 = vmatprep.subr.mxu0 0.0
        %3307 = vmatpush2.msra.mxu0 0.0
        %3308 = vmatprep.subr.mxu0 0.0
        %3309 = vmatpush2.msra.mxu0 0.0
        %3310 = vmatprep.subr.mxu0 0.0
        %3311 = vmatpush2.msra.mxu0 0.0
        %3312 = vmatprep.subr.mxu0 0.0
        %3313 = vmatpush2.msra.mxu0 0.0
        %3314 = vmatprep.subr.mxu0 0.0
        %3315 = vmatpush2.msra.mxu0 0.0
        %3316 = vmatprep.subr.mxu0 0.0
        %3317 = vmatpush2.msra.mxu0 0.0
        %3318 = vmatprep.subr.mxu0 0.0
        %3319 = vmatpush2.msra.mxu0 0.0
        %3320 = vmatprep.subr.mxu0 0.0
        %3321 = vmatpush2.msra.mxu0 0.0
        %3322 = vmatprep.subr.mxu0 0.0
        %3323 = vmatpush2.msra.mxu0 0.0
        %3324 = vmatprep.subr.mxu0 0.0
        %3325 = vmatpush2.msra.mxu0 0.0
        %3326 = vmatprep.subr.mxu0 0.0
        %3327 = vmatpush2.msra.mxu0 0.0
        %3328 = vmatprep.subr.mxu0 0.0
        %3329 = vmatpush2.msra.mxu0 0.0
        %3330 = vmatprep.subr.mxu0 0.0
        %3331 = vmatpush2.msra.mxu0 0.0
        %3332 = vmatprep.subr.mxu0 0.0
        %3333 = vmatpush2.msra.mxu0 0.0
        %3334 = vmatprep.subr.mxu0 0.0
        %3335 = vmatpush2.msra.mxu0 0.0
        %3336 = vmatprep.mubr.f32.mxu0 0.0
        %3337 = vmatmul.mubr.f32.gmra.mxu0 %v3270
        %v3338 = vpop.f32.mrf.mxu0
        %v3339 = vadd.f32 0.0, %v3338
        %v3340 = vpop.f32.mrf.mxu0
        %3341 = vdwg.mxu0
        %v3342 = vadd.f32 %v3262, %v3339
        %s3343 = scalar_lea.vmem %s10, 80
        %v3344 = vld [vmem:[%s3343] sm:$0xff]
        %v3345 = vld [vmem:[%s3343 + $0x8] sm:$0xff]
        %v3346 = vld [vmem:[%s3343 + $0x10] sm:$0xff]
        %v3347 = vld [vmem:[%s3343 + $0x18] sm:$0xff]
        %v3348 = vld [vmem:[%s3343 + $0x20] sm:$0xff]
        %v3349 = vrot.slane %v3181, 2
        %v3350 = vsel %vm3188, %v3349, 0
        %3352 = vmatprep.subr.mxu0 0.0
        %3353 = vmatpush1.msra.mxu0 0.0
        %3354 = vmatprep.subr.mxu0 0.0
        %3355 = vmatpush1.msra.mxu0 0.0
        %3356 = vmatprep.subr.mxu0 0.0
        %3357 = vmatpush1.msra.mxu0 0.0
        %3358 = vmatprep.subr.mxu0 0.0
        %3359 = vmatpush1.msra.mxu0 0.0
        %3360 = vmatprep.subr.mxu0 0.0
        %3361 = vmatpush1.msra.mxu0 0.0
        %3362 = vmatprep.subr.mxu0 0.0
        %3363 = vmatpush1.msra.mxu0 0.0
        %3364 = vmatprep.subr.mxu0 0.0
        %3365 = vmatpush1.msra.mxu0 0.0
        %3366 = vmatprep.subr.mxu0 0.0
        %3367 = vmatpush1.msra.mxu0 0.0
        %3368 = vmatprep.subr.mxu0 0.0
        %3369 = vmatpush1.msra.mxu0 0.0
        %3370 = vmatprep.subr.mxu0 0.0
        %3371 = vmatpush1.msra.mxu0 0.0
        %3372 = vmatprep.subr.mxu0 0.0
        %3373 = vmatpush1.msra.mxu0 0.0
        %3374 = vmatprep.subr.mxu0 0.0
        %3375 = vmatpush1.msra.mxu0 %v3348
        %3376 = vmatprep.subr.mxu0 0.0
        %3377 = vmatpush1.msra.mxu0 %v3347
        %3378 = vmatprep.subr.mxu0 0.0
        %3379 = vmatpush1.msra.mxu0 %v3346
        %3380 = vmatprep.subr.mxu0 0.0
        %3381 = vmatpush1.msra.mxu0 %v3345
        %3382 = vmatprep.subr.mxu0 0.0
        %3383 = vmatpush1.msra.mxu0 %v3344
        %3384 = vmatprep.subr.mxu0 0.0
        %3385 = vmatpush2.msra.mxu0 0.0
        %3386 = vmatprep.subr.mxu0 0.0
        %3387 = vmatpush2.msra.mxu0 0.0
        %3388 = vmatprep.subr.mxu0 0.0
        %3389 = vmatpush2.msra.mxu0 0.0
        %3390 = vmatprep.subr.mxu0 0.0
        %3391 = vmatpush2.msra.mxu0 0.0
        %3392 = vmatprep.subr.mxu0 0.0
        %3393 = vmatpush2.msra.mxu0 0.0
        %3394 = vmatprep.subr.mxu0 0.0
        %3395 = vmatpush2.msra.mxu0 0.0
        %3396 = vmatprep.subr.mxu0 0.0
        %3397 = vmatpush2.msra.mxu0 0.0
        %3398 = vmatprep.subr.mxu0 0.0
        %3399 = vmatpush2.msra.mxu0 0.0
        %3400 = vmatprep.subr.mxu0 0.0
        %3401 = vmatpush2.msra.mxu0 0.0
        %3402 = vmatprep.subr.mxu0 0.0
        %3403 = vmatpush2.msra.mxu0 0.0
        %3404 = vmatprep.subr.mxu0 0.0
        %3405 = vmatpush2.msra.mxu0 0.0
        %3406 = vmatprep.subr.mxu0 0.0
        %3407 = vmatpush2.msra.mxu0 0.0
        %3408 = vmatprep.subr.mxu0 0.0
        %3409 = vmatpush2.msra.mxu0 0.0
        %3410 = vmatprep.subr.mxu0 0.0
        %3411 = vmatpush2.msra.mxu0 0.0
        %3412 = vmatprep.subr.mxu0 0.0
        %3413 = vmatpush2.msra.mxu0 0.0
        %3414 = vmatprep.subr.mxu0 0.0
        %3415 = vmatpush2.msra.mxu0 0.0
        %3416 = vmatprep.mubr.f32.mxu0 0.0
        %3417 = vmatmul.mubr.f32.gmra.mxu0 %v3350
        %v3418 = vpop.f32.mrf.mxu0
        %v3419 = vadd.f32 0.0, %v3418
        %v3420 = vpop.f32.mrf.mxu0
        %3421 = vdwg.mxu0
        %v3422 = vadd.f32 %v3342, %v3419
        %s3423 = scalar_lea.vmem %s10, 120
        %v3424 = vld [vmem:[%s3423] sm:$0xff]
        %v3425 = vld [vmem:[%s3423 + $0x8] sm:$0xff]
        %v3426 = vld [vmem:[%s3423 + $0x10] sm:$0xff]
        %v3427 = vld [vmem:[%s3423 + $0x18] sm:$0xff]
        %v3428 = vld [vmem:[%s3423 + $0x20] sm:$0xff]
        %v3429 = vrot.slane %v3181, 3
        %v3430 = vsel %vm3188, %v3429, 0
        %3432 = vmatprep.subr.mxu0 0.0
        %3433 = vmatpush1.msra.mxu0 0.0
        %3434 = vmatprep.subr.mxu0 0.0
        %3435 = vmatpush1.msra.mxu0 0.0
        %3436 = vmatprep.subr.mxu0 0.0
        %3437 = vmatpush1.msra.mxu0 0.0
        %3438 = vmatprep.subr.mxu0 0.0
        %3439 = vmatpush1.msra.mxu0 0.0
        %3440 = vmatprep.subr.mxu0 0.0
        %3441 = vmatpush1.msra.mxu0 0.0
        %3442 = vmatprep.subr.mxu0 0.0
        %3443 = vmatpush1.msra.mxu0 0.0
        %3444 = vmatprep.subr.mxu0 0.0
        %3445 = vmatpush1.msra.mxu0 0.0
        %3446 = vmatprep.subr.mxu0 0.0
        %3447 = vmatpush1.msra.mxu0 0.0
        %3448 = vmatprep.subr.mxu0 0.0
        %3449 = vmatpush1.msra.mxu0 0.0
        %3450 = vmatprep.subr.mxu0 0.0
        %3451 = vmatpush1.msra.mxu0 0.0
        %3452 = vmatprep.subr.mxu0 0.0
        %3453 = vmatpush1.msra.mxu0 0.0
        %3454 = vmatprep.subr.mxu0 0.0
        %3455 = vmatpush1.msra.mxu0 %v3428
        %3456 = vmatprep.subr.mxu0 0.0
        %3457 = vmatpush1.msra.mxu0 %v3427
        %3458 = vmatprep.subr.mxu0 0.0
        %3459 = vmatpush1.msra.mxu0 %v3426
        %3460 = vmatprep.subr.mxu0 0.0
        %3461 = vmatpush1.msra.mxu0 %v3425
        %3462 = vmatprep.subr.mxu0 0.0
        %3463 = vmatpush1.msra.mxu0 %v3424
        %3464 = vmatprep.subr.mxu0 0.0
        %3465 = vmatpush2.msra.mxu0 0.0
        %3466 = vmatprep.subr.mxu0 0.0
        %3467 = vmatpush2.msra.mxu0 0.0
        %3468 = vmatprep.subr.mxu0 0.0
        %3469 = vmatpush2.msra.mxu0 0.0
        %3470 = vmatprep.subr.mxu0 0.0
        %3471 = vmatpush2.msra.mxu0 0.0
        %3472 = vmatprep.subr.mxu0 0.0
        %3473 = vmatpush2.msra.mxu0 0.0
        %3474 = vmatprep.subr.mxu0 0.0
        %3475 = vmatpush2.msra.mxu0 0.0
        %3476 = vmatprep.subr.mxu0 0.0
        %3477 = vmatpush2.msra.mxu0 0.0
        %3478 = vmatprep.subr.mxu0 0.0
        %3479 = vmatpush2.msra.mxu0 0.0
        %3480 = vmatprep.subr.mxu0 0.0
        %3481 = vmatpush2.msra.mxu0 0.0
        %3482 = vmatprep.subr.mxu0 0.0
        %3483 = vmatpush2.msra.mxu0 0.0
        %3484 = vmatprep.subr.mxu0 0.0
        %3485 = vmatpush2.msra.mxu0 0.0
        %3486 = vmatprep.subr.mxu0 0.0
        %3487 = vmatpush2.msra.mxu0 0.0
        %3488 = vmatprep.subr.mxu0 0.0
        %3489 = vmatpush2.msra.mxu0 0.0
        %3490 = vmatprep.subr.mxu0 0.0
        %3491 = vmatpush2.msra.mxu0 0.0
        %3492 = vmatprep.subr.mxu0 0.0
        %3493 = vmatpush2.msra.mxu0 0.0
        %3494 = vmatprep.subr.mxu0 0.0
        %3495 = vmatpush2.msra.mxu0 0.0
        %3496 = vmatprep.mubr.f32.mxu0 0.0
        %3497 = vmatmul.mubr.f32.gmra.mxu0 %v3430
        %v3498 = vpop.f32.mrf.mxu0
        %v3499 = vadd.f32 0.0, %v3498
        %v3500 = vpop.f32.mrf.mxu0
        %3501 = vdwg.mxu0
        %v3502 = vadd.f32 %v3422, %v3499
        %v3503 = vmax.f32 %v3502, 0.0
        %v3504 = vld [vmem:[%s12] sm:$0xff]
        %v3505 = vld [vmem:[%s12 + $0x8] sm:$0xff]
        %v3506 = vld [vmem:[%s12 + $0x10] sm:$0xff]
        %v3507 = vld [vmem:[%s12 + $0x18] sm:$0xff]
        %v3508 = vld [vmem:[%s12 + $0x20] sm:$0xff]
        %v3509 = vld [vmem:[%s12 + $0x28] sm:$0xff]
        %v3510 = vld [vmem:[%s12 + $0x30] sm:$0xff]
        %v3511 = vld [vmem:[%s12 + $0x38] sm:$0xff]
        %v3512 = vld [vmem:[%s13] sm:$0x1]
        %vm3513 = vcmask 523264
        %v3515 = vsel %vm3513, %v3503, 0
        %3517 = vmatprep.subr.mxu0 0.0
        %3518 = vmatpush1.msra.mxu0 0.0
        %3519 = vmatprep.subr.mxu0 0.0
        %3520 = vmatpush1.msra.mxu0 0.0
        %3521 = vmatprep.subr.mxu0 0.0
        %3522 = vmatpush1.msra.mxu0 0.0
        %3523 = vmatprep.subr.mxu0 0.0
        %3524 = vmatpush1.msra.mxu0 0.0
        %3525 = vmatprep.subr.mxu0 0.0
        %3526 = vmatpush1.msra.mxu0 0.0
        %3527 = vmatprep.subr.mxu0 0.0
        %3528 = vmatpush1.msra.mxu0 0.0
        %3529 = vmatprep.subr.mxu0 0.0
        %3530 = vmatpush1.msra.mxu0 0.0
        %3531 = vmatprep.subr.mxu0 0.0
        %3532 = vmatpush1.msra.mxu0 0.0
        %3533 = vmatprep.subr.mxu0 0.0
        %3534 = vmatpush1.msra.mxu0 %v3511
        %3535 = vmatprep.subr.mxu0 0.0
        %3536 = vmatpush1.msra.mxu0 %v3510
        %3537 = vmatprep.subr.mxu0 0.0
        %3538 = vmatpush1.msra.mxu0 %v3509
        %3539 = vmatprep.subr.mxu0 0.0
        %3540 = vmatpush1.msra.mxu0 %v3508
        %3541 = vmatprep.subr.mxu0 0.0
        %3542 = vmatpush1.msra.mxu0 %v3507
        %3543 = vmatprep.subr.mxu0 0.0
        %3544 = vmatpush1.msra.mxu0 %v3506
        %3545 = vmatprep.subr.mxu0 0.0
        %3546 = vmatpush1.msra.mxu0 %v3505
        %3547 = vmatprep.subr.mxu0 0.0
        %3548 = vmatpush1.msra.mxu0 %v3504
        %3549 = vmatprep.subr.mxu0 0.0
        %3550 = vmatpush2.msra.mxu0 0.0
        %3551 = vmatprep.subr.mxu0 0.0
        %3552 = vmatpush2.msra.mxu0 0.0
        %3553 = vmatprep.subr.mxu0 0.0
        %3554 = vmatpush2.msra.mxu0 0.0
        %3555 = vmatprep.subr.mxu0 0.0
        %3556 = vmatpush2.msra.mxu0 0.0
        %3557 = vmatprep.subr.mxu0 0.0
        %3558 = vmatpush2.msra.mxu0 0.0
        %3559 = vmatprep.subr.mxu0 0.0
        %3560 = vmatpush2.msra.mxu0 0.0
        %3561 = vmatprep.subr.mxu0 0.0
        %3562 = vmatpush2.msra.mxu0 0.0
        %3563 = vmatprep.subr.mxu0 0.0
        %3564 = vmatpush2.msra.mxu0 0.0
        %3565 = vmatprep.subr.mxu0 0.0
        %3566 = vmatpush2.msra.mxu0 0.0
        %3567 = vmatprep.subr.mxu0 0.0
        %3568 = vmatpush2.msra.mxu0 0.0
        %3569 = vmatprep.subr.mxu0 0.0
        %3570 = vmatpush2.msra.mxu0 0.0
        %3571 = vmatprep.subr.mxu0 0.0
        %3572 = vmatpush2.msra.mxu0 0.0
        %3573 = vmatprep.subr.mxu0 0.0
        %3574 = vmatpush2.msra.mxu0 0.0
        %3575 = vmatprep.subr.mxu0 0.0
        %3576 = vmatpush2.msra.mxu0 0.0
        %3577 = vmatprep.subr.mxu0 0.0
        %3578 = vmatpush2.msra.mxu0 0.0
        %3579 = vmatprep.subr.mxu0 0.0
        %3580 = vmatpush2.msra.mxu0 0.0
        %3581 = vmatprep.mubr.f32.mxu0 0.0
        %3582 = vmatmul.mubr.f32.gmra.mxu0 %v3515
        %v3583 = vpop.f32.mrf.mxu0
        %v3584 = vadd.f32 %v3512, %v3583
        %v3585 = vpop.f32.mrf.mxu0
        %3586 = vdwg.mxu0
        %vm3587 = vcmask 24576
        %3588 = vst.msk [vmem:[%s459] sm:$0x1] %vm3587, %v3584
        %s3589 = sand.u32 %s335, 1
        %s3590 = scalar_lea.sflag [#allocation3], %s3589
        %s3591 = sand.u32 %s335, 1
        %s3592 = scalar_lea.vmem [#allocation2], %s3591
        // Predicated region
        $region77: #{net_forward.1} parent=75 // pred_check
          %p3593 = pneg %p345
        $region78: #{net_forward.1} parent=75 // pred_check_branch
          %3595 = sbr.rel (%p3593) target = $region80
        $region79: #{net_forward.1} parent=75 // pred_region
          %s3597 = ssub.s32 16, 16
          %3598 = vsyncadd %s3590, %s3597
          %s3599 = smul.addr %s28, 16
          %s3600 = scalar_lea.hbm %s14, %s3599
          %s3602 = sshll.u32 %s3592, 4
          %s3603 = int_to_ptr.vmem [resolvable:$true] %s3602
          %3605 = dma.vmem_to_hbm [thread:$0]  %s3603, 16, %s3600, %s3590
        $region80: #{net_forward.1} parent=75 // pred_fallthru
          _
      $region76: #{net_forward.1} parent=5 // pred_fallthru
        _
      %p3606 = scmp.le.s32.totalorder 2, %s23
      // Predicated region
      $region81: #{net_forward.1} parent=5 // pred_check
        %p3607 = pneg %p3606
      $region82: #{net_forward.1} parent=5 // pred_check_branch
        %3609 = sbr.rel (%p3607) target = $region84
      $region83: #{net_forward.1} parent=5 // pred_region
        %s3610 = ssub.s32 %s23, 2
        // Predicated region
        $region85: #{net_forward.1} parent=83 // pred_check
          %p3611 = pneg %p351
        $region86: #{net_forward.1} parent=83 // pred_check_branch
          %3613 = sbr.rel (%p3611) target = $region88
        $region87: #{net_forward.1} parent=83 // pred_region
          %s3614 = sand.u32 %s336, 1
          %s3615 = scalar_lea.sflag [#allocation3], %s3614
          %s3616 = sand.u32 %s336, 1
          %s3617 = scalar_lea.vmem [#allocation2], %s3616
          %3618 = dma.done %s3615, 16
        $region88: #{net_forward.1} parent=83 // pred_fallthru
          _
      $region84: #{net_forward.1} parent=5 // pred_fallthru
        _
    $region6: #{net_forward.1} parent=1 // loop_footer
      %s27 = sadd.s32 1, %s23
    $region7: #{net_forward.1} parent=1 // loop_footer_branch
      %22 = sbr.rel target = $region3
    $region8: #{net_forward.1} parent=1 // loop_exit
      _
    %3619 = vsyncpa [#allocation3], 1
    %s3620 = scalar_lea.sflag [#allocation3], 1
    %3621 = vsyncpa %s3620, 1

</llo_original>
